<compile_context>
chip_gen: v7x
topology: tpu7x:2x2x1
jax: 0.10.0
libtpu: 0.0.40
codegen_flags: <defaults>
</compile_context>

<pallas_src>
import functools

import numpy as np
import jax
import jax.numpy as jnp
from jax import lax
from jax.experimental import pallas as pl
from jax.experimental.pallas import tpu as pltpu


# ----------------------------------------------------------------------------
# Pallas kernels
# ----------------------------------------------------------------------------

def _up_in_lrelu_kernel(x_ref, w_ref, o_ref):
    """Fused ConvTranspose2d(2, 2, bias=False) + InstanceNorm2d + LeakyReLU(0.2).

    x_ref: (1, H*W, Cin)    bf16 -- one sample, spatially flattened.
    w_ref: (Cin, 4*Cout)    bf16 -- columns ordered (dy, dx, cout); resident block.
    o_ref: (1, H*W, 4*Cout)      -- pre-interleave layout; per-channel stats over
                                    (H*W, dy, dx) equal stats over (2H, 2W).
    """
    y = jnp.dot(x_ref[0], w_ref[...], preferred_element_type=jnp.float32)  # (HW, 4C) f32
    hw, c4 = y.shape
    c = c4 // 4
    cnt = 4.0 * hw

    # Per-output-channel mean over rows and the four (dy, dx) column groups.
    s1 = jnp.sum(y, axis=0, keepdims=True)                                  # (1, 4C)
    mean = (s1[:, 0:c] + s1[:, c:2 * c] + s1[:, 2 * c:3 * c] + s1[:, 3 * c:]) / cnt
    mean4 = jnp.concatenate([mean, mean, mean, mean], axis=-1)              # (1, 4C)
    d = y - mean4
    s2 = jnp.sum(d * d, axis=0, keepdims=True)
    var = (s2[:, 0:c] + s2[:, c:2 * c] + s2[:, 2 * c:3 * c] + s2[:, 3 * c:]) / cnt
    inv = lax.rsqrt(var + 1e-5)
    inv4 = jnp.concatenate([inv, inv, inv, inv], axis=-1)

    yn = d * inv4
    o_ref[0] = jnp.where(yn >= 0.0, yn, 0.2 * yn).astype(o_ref.dtype)


def _conv3x3_in_lrelu_kernel(*refs, H, W, n_inputs):
    """Fused 3x3 conv (pad=1, no bias) over one sample + InstanceNorm2d + LeakyReLU(0.2).

    refs = (x_ref_0..x_ref_{n-1}, w_ref_0..w_ref_{n-1}, o_ref)
      x_ref_i: (1, H+2, W+2, Ci) bf16 -- spatially padded sample (halo'd VMEM tile).
      w_ref_i: (9*Ci, Cout)      bf16 -- HWIO weight reshaped, rows ordered (dy, dx, ci).
      o_ref  : (1, H*W, Cout)
    The 9-tap im2col is built in VMEM and collapsed into one K=9*Ci matmul per input;
    multiple inputs implement the channel-concat by split-weight accumulation.
    """
    o_ref = refs[-1]
    acc = None
    for i in range(n_inputs):
        xv = refs[i][0]                               # (H+2, W+2, Ci)
        ci = xv.shape[-1]
        cols = []
        for dy in range(3):
            for dx in range(3):
                cols.append(xv[dy:dy + H, dx:dx + W, :].reshape(H * W, ci))
        patches = jnp.concatenate(cols, axis=-1)      # (H*W, 9*Ci)
        part = jnp.dot(patches, refs[n_inputs + i][...],
                       preferred_element_type=jnp.float32)      # (H*W, Cout) f32
        acc = part if acc is None else acc + part

    # InstanceNorm (affine=False, eps=1e-5) + LeakyReLU(0.2) epilogue, stats in f32.
    mean = jnp.mean(acc, axis=0, keepdims=True)
    d = acc - mean
    var = jnp.mean(d * d, axis=0, keepdims=True)
    yn = d * lax.rsqrt(var + 1e-5)
    o_ref[0] = jnp.where(yn >= 0.0, yn, 0.2 * yn).astype(o_ref.dtype)


# ----------------------------------------------------------------------------
# Wrappers (layout plumbing only)
# ----------------------------------------------------------------------------

def up_in_lrelu(x_nhwc, w_up_torch):
    """ConvTranspose2d(2, 2, bias=False) + InstanceNorm + LeakyReLU, fully fused.

    x_nhwc: (N, H, W, Cin);  w_up_torch: PyTorch layout (Cin, Cout, 2, 2).
    Returns bf16 (N, 2H, 2W, Cout).
    """
    N, H, W, Cin = x_nhwc.shape
    Cout = w_up_torch.shape[1]
    # (Cin, Cout, 2, 2) -> (Cin, dy, dx, Cout) -> (Cin, 4*Cout)
    w = jnp.transpose(w_up_torch, (0, 2, 3, 1)).reshape(Cin, 4 * Cout).astype(jnp.bfloat16)
    xf = x_nhwc.astype(jnp.bfloat16).reshape(N, H * W, Cin)

    y = pl.pallas_call(
        _up_in_lrelu_kernel,
        out_shape=jax.ShapeDtypeStruct((N, H * W, 4 * Cout), jnp.bfloat16),
        grid=(N,),
        in_specs=[
            pl.BlockSpec((1, H * W, Cin), lambda n: (n, 0, 0)),
            pl.BlockSpec((Cin, 4 * Cout), lambda n: (0, 0)),      # resident weight
        ],
        out_specs=pl.BlockSpec((1, H * W, 4 * Cout), lambda n: (n, 0, 0)),
        compiler_params=pltpu.CompilerParams(dimension_semantics=("parallel",)),
    )(xf, w)

    # Interleave (dy, dx) sub-pixels into (2H, 2W).  Cheap XLA shuffle of a bf16 tensor.
    # TODO(synk): at production resolutions fold this interleave into the consumer's
    # in-kernel window extraction / out_spec index_map instead of an XLA transpose.
    y = y.reshape(N, H, W, 2, 2, Cout)
    y = jnp.transpose(y, (0, 1, 3, 2, 4, 5)).reshape(N, 2 * H, 2 * W, Cout)
    return y


def conv3x3_in_lrelu(inputs, weights_hwio, out_dtype=jnp.bfloat16):
    """Fused Conv2d(3x3, pad=1, bias=False) + InstanceNorm2d + LeakyReLU(0.2).

    inputs:       list of NHWC tensors sharing (N, H, W); channel-concat is realized by
                  split-weight accumulation inside the kernel (no HBM concat).
    weights_hwio: matching list of (3, 3, Ci, Cout) weights.
    """
    N, H, W, _ = inputs[0].shape
    Cout = weights_hwio[0].shape[-1]
    n_in = len(inputs)

    padded, wflat, in_specs = [], [], []
    for t in inputs:
        ci = t.shape[-1]
        padded.append(jnp.pad(t.astype(jnp.bfloat16), ((0, 0), (1, 1), (1, 1), (0, 0))))
        in_specs.append(pl.BlockSpec((1, H + 2, W + 2, ci), lambda n: (n, 0, 0, 0)))
    for wt in weights_hwio:
        ci = wt.shape[2]
        wflat.append(wt.astype(jnp.bfloat16).reshape(9 * ci, Cout))
        in_specs.append(pl.BlockSpec((9 * ci, Cout), lambda n: (0, 0)))   # resident

    # TODO(synk): at production resolutions (v7x 64 MiB VMEM) switch to row-tiled blocks
    # with a halo plus a two-pass (partial sum / sumsq) InstanceNorm; whole-sample blocks
    # are chosen here to keep the norm fully fused in one pass.
    out = pl.pallas_call(
        functools.partial(_conv3x3_in_lrelu_kernel, H=H, W=W, n_inputs=n_in),
        out_shape=jax.ShapeDtypeStruct((N, H * W, Cout), out_dtype),
        grid=(N,),
        in_specs=in_specs,
        out_specs=pl.BlockSpec((1, H * W, Cout), lambda n: (n, 0, 0)),
        compiler_params=pltpu.CompilerParams(dimension_semantics=("parallel",)),
    )(*padded, *wflat)
    return out.reshape(N, H, W, Cout)


# ----------------------------------------------------------------------------
# Unet_up forward
# ----------------------------------------------------------------------------

def unet_up_forward(params, x, x_encode, drop_prob=0.0):
    """x:        (N, in_chan,  H,  W)   NCHW (PyTorch convention)
       x_encode: (N, out_chan, 2H, 2W)  NCHW
       returns   (N, out_chan, 2H, 2W)  NCHW float32
    """
    del drop_prob  # TODO(synk): Dropout2d omitted -- identity in eval mode (no RNG state).
    xn = jnp.transpose(x, (0, 2, 3, 1))                                   # NHWC
    xe = jnp.transpose(x_encode, (0, 2, 3, 1)).astype(jnp.bfloat16)       # NHWC

    # --- up: ConvTranspose2d(2,2) + InstanceNorm + LeakyReLU (one fused kernel)
    u = up_in_lrelu(xn, params["w_up"])                                   # (N, 2H, 2W, Cout)

    # --- concat([x_encode, u]) + conv1 + IN + LReLU: concat realized as two accumulated
    #     matmuls with w_c1 split along its input-channel axis (encoder channels first).
    ce = xe.shape[-1]
    w1 = params["w_c1"]
    h = conv3x3_in_lrelu([xe, u], [w1[:, :, :ce, :], w1[:, :, ce:, :]])

    # --- conv2 + IN + LReLU
    h = conv3x3_in_lrelu([h], [params["w_c2"]], out_dtype=jnp.float32)

    return jnp.transpose(h, (0, 3, 1, 2))                                 # back to NCHW


# ----------------------------------------------------------------------------
# Pure-JAX reference (mirrors the kernel precision policy: bf16 matmul operands,
# f32 accumulation, f32 InstanceNorm statistics, bf16 intermediate activations)
# ----------------------------------------------------------------------------

def _in_lrelu_ref(x):
    m = jnp.mean(x, axis=(1, 2), keepdims=True)
    v = jnp.mean((x - m) ** 2, axis=(1, 2), keepdims=True)
    y = (x - m) / jnp.sqrt(v + 1e-5)
    return jnp.where(y >= 0, y, 0.2 * y)


def _conv3x3_ref(x, w_hwio):
    return lax.conv_general_dilated(
        x, w_hwio, window_strides=(1, 1), padding="SAME",
        dimension_numbers=("NHWC", "HWIO", "NHWC"),
        preferred_element_type=jnp.float32)


def unet_up_reference(params, x, x_encode):
    xn = jnp.transpose(x, (0, 2, 3, 1)).astype(jnp.bfloat16)
    xe = jnp.transpose(x_encode, (0, 2, 3, 1)).astype(jnp.bfloat16)
    N, H, W, _ = xn.shape
    Cout = params["w_up"].shape[1]
    y = jnp.einsum("nhwc,coij->nhiwjo", xn, params["w_up"].astype(jnp.bfloat16),
                   preferred_element_type=jnp.float32).reshape(N, 2 * H, 2 * W, Cout)
    u = _in_lrelu_ref(y).astype(jnp.bfloat16)
    c = jnp.concatenate([xe, u], axis=-1)
    h1 = _in_lrelu_ref(_conv3x3_ref(c, params["w_c1"].astype(jnp.bfloat16)))
    h1 = h1.astype(jnp.bfloat16)
    h2 = _in_lrelu_ref(_conv3x3_ref(h1, params["w_c2"].astype(jnp.bfloat16)))
    return jnp.transpose(h2, (0, 3, 1, 2))


# ----------------------------------------------------------------------------
# Main
# ----------------------------------------------------------------------------

if __name__ == "__main__":
    in_chan, out_chan, drop_prob = 8, 4, 0.0
    N, H, W = 2, 8, 8  # decoder feature is at half the encoder resolution

    key = jax.random.PRNGKey(0)
    k_up, k_c1, k_c2, k_x, k_e = jax.random.split(key, 5)

    def he_normal(k, shape, fan_in):
        return (jax.random.normal(k, shape) * jnp.sqrt(2.0 / fan_in)).astype(jnp.float32)

    params = {
        # ConvTranspose2d weight, PyTorch layout (in_chan, out_chan, 2, 2)
        "w_up": he_normal(k_up, (in_chan, out_chan, 2, 2), in_chan * 4),
        # Conv2d weights stored as HWIO: (3, 3, Cin, Cout)
        "w_c1": he_normal(k_c1, (3, 3, in_chan, out_chan), in_chan * 9),
        "w_c2": he_normal(k_c2, (3, 3, out_chan, out_chan), out_chan * 9),
    }

    x = jax.random.normal(k_x, (N, in_chan, H, W), dtype=jnp.float32)            # NCHW
    x_encode = jax.random.normal(k_e, (N, out_chan, 2 * H, 2 * W), jnp.float32)  # NCHW

    fwd = jax.jit(functools.partial(unet_up_forward, params, drop_prob=drop_prob))
    out = jax.block_until_ready(fwd(x, x_encode))
    assert out.shape == (N, out_chan, 2 * H, 2 * W), out.shape

    ref = jax.block_until_ready(unet_up_reference(params, x, x_encode))
    np.testing.assert_allclose(np.asarray(out), np.asarray(ref), rtol=2e-2, atol=2e-2)

    print("KERNEL_OK")
</pallas_src>

<mosaic_0001>
module attributes {stable_mosaic.version = 11 : i64} {
  func.func @_up_in_lrelu_kernel(%arg0: i32, %arg1: memref<1x64x8xbf16, #tpu.memory_space<vmem>>, %arg2: memref<8x16xbf16, #tpu.memory_space<vmem>>, %arg3: memref<1x64x16xbf16, #tpu.memory_space<vmem>>) attributes {dimension_semantics = [#tpu.dimension_semantics<parallel>], iteration_bounds = array<i64: 2>, scalar_prefetch = 0 : i64, scratch_operands = 0 : i64, tpu.core_type = #tpu.core_type<tc>, window_params = [{transform_indices = @transform_0, window_bounds = array<i64: 1, 64, 8>}, {pipeline_mode = #tpu.pipeline_mode<synchronous>, transform_indices = @transform_1, window_bounds = array<i64: 8, 16>}, {transform_indices = @transform_2, window_bounds = array<i64: 1, 64, 16>}]} {
    %c0 = arith.constant 0 : index
    %c0_0 = arith.constant 0 : index
    %c0_1 = arith.constant 0 : index
    %0 = vector.load %arg1[%c0, %c0_0, %c0_1] : memref<1x64x8xbf16, #tpu.memory_space<vmem>>, vector<1x64x8xbf16>
    %1 = vector.shape_cast %0 : vector<1x64x8xbf16> to vector<64x8xbf16>
    %c0_2 = arith.constant 0 : index
    %c0_3 = arith.constant 0 : index
    %2 = vector.load %arg2[%c0_2, %c0_3] : memref<8x16xbf16, #tpu.memory_space<vmem>>, vector<8x16xbf16>
    %cst = arith.constant dense<0.000000e+00> : vector<64x16xf32>
    %3 = tpu.matmul %1, %2, %cst {dimension_numbers = #tpu.dot_dimension_numbers<[1], [0], [0], [1], [0, 0, 1, 1], [], []>} : vector<64x8xbf16>, vector<8x16xbf16>, vector<64x16xf32> -> vector<64x16xf32>
    %cst_4 = arith.constant dense<0.000000e+00> : vector<16xf32>
    %4 = vector.multi_reduction <add>, %3, %cst_4 [0] : vector<64x16xf32> to vector<16xf32>
    %5 = vector.shape_cast %4 : vector<16xf32> to vector<1x16xf32>
    %6 = vector.extract_strided_slice %5 {offsets = [0, 0], sizes = [1, 4], strides = [1, 1]} : vector<1x16xf32> to vector<1x4xf32>
    %7 = vector.extract_strided_slice %5 {offsets = [0, 4], sizes = [1, 4], strides = [1, 1]} : vector<1x16xf32> to vector<1x4xf32>
    %8 = arith.addf %6, %7 : vector<1x4xf32>
    %9 = vector.extract_strided_slice %5 {offsets = [0, 8], sizes = [1, 4], strides = [1, 1]} : vector<1x16xf32> to vector<1x4xf32>
    %10 = arith.addf %8, %9 : vector<1x4xf32>
    %11 = vector.extract_strided_slice %5 {offsets = [0, 12], sizes = [1, 4], strides = [1, 1]} : vector<1x16xf32> to vector<1x4xf32>
    %12 = arith.addf %10, %11 : vector<1x4xf32>
    %cst_5 = arith.constant 2.560000e+02 : f32
    %13 = vector.broadcast %cst_5 : f32 to vector<1x4xf32>
    %14 = arith.divf %12, %13 : vector<1x4xf32>
    %15 = tpu.concatenate %14, %14, %14, %14 in 1 : vector<1x4xf32>, vector<1x4xf32>, vector<1x4xf32>, vector<1x4xf32> -> vector<1x16xf32>
    %16 = vector.broadcast %15 : vector<1x16xf32> to vector<64x16xf32>
    %17 = arith.subf %3, %16 : vector<64x16xf32>
    %18 = arith.mulf %17, %17 : vector<64x16xf32>
    %cst_6 = arith.constant dense<0.000000e+00> : vector<16xf32>
    %19 = vector.multi_reduction <add>, %18, %cst_6 [0] : vector<64x16xf32> to vector<16xf32>
    %20 = vector.shape_cast %19 : vector<16xf32> to vector<1x16xf32>
    %21 = vector.extract_strided_slice %20 {offsets = [0, 0], sizes = [1, 4], strides = [1, 1]} : vector<1x16xf32> to vector<1x4xf32>
    %22 = vector.extract_strided_slice %20 {offsets = [0, 4], sizes = [1, 4], strides = [1, 1]} : vector<1x16xf32> to vector<1x4xf32>
    %23 = arith.addf %21, %22 : vector<1x4xf32>
    %24 = vector.extract_strided_slice %20 {offsets = [0, 8], sizes = [1, 4], strides = [1, 1]} : vector<1x16xf32> to vector<1x4xf32>
    %25 = arith.addf %23, %24 : vector<1x4xf32>
    %26 = vector.extract_strided_slice %20 {offsets = [0, 12], sizes = [1, 4], strides = [1, 1]} : vector<1x16xf32> to vector<1x4xf32>
    %27 = arith.addf %25, %26 : vector<1x4xf32>
    %cst_7 = arith.constant 2.560000e+02 : f32
    %28 = vector.broadcast %cst_7 : f32 to vector<1x4xf32>
    %29 = arith.divf %27, %28 : vector<1x4xf32>
    %cst_8 = arith.constant 9.99999974E-6 : f32
    %30 = vector.broadcast %cst_8 : f32 to vector<1x4xf32>
    %31 = arith.addf %29, %30 : vector<1x4xf32>
    %32 = math.rsqrt %31 : vector<1x4xf32>
    %33 = tpu.concatenate %32, %32, %32, %32 in 1 : vector<1x4xf32>, vector<1x4xf32>, vector<1x4xf32>, vector<1x4xf32> -> vector<1x16xf32>
    %34 = vector.broadcast %33 : vector<1x16xf32> to vector<64x16xf32>
    %35 = arith.mulf %17, %34 : vector<64x16xf32>
    %cst_9 = arith.constant 0.000000e+00 : f32
    %36 = vector.broadcast %cst_9 : f32 to vector<64x16xf32>
    %37 = arith.cmpf oge, %35, %36 : vector<64x16xf32>
    %cst_10 = arith.constant 2.000000e-01 : f32
    %38 = vector.broadcast %cst_10 : f32 to vector<64x16xf32>
    %39 = arith.mulf %38, %35 : vector<64x16xf32>
    %40 = arith.select %37, %35, %39 : vector<64x16xi1>, vector<64x16xf32>
    %41 = arith.truncf %40 : vector<64x16xf32> to vector<64x16xbf16>
    %c0_11 = arith.constant 0 : index
    %c0_12 = arith.constant 0 : index
    %c0_13 = arith.constant 0 : index
    %42 = vector.load %arg3[%c0_11, %c0_12, %c0_13] : memref<1x64x16xbf16, #tpu.memory_space<vmem>>, vector<1x64x16xbf16>
    %43 = vector.shape_cast %42 : vector<1x64x16xbf16> to vector<64x16xbf16>
    %44 = vector.shape_cast %41 : vector<64x16xbf16> to vector<1x64x16xbf16>
    tpu.vector_store %arg3[%c0_11, %c0_12, %c0_13], %44 {strides = array<i32>} : memref<1x64x16xbf16, #tpu.memory_space<vmem>>, vector<1x64x16xbf16>,
    return
  }
  func.func @transform_0(%arg0: i32) -> (i32, i32, i32) {
    %c0_i32 = arith.constant 0 : i32
    %c0_i32_0 = arith.constant 0 : i32
    %c0_i32_1 = arith.constant 0 : i32
    return %arg0, %c0_i32, %c0_i32_0 : i32, i32, i32
  }
  func.func @transform_1(%arg0: i32) -> (i32, i32) {
    %c0_i32 = arith.constant 0 : i32
    %c0_i32_0 = arith.constant 0 : i32
    %c0_i32_1 = arith.constant 0 : i32
    return %c0_i32, %c0_i32_0 : i32, i32
  }
  func.func @transform_2(%arg0: i32) -> (i32, i32, i32) {
    %c0_i32 = arith.constant 0 : i32
    %c0_i32_0 = arith.constant 0 : i32
    %c0_i32_1 = arith.constant 0 : i32
    return %arg0, %c0_i32, %c0_i32_0 : i32, i32, i32
  }
}

module attributes {stable_mosaic.version = 11 : i64} {
  func.func @_conv3x3_in_lrelu_kernel(%arg0: i32, %arg1: memref<1x18x18x4xbf16, #tpu.memory_space<vmem>>, %arg2: memref<1x18x18x4xbf16, #tpu.memory_space<vmem>>, %arg3: memref<36x4xbf16, #tpu.memory_space<vmem>>, %arg4: memref<36x4xbf16, #tpu.memory_space<vmem>>, %arg5: memref<1x256x4xbf16, #tpu.memory_space<vmem>>) attributes {dimension_semantics = [#tpu.dimension_semantics<parallel>], iteration_bounds = array<i64: 2>, scalar_prefetch = 0 : i64, scratch_operands = 0 : i64, tpu.core_type = #tpu.core_type<tc>, window_params = [{transform_indices = @transform_0, window_bounds = array<i64: 1, 18, 18, 4>}, {transform_indices = @transform_1, window_bounds = array<i64: 1, 18, 18, 4>}, {pipeline_mode = #tpu.pipeline_mode<synchronous>, transform_indices = @transform_2, window_bounds = array<i64: 36, 4>}, {pipeline_mode = #tpu.pipeline_mode<synchronous>, transform_indices = @transform_3, window_bounds = array<i64: 36, 4>}, {transform_indices = @transform_4, window_bounds = array<i64: 1, 256, 4>}]} {
    %c0 = arith.constant 0 : index
    %c0_0 = arith.constant 0 : index
    %c0_1 = arith.constant 0 : index
    %c0_2 = arith.constant 0 : index
    %0 = vector.load %arg1[%c0, %c0_0, %c0_1, %c0_2] : memref<1x18x18x4xbf16, #tpu.memory_space<vmem>>, vector<1x18x18x4xbf16>
    %1 = vector.shape_cast %0 : vector<1x18x18x4xbf16> to vector<18x18x4xbf16>
    %2 = vector.extract_strided_slice %1 {offsets = [0, 0, 0], sizes = [16, 16, 4], strides = [1, 1, 1]} : vector<18x18x4xbf16> to vector<16x16x4xbf16>
    %3 = vector.shape_cast %2 : vector<16x16x4xbf16> to vector<256x4xbf16>
    %4 = vector.extract_strided_slice %1 {offsets = [0, 1, 0], sizes = [16, 16, 4], strides = [1, 1, 1]} : vector<18x18x4xbf16> to vector<16x16x4xbf16>
    %5 = vector.shape_cast %4 : vector<16x16x4xbf16> to vector<256x4xbf16>
    %6 = vector.extract_strided_slice %1 {offsets = [0, 2, 0], sizes = [16, 16, 4], strides = [1, 1, 1]} : vector<18x18x4xbf16> to vector<16x16x4xbf16>
    %7 = vector.shape_cast %6 : vector<16x16x4xbf16> to vector<256x4xbf16>
    %8 = vector.extract_strided_slice %1 {offsets = [1, 0, 0], sizes = [16, 16, 4], strides = [1, 1, 1]} : vector<18x18x4xbf16> to vector<16x16x4xbf16>
    %9 = vector.shape_cast %8 : vector<16x16x4xbf16> to vector<256x4xbf16>
    %10 = vector.extract_strided_slice %1 {offsets = [1, 1, 0], sizes = [16, 16, 4], strides = [1, 1, 1]} : vector<18x18x4xbf16> to vector<16x16x4xbf16>
    %11 = vector.shape_cast %10 : vector<16x16x4xbf16> to vector<256x4xbf16>
    %12 = vector.extract_strided_slice %1 {offsets = [1, 2, 0], sizes = [16, 16, 4], strides = [1, 1, 1]} : vector<18x18x4xbf16> to vector<16x16x4xbf16>
    %13 = vector.shape_cast %12 : vector<16x16x4xbf16> to vector<256x4xbf16>
    %14 = vector.extract_strided_slice %1 {offsets = [2, 0, 0], sizes = [16, 16, 4], strides = [1, 1, 1]} : vector<18x18x4xbf16> to vector<16x16x4xbf16>
    %15 = vector.shape_cast %14 : vector<16x16x4xbf16> to vector<256x4xbf16>
    %16 = vector.extract_strided_slice %1 {offsets = [2, 1, 0], sizes = [16, 16, 4], strides = [1, 1, 1]} : vector<18x18x4xbf16> to vector<16x16x4xbf16>
    %17 = vector.shape_cast %16 : vector<16x16x4xbf16> to vector<256x4xbf16>
    %18 = vector.extract_strided_slice %1 {offsets = [2, 2, 0], sizes = [16, 16, 4], strides = [1, 1, 1]} : vector<18x18x4xbf16> to vector<16x16x4xbf16>
    %19 = vector.shape_cast %18 : vector<16x16x4xbf16> to vector<256x4xbf16>
    %20 = tpu.concatenate %3, %5, %7, %9, %11, %13, %15, %17, %19 in 1 : vector<256x4xbf16>, vector<256x4xbf16>, vector<256x4xbf16>, vector<256x4xbf16>, vector<256x4xbf16>, vector<256x4xbf16>, vector<256x4xbf16>, vector<256x4xbf16>, vector<256x4xbf16> -> vector<256x36xbf16>
    %c0_3 = arith.constant 0 : index
    %c0_4 = arith.constant 0 : index
    %21 = vector.load %arg3[%c0_3, %c0_4] : memref<36x4xbf16, #tpu.memory_space<vmem>>, vector<36x4xbf16>
    %cst = arith.constant dense<0.000000e+00> : vector<256x4xf32>
    %22 = tpu.matmul %20, %21, %cst {dimension_numbers = #tpu.dot_dimension_numbers<[1], [0], [0], [1], [0, 0, 1, 1], [], []>} : vector<256x36xbf16>, vector<36x4xbf16>, vector<256x4xf32> -> vector<256x4xf32>
    %c0_5 = arith.constant 0 : index
    %c0_6 = arith.constant 0 : index
    %c0_7 = arith.constant 0 : index
    %c0_8 = arith.constant 0 : index
    %23 = vector.load %arg2[%c0_5, %c0_6, %c0_7, %c0_8] : memref<1x18x18x4xbf16, #tpu.memory_space<vmem>>, vector<1x18x18x4xbf16>
    %24 = vector.shape_cast %23 : vector<1x18x18x4xbf16> to vector<18x18x4xbf16>
    %25 = vector.extract_strided_slice %24 {offsets = [0, 0, 0], sizes = [16, 16, 4], strides = [1, 1, 1]} : vector<18x18x4xbf16> to vector<16x16x4xbf16>
    %26 = vector.shape_cast %25 : vector<16x16x4xbf16> to vector<256x4xbf16>
    %27 = vector.extract_strided_slice %24 {offsets = [0, 1, 0], sizes = [16, 16, 4], strides = [1, 1, 1]} : vector<18x18x4xbf16> to vector<16x16x4xbf16>
    %28 = vector.shape_cast %27 : vector<16x16x4xbf16> to vector<256x4xbf16>
    %29 = vector.extract_strided_slice %24 {offsets = [0, 2, 0], sizes = [16, 16, 4], strides = [1, 1, 1]} : vector<18x18x4xbf16> to vector<16x16x4xbf16>
    %30 = vector.shape_cast %29 : vector<16x16x4xbf16> to vector<256x4xbf16>
    %31 = vector.extract_strided_slice %24 {offsets = [1, 0, 0], sizes = [16, 16, 4], strides = [1, 1, 1]} : vector<18x18x4xbf16> to vector<16x16x4xbf16>
    %32 = vector.shape_cast %31 : vector<16x16x4xbf16> to vector<256x4xbf16>
    %33 = vector.extract_strided_slice %24 {offsets = [1, 1, 0], sizes = [16, 16, 4], strides = [1, 1, 1]} : vector<18x18x4xbf16> to vector<16x16x4xbf16>
    %34 = vector.shape_cast %33 : vector<16x16x4xbf16> to vector<256x4xbf16>
    %35 = vector.extract_strided_slice %24 {offsets = [1, 2, 0], sizes = [16, 16, 4], strides = [1, 1, 1]} : vector<18x18x4xbf16> to vector<16x16x4xbf16>
    %36 = vector.shape_cast %35 : vector<16x16x4xbf16> to vector<256x4xbf16>
    %37 = vector.extract_strided_slice %24 {offsets = [2, 0, 0], sizes = [16, 16, 4], strides = [1, 1, 1]} : vector<18x18x4xbf16> to vector<16x16x4xbf16>
    %38 = vector.shape_cast %37 : vector<16x16x4xbf16> to vector<256x4xbf16>
    %39 = vector.extract_strided_slice %24 {offsets = [2, 1, 0], sizes = [16, 16, 4], strides = [1, 1, 1]} : vector<18x18x4xbf16> to vector<16x16x4xbf16>
    %40 = vector.shape_cast %39 : vector<16x16x4xbf16> to vector<256x4xbf16>
    %41 = vector.extract_strided_slice %24 {offsets = [2, 2, 0], sizes = [16, 16, 4], strides = [1, 1, 1]} : vector<18x18x4xbf16> to vector<16x16x4xbf16>
    %42 = vector.shape_cast %41 : vector<16x16x4xbf16> to vector<256x4xbf16>
    %43 = tpu.concatenate %26, %28, %30, %32, %34, %36, %38, %40, %42 in 1 : vector<256x4xbf16>, vector<256x4xbf16>, vector<256x4xbf16>, vector<256x4xbf16>, vector<256x4xbf16>, vector<256x4xbf16>, vector<256x4xbf16>, vector<256x4xbf16>, vector<256x4xbf16> -> vector<256x36xbf16>
    %c0_9 = arith.constant 0 : index
    %c0_10 = arith.constant 0 : index
    %44 = vector.load %arg4[%c0_9, %c0_10] : memref<36x4xbf16, #tpu.memory_space<vmem>>, vector<36x4xbf16>
    %cst_11 = arith.constant dense<0.000000e+00> : vector<256x4xf32>
    %45 = tpu.matmul %43, %44, %cst_11 {dimension_numbers = #tpu.dot_dimension_numbers<[1], [0], [0], [1], [0, 0, 1, 1], [], []>} : vector<256x36xbf16>, vector<36x4xbf16>, vector<256x4xf32> -> vector<256x4xf32>
    %46 = arith.addf %22, %45 : vector<256x4xf32>
    %cst_12 = arith.constant dense<0.000000e+00> : vector<4xf32>
    %47 = vector.multi_reduction <add>, %46, %cst_12 [0] : vector<256x4xf32> to vector<4xf32>
    %48 = vector.shape_cast %47 : vector<4xf32> to vector<1x4xf32>
    %cst_13 = arith.constant 2.560000e+02 : f32
    %49 = vector.broadcast %cst_13 : f32 to vector<1x4xf32>
    %50 = arith.divf %48, %49 : vector<1x4xf32>
    %51 = vector.broadcast %50 : vector<1x4xf32> to vector<256x4xf32>
    %52 = arith.subf %46, %51 : vector<256x4xf32>
    %53 = arith.mulf %52, %52 : vector<256x4xf32>
    %cst_14 = arith.constant dense<0.000000e+00> : vector<4xf32>
    %54 = vector.multi_reduction <add>, %53, %cst_14 [0] : vector<256x4xf32> to vector<4xf32>
    %55 = vector.shape_cast %54 : vector<4xf32> to vector<1x4xf32>
    %cst_15 = arith.constant 2.560000e+02 : f32
    %56 = vector.broadcast %cst_15 : f32 to vector<1x4xf32>
    %57 = arith.divf %55, %56 : vector<1x4xf32>
    %cst_16 = arith.constant 9.99999974E-6 : f32
    %58 = vector.broadcast %cst_16 : f32 to vector<1x4xf32>
    %59 = arith.addf %57, %58 : vector<1x4xf32>
    %60 = math.rsqrt %59 : vector<1x4xf32>
    %61 = vector.broadcast %60 : vector<1x4xf32> to vector<256x4xf32>
    %62 = arith.mulf %52, %61 : vector<256x4xf32>
    %cst_17 = arith.constant 0.000000e+00 : f32
    %63 = vector.broadcast %cst_17 : f32 to vector<256x4xf32>
    %64 = arith.cmpf oge, %62, %63 : vector<256x4xf32>
    %cst_18 = arith.constant 2.000000e-01 : f32
    %65 = vector.broadcast %cst_18 : f32 to vector<256x4xf32>
    %66 = arith.mulf %65, %62 : vector<256x4xf32>
    %67 = arith.select %64, %62, %66 : vector<256x4xi1>, vector<256x4xf32>
    %68 = arith.truncf %67 : vector<256x4xf32> to vector<256x4xbf16>
    %c0_19 = arith.constant 0 : index
    %c0_20 = arith.constant 0 : index
    %c0_21 = arith.constant 0 : index
    %69 = vector.load %arg5[%c0_19, %c0_20, %c0_21] : memref<1x256x4xbf16, #tpu.memory_space<vmem>>, vector<1x256x4xbf16>
    %70 = vector.shape_cast %69 : vector<1x256x4xbf16> to vector<256x4xbf16>
    %71 = vector.shape_cast %68 : vector<256x4xbf16> to vector<1x256x4xbf16>
    tpu.vector_store %arg5[%c0_19, %c0_20, %c0_21], %71 {strides = array<i32>} : memref<1x256x4xbf16, #tpu.memory_space<vmem>>, vector<1x256x4xbf16>,
    return
  }
  func.func @transform_0(%arg0: i32) -> (i32, i32, i32, i32) {
    %c0_i32 = arith.constant 0 : i32
    %c0_i32_0 = arith.constant 0 : i32
    %c0_i32_1 = arith.constant 0 : i32
    %c0_i32_2 = arith.constant 0 : i32
    return %arg0, %c0_i32, %c0_i32_0, %c0_i32_1 : i32, i32, i32, i32
  }
  func.func @transform_1(%arg0: i32) -> (i32, i32, i32, i32) {
    %c0_i32 = arith.constant 0 : i32
    %c0_i32_0 = arith.constant 0 : i32
    %c0_i32_1 = arith.constant 0 : i32
    %c0_i32_2 = arith.constant 0 : i32
    return %arg0, %c0_i32, %c0_i32_0, %c0_i32_1 : i32, i32, i32, i32
  }
  func.func @transform_2(%arg0: i32) -> (i32, i32) {
    %c0_i32 = arith.constant 0 : i32
    %c0_i32_0 = arith.constant 0 : i32
    %c0_i32_1 = arith.constant 0 : i32
    return %c0_i32, %c0_i32_0 : i32, i32
  }
  func.func @transform_3(%arg0: i32) -> (i32, i32) {
    %c0_i32 = arith.constant 0 : i32
    %c0_i32_0 = arith.constant 0 : i32
    %c0_i32_1 = arith.constant 0 : i32
    return %c0_i32, %c0_i32_0 : i32, i32
  }
  func.func @transform_4(%arg0: i32) -> (i32, i32, i32) {
    %c0_i32 = arith.constant 0 : i32
    %c0_i32_0 = arith.constant 0 : i32
    %c0_i32_1 = arith.constant 0 : i32
    return %arg0, %c0_i32, %c0_i32_0 : i32, i32, i32
  }
}

module attributes {stable_mosaic.version = 11 : i64} {
  func.func @_conv3x3_in_lrelu_kernel(%arg0: i32, %arg1: memref<1x18x18x4xbf16, #tpu.memory_space<vmem>>, %arg2: memref<36x4xbf16, #tpu.memory_space<vmem>>, %arg3: memref<1x256x4xf32, #tpu.memory_space<vmem>>) attributes {dimension_semantics = [#tpu.dimension_semantics<parallel>], iteration_bounds = array<i64: 2>, scalar_prefetch = 0 : i64, scratch_operands = 0 : i64, tpu.core_type = #tpu.core_type<tc>, window_params = [{transform_indices = @transform_0, window_bounds = array<i64: 1, 18, 18, 4>}, {pipeline_mode = #tpu.pipeline_mode<synchronous>, transform_indices = @transform_1, window_bounds = array<i64: 36, 4>}, {transform_indices = @transform_2, window_bounds = array<i64: 1, 256, 4>}]} {
    %c0 = arith.constant 0 : index
    %c0_0 = arith.constant 0 : index
    %c0_1 = arith.constant 0 : index
    %c0_2 = arith.constant 0 : index
    %0 = vector.load %arg1[%c0, %c0_0, %c0_1, %c0_2] : memref<1x18x18x4xbf16, #tpu.memory_space<vmem>>, vector<1x18x18x4xbf16>
    %1 = vector.shape_cast %0 : vector<1x18x18x4xbf16> to vector<18x18x4xbf16>
    %2 = vector.extract_strided_slice %1 {offsets = [0, 0, 0], sizes = [16, 16, 4], strides = [1, 1, 1]} : vector<18x18x4xbf16> to vector<16x16x4xbf16>
    %3 = vector.shape_cast %2 : vector<16x16x4xbf16> to vector<256x4xbf16>
    %4 = vector.extract_strided_slice %1 {offsets = [0, 1, 0], sizes = [16, 16, 4], strides = [1, 1, 1]} : vector<18x18x4xbf16> to vector<16x16x4xbf16>
    %5 = vector.shape_cast %4 : vector<16x16x4xbf16> to vector<256x4xbf16>
    %6 = vector.extract_strided_slice %1 {offsets = [0, 2, 0], sizes = [16, 16, 4], strides = [1, 1, 1]} : vector<18x18x4xbf16> to vector<16x16x4xbf16>
    %7 = vector.shape_cast %6 : vector<16x16x4xbf16> to vector<256x4xbf16>
    %8 = vector.extract_strided_slice %1 {offsets = [1, 0, 0], sizes = [16, 16, 4], strides = [1, 1, 1]} : vector<18x18x4xbf16> to vector<16x16x4xbf16>
    %9 = vector.shape_cast %8 : vector<16x16x4xbf16> to vector<256x4xbf16>
    %10 = vector.extract_strided_slice %1 {offsets = [1, 1, 0], sizes = [16, 16, 4], strides = [1, 1, 1]} : vector<18x18x4xbf16> to vector<16x16x4xbf16>
    %11 = vector.shape_cast %10 : vector<16x16x4xbf16> to vector<256x4xbf16>
    %12 = vector.extract_strided_slice %1 {offsets = [1, 2, 0], sizes = [16, 16, 4], strides = [1, 1, 1]} : vector<18x18x4xbf16> to vector<16x16x4xbf16>
    %13 = vector.shape_cast %12 : vector<16x16x4xbf16> to vector<256x4xbf16>
    %14 = vector.extract_strided_slice %1 {offsets = [2, 0, 0], sizes = [16, 16, 4], strides = [1, 1, 1]} : vector<18x18x4xbf16> to vector<16x16x4xbf16>
    %15 = vector.shape_cast %14 : vector<16x16x4xbf16> to vector<256x4xbf16>
    %16 = vector.extract_strided_slice %1 {offsets = [2, 1, 0], sizes = [16, 16, 4], strides = [1, 1, 1]} : vector<18x18x4xbf16> to vector<16x16x4xbf16>
    %17 = vector.shape_cast %16 : vector<16x16x4xbf16> to vector<256x4xbf16>
    %18 = vector.extract_strided_slice %1 {offsets = [2, 2, 0], sizes = [16, 16, 4], strides = [1, 1, 1]} : vector<18x18x4xbf16> to vector<16x16x4xbf16>
    %19 = vector.shape_cast %18 : vector<16x16x4xbf16> to vector<256x4xbf16>
    %20 = tpu.concatenate %3, %5, %7, %9, %11, %13, %15, %17, %19 in 1 : vector<256x4xbf16>, vector<256x4xbf16>, vector<256x4xbf16>, vector<256x4xbf16>, vector<256x4xbf16>, vector<256x4xbf16>, vector<256x4xbf16>, vector<256x4xbf16>, vector<256x4xbf16> -> vector<256x36xbf16>
    %c0_3 = arith.constant 0 : index
    %c0_4 = arith.constant 0 : index
    %21 = vector.load %arg2[%c0_3, %c0_4] : memref<36x4xbf16, #tpu.memory_space<vmem>>, vector<36x4xbf16>
    %cst = arith.constant dense<0.000000e+00> : vector<256x4xf32>
    %22 = tpu.matmul %20, %21, %cst {dimension_numbers = #tpu.dot_dimension_numbers<[1], [0], [0], [1], [0, 0, 1, 1], [], []>} : vector<256x36xbf16>, vector<36x4xbf16>, vector<256x4xf32> -> vector<256x4xf32>
    %cst_5 = arith.constant dense<0.000000e+00> : vector<4xf32>
    %23 = vector.multi_reduction <add>, %22, %cst_5 [0] : vector<256x4xf32> to vector<4xf32>
    %24 = vector.shape_cast %23 : vector<4xf32> to vector<1x4xf32>
    %cst_6 = arith.constant 2.560000e+02 : f32
    %25 = vector.broadcast %cst_6 : f32 to vector<1x4xf32>
    %26 = arith.divf %24, %25 : vector<1x4xf32>
    %27 = vector.broadcast %26 : vector<1x4xf32> to vector<256x4xf32>
    %28 = arith.subf %22, %27 : vector<256x4xf32>
    %29 = arith.mulf %28, %28 : vector<256x4xf32>
    %cst_7 = arith.constant dense<0.000000e+00> : vector<4xf32>
    %30 = vector.multi_reduction <add>, %29, %cst_7 [0] : vector<256x4xf32> to vector<4xf32>
    %31 = vector.shape_cast %30 : vector<4xf32> to vector<1x4xf32>
    %cst_8 = arith.constant 2.560000e+02 : f32
    %32 = vector.broadcast %cst_8 : f32 to vector<1x4xf32>
    %33 = arith.divf %31, %32 : vector<1x4xf32>
    %cst_9 = arith.constant 9.99999974E-6 : f32
    %34 = vector.broadcast %cst_9 : f32 to vector<1x4xf32>
    %35 = arith.addf %33, %34 : vector<1x4xf32>
    %36 = math.rsqrt %35 : vector<1x4xf32>
    %37 = vector.broadcast %36 : vector<1x4xf32> to vector<256x4xf32>
    %38 = arith.mulf %28, %37 : vector<256x4xf32>
    %cst_10 = arith.constant 0.000000e+00 : f32
    %39 = vector.broadcast %cst_10 : f32 to vector<256x4xf32>
    %40 = arith.cmpf oge, %38, %39 : vector<256x4xf32>
    %cst_11 = arith.constant 2.000000e-01 : f32
    %41 = vector.broadcast %cst_11 : f32 to vector<256x4xf32>
    %42 = arith.mulf %41, %38 : vector<256x4xf32>
    %43 = arith.select %40, %38, %42 : vector<256x4xi1>, vector<256x4xf32>
    %c0_12 = arith.constant 0 : index
    %c0_13 = arith.constant 0 : index
    %c0_14 = arith.constant 0 : index
    %44 = vector.load %arg3[%c0_12, %c0_13, %c0_14] : memref<1x256x4xf32, #tpu.memory_space<vmem>>, vector<1x256x4xf32>
    %45 = vector.shape_cast %44 : vector<1x256x4xf32> to vector<256x4xf32>
    %46 = vector.shape_cast %43 : vector<256x4xf32> to vector<1x256x4xf32>
    tpu.vector_store %arg3[%c0_12, %c0_13, %c0_14], %46 {strides = array<i32>} : memref<1x256x4xf32, #tpu.memory_space<vmem>>, vector<1x256x4xf32>,
    return
  }
  func.func @transform_0(%arg0: i32) -> (i32, i32, i32, i32) {
    %c0_i32 = arith.constant 0 : i32
    %c0_i32_0 = arith.constant 0 : i32
    %c0_i32_1 = arith.constant 0 : i32
    %c0_i32_2 = arith.constant 0 : i32
    return %arg0, %c0_i32, %c0_i32_0, %c0_i32_1 : i32, i32, i32, i32
  }
  func.func @transform_1(%arg0: i32) -> (i32, i32) {
    %c0_i32 = arith.constant 0 : i32
    %c0_i32_0 = arith.constant 0 : i32
    %c0_i32_1 = arith.constant 0 : i32
    return %c0_i32, %c0_i32_0 : i32, i32
  }
  func.func @transform_2(%arg0: i32) -> (i32, i32, i32) {
    %c0_i32 = arith.constant 0 : i32
    %c0_i32_0 = arith.constant 0 : i32
    %c0_i32_1 = arith.constant 0 : i32
    return %arg0, %c0_i32, %c0_i32_0 : i32, i32, i32
  }
}

</mosaic_0001>

<llo_original>
// kernel: unet_up_forward.3
$region0: #{unet_up_forward.3}
  #allocation0 [shape = 'u32[]', space=smem, size = 0x4, offset = 0x4, fixed_abs, tag = 'smem constant byte address 0x4 - core index']
  #allocation1 [shape = 'u32[144,128]{1,0:T(1,128)}', space=vmem, size = 0x12000, scoped, tag = 'internal scratch']
  %s0 = inlined_call_operand.vmem [shape: bf16[2,64,8], index: 0, kind: input, shape index: {}]
  %s1 = inlined_call_operand.vmem [shape: bf16[8,16], index: 1, kind: input, shape index: {}]
  %s2 = inlined_call_operand.vmem [shape: bf16[2,64,16], index: 2, kind: output, shape index: {}]
  %s3 = sld [smem:[#allocation0]]
  $region41: #{unet_up_forward.3} parent=0
    _
  %s5 = ssub.s32 1, %s3
  %s6 = scalar_select 0, %s5, %s3
  loop: start=0, step=1, limit=4
  $region2: #{unet_up_forward.3} parent=0 // loop_pre_header
    _
  $region3: #{unet_up_forward.3} parent=0 // loop_header
    %s8 = sphi 0, %s12
    %p9 = scmp.ge.s32.totalorder %s8, 4
    %s18 = sphi 0, %s20
    %s21 = sphi 0, %s18
    %s22 = sphi 0, %s21
    %s38 = sphi 0, %s22
    %s42 = sphi 0, %s42
    %s44 = sphi 0, %s42
    %s45 = sphi 0, %s44
    %s59 = sphi 0, %s45
    %s65 = sphi 0, %s67
    %s68 = sphi 0, %s65
    %s69 = sphi 0, %s68
    %s85 = sphi 0, %s69
  $region4: #{unet_up_forward.3} parent=0 // loop_header_branch
    %11 = sbr.rel (%p9) target = $region8
  $region5: #{unet_up_forward.3} parent=0 // loop_body
    %s13 = ssub.s32 %s8, 1
    %s14 = ssub.s32 %s8, 2
    %s15 = sadd.s32 %s8, 1
    %s16 = ssub.s32 %s8, %s15
    %p17 = scmp.eq.s32.totalorder %s16, 0
    %s19 = sadd.s32 %s18, 1
    %s20 = scalar_select %p17, %s18, %s19
    %p23 = pneg %p17
    %p24 = scmp.eq.s32.totalorder %s8, 1
    %p25 = por %p23, %p24
    %p26 = scmp.ne.s32.totalorder %s18, %s21
    %p27 = scmp.eq.s32.totalorder %s8, 0
    %p28 = por %p26, %p27
    %p29 = scmp.ne.s32.totalorder %s18, %s21
    %p30 = scmp.eq.s32.totalorder %s13, 1
    %p31 = por %p29, %p30
    %p32 = scmp.ne.s32.totalorder %s21, %s22
    %p33 = scmp.eq.s32.totalorder %s13, 0
    %p34 = por %p32, %p33
    %p35 = scmp.ne.s32.totalorder %s21, %s22
    %p36 = scmp.eq.s32.totalorder %s14, 1
    %p37 = por %p35, %p36
    %p39 = scmp.ne.s32.totalorder %s22, %s38
    %p40 = scmp.eq.s32.totalorder %s14, 0
    %p41 = por %p39, %p40
    %s43 = sadd.s32 %s42, 1
    %p46 = scmp.eq.s32.totalorder %s8, 1
    %p47 = scmp.ne.s32.totalorder %s42, %s44
    %p48 = scmp.eq.s32.totalorder %s8, 0
    %p49 = por %p47, %p48
    %p50 = scmp.ne.s32.totalorder %s42, %s44
    %p51 = scmp.eq.s32.totalorder %s13, 1
    %p52 = por %p50, %p51
    %p53 = scmp.ne.s32.totalorder %s44, %s45
    %p54 = scmp.eq.s32.totalorder %s13, 0
    %p55 = por %p53, %p54
    %p56 = scmp.ne.s32.totalorder %s44, %s45
    %p57 = scmp.eq.s32.totalorder %s14, 1
    %p58 = por %p56, %p57
    %p60 = scmp.ne.s32.totalorder %s45, %s59
    %p61 = scmp.eq.s32.totalorder %s14, 0
    %p62 = por %p60, %p61
    %s63 = ssub.s32 %s8, %s15
    %p64 = scmp.eq.s32.totalorder %s63, 0
    %s66 = sadd.s32 %s65, 1
    %s67 = scalar_select %p64, %s65, %s66
    %p70 = pneg %p64
    %p71 = scmp.eq.s32.totalorder %s8, 1
    %p72 = por %p70, %p71
    %p73 = scmp.ne.s32.totalorder %s65, %s68
    %p74 = scmp.eq.s32.totalorder %s8, 0
    %p75 = por %p73, %p74
    %p76 = scmp.ne.s32.totalorder %s65, %s68
    %p77 = scmp.eq.s32.totalorder %s13, 1
    %p78 = por %p76, %p77
    %p79 = scmp.ne.s32.totalorder %s68, %s69
    %p80 = scmp.eq.s32.totalorder %s13, 0
    %p81 = por %p79, %p80
    %p82 = scmp.ne.s32.totalorder %s68, %s69
    %p83 = scmp.eq.s32.totalorder %s14, 1
    %p84 = por %p82, %p83
    %p86 = scmp.ne.s32.totalorder %s69, %s85
    %p87 = scmp.eq.s32.totalorder %s14, 0
    %p88 = por %p86, %p87
    %p89 = scmp.le.s32.totalorder 1, %s8
    %p90 = scmp.lt.s32.totalorder %s8, 3
    %p91 = pnand %p89, %p90
    %p92 = pneg %p91
    // Predicated region
    $region9: #{unet_up_forward.3} parent=5 // pred_check
      _
    $region10: #{unet_up_forward.3} parent=5 // pred_check_branch
      %94 = sbr.rel (%p91) target = $region12
    $region11: #{unet_up_forward.3} parent=5 // pred_region
      %s95 = ssub.s32 %s8, 1
      // Predicated region
      $region13: #{unet_up_forward.3} parent=11 // pred_check
        %p96 = pneg %p55
      $region14: #{unet_up_forward.3} parent=11 // pred_check_branch
        %98 = sbr.rel (%p96) target = $region16
      $region15: #{unet_up_forward.3} parent=11 // pred_region
        _
      $region16: #{unet_up_forward.3} parent=11 // pred_fallthru
        _
    $region12: #{unet_up_forward.3} parent=5 // pred_fallthru
      _
    %p99 = scmp.lt.s32.totalorder %s8, 2
    // Predicated region
    $region17: #{unet_up_forward.3} parent=5 // pred_check
      %p100 = pneg %p99
    $region18: #{unet_up_forward.3} parent=5 // pred_check_branch
      %102 = sbr.rel (%p100) target = $region20
    $region19: #{unet_up_forward.3} parent=5 // pred_region
      // Predicated region
      $region21: #{unet_up_forward.3} parent=19 // pred_check
        %p103 = pneg %p28
      $region22: #{unet_up_forward.3} parent=19 // pred_check_branch
        %105 = sbr.rel (%p103) target = $region24
      $region23: #{unet_up_forward.3} parent=19 // pred_region
        %p106 = scmp.lt.s32.totalorder %s8, 1
        %s107 = scalar_select %p106, %s8, 1
        %s108 = smul.addr %s107, 8
        %s109 = smul.addr %s108, 4
        %s110 = scalar_lea.vmem %s0, %s109
      $region24: #{unet_up_forward.3} parent=19 // pred_fallthru
        _
    $region20: #{unet_up_forward.3} parent=5 // pred_fallthru
      _
    %p111 = scmp.le.s32.totalorder 1, %s8
    %p112 = scmp.lt.s32.totalorder %s8, 3
    %p113 = pnand %p111, %p112
    %p114 = pneg %p113
    // Predicated region
    $region25: #{unet_up_forward.3} parent=5 // pred_check
      _
    $region26: #{unet_up_forward.3} parent=5 // pred_check_branch
      %116 = sbr.rel (%p113) target = $region28
    $region27: #{unet_up_forward.3} parent=5 // pred_region
      %s117 = ssub.s32 %s8, 1
      %p118 = scmp.lt.s32.totalorder %s13, 1
      %s119 = scalar_select %p118, %s13, 1
      %s120 = smul.addr %s119, 8
      %s121 = smul.addr %s120, 4
      %s122 = scalar_lea.vmem %s0, %s121
      %p123 = pneg %p34
      %p124 = pneg %p31
      %p125 = pneg %p55
      %p126 = pneg %p52
      %p127 = pneg %p81
      %p128 = pneg %p78
      %p129 = scmp.lt.s32.totalorder %s13, 1
      %s130 = scalar_select %p129, %s13, 1
      %s131 = smul.addr %s130, 8
      %s132 = smul.addr %s131, 4
      %s133 = scalar_lea.vmem %s2, %s132
      %p134 = scmp.lt.s32.totalorder %s13, 1
      %s135 = scalar_select %p134, %s13, 1
      %s136 = smul.addr %s135, 8
      %s137 = smul.addr %s136, 4
      %s138 = scalar_lea.vmem %s0, %s137
      %p139 = scmp.lt.s32.totalorder %s13, 1
      %s140 = scalar_select %p139, %s13, 1
      %s141 = smul.addr %s140, 8
      %s142 = smul.addr %s141, 4
      %s143 = scalar_lea.vmem %s2, %s142
      %v145 = vld [vmem:[%s138] sm:$0xf]
      %v146 = vld [vmem:[%s138 + $0x4] sm:$0xf]
      %v147 = vld [vmem:[%s138 + $0x8] sm:$0xf]
      %v148 = vld [vmem:[%s138 + $0xc] sm:$0xf]
      %v149 = vld [vmem:[%s138 + $0x10] sm:$0xf]
      %v150 = vld [vmem:[%s138 + $0x14] sm:$0xf]
      %v151 = vld [vmem:[%s138 + $0x18] sm:$0xf]
      %v152 = vld [vmem:[%s138 + $0x1c] sm:$0xf]
      %v153 = vld [vmem:[%s1] sm:$0xf]
      %v162 = vunpack.c.l.b16 %v145
      %v163 = vunpack.c.l.b16 %v146
      %v164 = vunpack.c.l.b16 %v147
      %v165 = vunpack.c.l.b16 %v148
      %v166 = vunpack.c.l.b16 %v149
      %v167 = vunpack.c.l.b16 %v150
      %v168 = vunpack.c.l.b16 %v151
      %v169 = vunpack.c.l.b16 %v152
      %v170 = vpack.c.b16 %v163, %v162
      %v171 = vpack.c.b16 %v165, %v164
      %v172 = vpack.c.b16 %v167, %v166
      %v173 = vpack.c.b16 %v169, %v168
      %vm174 = vcmask 64512
      %v176 = vsel %vm174, %v170, 0
      %v179 = vsel %vm174, %v171, 0
      %v182 = vsel %vm174, %v172, 0
      %v185 = vsel %vm174, %v173, 0
      %vm187 = vcmask 1043456
      %v189 = vsel %vm187, %v153, 0
      %191 = vmatprep.subr.bf16.mxu0 0
      %192 = vmatpush1.bf16.msra.mxu0 %v189
      %193 = vmatprep.subr.bf16.mxu0 0
      %194 = vmatpush1.bf16.msra.mxu0 0
      %195 = vmatprep.subr.bf16.mxu0 0
      %196 = vmatpush1.bf16.msra.mxu0 0
      %197 = vmatprep.subr.bf16.mxu0 0
      %198 = vmatpush1.bf16.msra.mxu0 0
      %199 = vmatprep.subr.bf16.mxu0 0
      %200 = vmatpush1.bf16.msra.mxu0 0
      %201 = vmatprep.subr.bf16.mxu0 0
      %202 = vmatpush1.bf16.msra.mxu0 0
      %203 = vmatprep.subr.bf16.mxu0 0
      %204 = vmatpush1.bf16.msra.mxu0 0
      %205 = vmatprep.subr.bf16.mxu0 0
      %206 = vmatpush1.bf16.msra.mxu0 0
      %207 = vmatprep.subr.bf16.mxu0 0
      %208 = vmatpush1.bf16.msra.mxu0 0
      %209 = vmatprep.subr.bf16.mxu0 0
      %210 = vmatpush1.bf16.msra.mxu0 0
      %211 = vmatprep.subr.bf16.mxu0 0
      %212 = vmatpush1.bf16.msra.mxu0 0
      %213 = vmatprep.subr.bf16.mxu0 0
      %214 = vmatpush1.bf16.msra.mxu0 0
      %215 = vmatprep.subr.bf16.mxu0 0
      %216 = vmatpush1.bf16.msra.mxu0 0
      %217 = vmatprep.subr.bf16.mxu0 0
      %218 = vmatpush1.bf16.msra.mxu0 0
      %219 = vmatprep.subr.bf16.mxu0 0
      %220 = vmatpush1.bf16.msra.mxu0 0
      %221 = vmatprep.subr.bf16.mxu0 0
      %222 = vmatpush1.bf16.msra.mxu0 0
      %223 = vmatprep.mubr.bf16.mxu0 0
      %224 = vmatmul.mubr.bf16.gmra.mrb[0].mxu0 %v176
      %v225 = vpop.f32.mrb[0].mxu0
      %v226 = vadd.f32 0.0, %v225
      %v227 = vpop.f32.mrb[0].mxu0
      %v228 = vpop.f32.mrb[0].mxu0
      %v229 = vadd.f32 0.0, %v228
      %v230 = vpop.f32.mrb[0].mxu0
      %231 = vmatprep.mubr.bf16.mxu0 0
      %232 = vmatmul.mubr.bf16.gmra.mrb[0].mxu0 %v179
      %v233 = vpop.f32.mrb[0].mxu0
      %v234 = vadd.f32 0.0, %v233
      %v235 = vpop.f32.mrb[0].mxu0
      %v236 = vpop.f32.mrb[0].mxu0
      %v237 = vadd.f32 0.0, %v236
      %v238 = vpop.f32.mrb[0].mxu0
      %239 = vmatprep.mubr.bf16.mxu0 0
      %240 = vmatmul.mubr.bf16.gmra.mrb[0].mxu0 %v182
      %v241 = vpop.f32.mrb[0].mxu0
      %v242 = vadd.f32 0.0, %v241
      %v243 = vpop.f32.mrb[0].mxu0
      %v244 = vpop.f32.mrb[0].mxu0
      %v245 = vadd.f32 0.0, %v244
      %v246 = vpop.f32.mrb[0].mxu0
      %247 = vmatprep.mubr.bf16.mxu0 0
      %248 = vmatmul.mubr.bf16.gmra.mrb[0].mxu0 %v185
      %v249 = vpop.f32.mrb[0].mxu0
      %v250 = vadd.f32 0.0, %v249
      %v251 = vpop.f32.mrb[0].mxu0
      %v252 = vpop.f32.mrb[0].mxu0
      %v253 = vadd.f32 0.0, %v252
      %v254 = vpop.f32.mrb[0].mxu0
      %255 = vdwg.mxu0
      %vm256 = vcmask 130048
      %v257 = vsel %vm256, %v226, 0.0
      %v258 = vsel %vm256, %v229, 0.0
      %v259 = vadd.f32 %v257, %v258
      %v260 = vsel %vm256, %v234, 0.0
      %v261 = vadd.f32 %v259, %v260
      %v262 = vsel %vm256, %v237, 0.0
      %v263 = vadd.f32 %v261, %v262
      %v264 = vsel %vm256, %v242, 0.0
      %v265 = vadd.f32 %v263, %v264
      %v266 = vsel %vm256, %v245, 0.0
      %v267 = vadd.f32 %v265, %v266
      %v268 = vsel %vm256, %v250, 0.0
      %v269 = vadd.f32 %v267, %v268
      %v270 = vsel %vm256, %v253, 0.0
      %v271 = vadd.f32 %v269, %v270
      %v272 = vrot.slane %v271, 4
      %v273 = vadd.f32 %v271, %v272
      %v274 = vrot.slane %v273, 2
      %v275 = vadd.f32 %v273, %v274
      %v276 = vrot.slane %v275, 1
      %v277 = vadd.f32 %v275, %v276
      %279 = vrot.lane.b32.xlu0 %v277, 124
      %v280 = vpop.permute.xlu0 %279
      %v282 = vadd.f32 %v277, %v280
      %283 = vrot.lane.b32.xlu0 %v277, 120
      %v284 = vpop.permute.xlu0 %283
      %v286 = vadd.f32 %v282, %v284
      %287 = vrot.lane.b32.xlu0 %v277, 116
      %v288 = vpop.permute.xlu0 %287
      %v290 = vadd.f32 %v286, %v288
      %v291 = vrcp.pop 256.0
      %v292 = vmul.f32 %v290, %v291
      %294 = vrot.lane.b32.xlu0 %v292, 4
      %v295 = vpop.permute.xlu0 %294
      %297 = vrot.lane.b32.xlu0 %v292, 8
      %v298 = vpop.permute.xlu0 %297
      %300 = vrot.lane.b32.xlu0 %v292, 12
      %v301 = vpop.permute.xlu0 %300
      %vm303 = vcmask 31744
      %v304 = vsel %vm303, %v292, %v295
      %v305 = vsel %vm174, %v304, %v298
      %vm306 = vcmask 97280
      %v307 = vsel %vm306, %v305, %v301
      %v308 = vlaneseq
      %v309 = vshrl.u32 %v308, 7
      %v310 = vsub.s32 0, %v309
      %v311 = vrot.slane %v307, %v310
      %v312 = vsub.f32 %v226, %v311
      %v313 = vsub.f32 %v229, %v311
      %v314 = vsub.f32 %v234, %v311
      %v315 = vsub.f32 %v237, %v311
      %v316 = vsub.f32 %v242, %v311
      %v317 = vsub.f32 %v245, %v311
      %v318 = vsub.f32 %v250, %v311
      %v319 = vsub.f32 %v253, %v311
      %v320 = vmul.f32 %v312, %v312
      %v321 = vmul.f32 %v313, %v313
      %v322 = vmul.f32 %v314, %v314
      %v323 = vmul.f32 %v315, %v315
      %v324 = vmul.f32 %v316, %v316
      %v325 = vmul.f32 %v317, %v317
      %v326 = vmul.f32 %v318, %v318
      %v327 = vmul.f32 %v319, %v319
      %v328 = vsel %vm256, %v320, 0.0
      %v329 = vsel %vm256, %v321, 0.0
      %v330 = vadd.f32 %v328, %v329
      %v331 = vsel %vm256, %v322, 0.0
      %v332 = vadd.f32 %v330, %v331
      %v333 = vsel %vm256, %v323, 0.0
      %v334 = vadd.f32 %v332, %v333
      %v335 = vsel %vm256, %v324, 0.0
      %v336 = vadd.f32 %v334, %v335
      %v337 = vsel %vm256, %v325, 0.0
      %v338 = vadd.f32 %v336, %v337
      %v339 = vsel %vm256, %v326, 0.0
      %v340 = vadd.f32 %v338, %v339
      %v341 = vsel %vm256, %v327, 0.0
      %v342 = vadd.f32 %v340, %v341
      %v343 = vrot.slane %v342, 4
      %v344 = vadd.f32 %v342, %v343
      %v345 = vrot.slane %v344, 2
      %v346 = vadd.f32 %v344, %v345
      %v347 = vrot.slane %v346, 1
      %v348 = vadd.f32 %v346, %v347
      %350 = vrot.lane.b32.xlu0 %v348, 124
      %v351 = vpop.permute.xlu0 %350
      %v353 = vadd.f32 %v348, %v351
      %354 = vrot.lane.b32.xlu0 %v348, 120
      %v355 = vpop.permute.xlu0 %354
      %v357 = vadd.f32 %v353, %v355
      %358 = vrot.lane.b32.xlu0 %v348, 116
      %v359 = vpop.permute.xlu0 %358
      %v361 = vadd.f32 %v357, %v359
      %v362 = vmul.f32 %v361, %v291
      %v363 = vadd.f32 %v362, 1e-05
      %v364 = vrsqrt.pop %v363
      %366 = vrot.lane.b32.xlu0 %v364, 4
      %v367 = vpop.permute.xlu0 %366
      %369 = vrot.lane.b32.xlu0 %v364, 8
      %v370 = vpop.permute.xlu0 %369
      %372 = vrot.lane.b32.xlu0 %v364, 12
      %v373 = vpop.permute.xlu0 %372
      %v375 = vsel %vm303, %v364, %v367
      %v376 = vsel %vm174, %v375, %v370
      %v377 = vsel %vm306, %v376, %v373
      %v378 = vlaneseq
      %v379 = vshrl.u32 %v378, 7
      %v380 = vsub.s32 0, %v379
      %v381 = vrot.slane %v377, %v380
      %v382 = vmul.f32 %v312, %v381
      %v383 = vmul.f32 %v313, %v381
      %v384 = vmul.f32 %v314, %v381
      %v385 = vmul.f32 %v315, %v381
      %v386 = vmul.f32 %v316, %v381
      %v387 = vmul.f32 %v317, %v381
      %v388 = vmul.f32 %v318, %v381
      %v389 = vmul.f32 %v319, %v381
      %vm390 = vcmp.ge.f32.partialorder %v382, 0.0
      %vm391 = vcmp.ge.f32.partialorder %v383, 0.0
      %vm392 = vcmp.ge.f32.partialorder %v384, 0.0
      %vm393 = vcmp.ge.f32.partialorder %v385, 0.0
      %vm394 = vcmp.ge.f32.partialorder %v386, 0.0
      %vm395 = vcmp.ge.f32.partialorder %v387, 0.0
      %vm396 = vcmp.ge.f32.partialorder %v388, 0.0
      %vm397 = vcmp.ge.f32.partialorder %v389, 0.0
      %v398 = vmul.f32 %v382, 0.2
      %v399 = vmul.f32 %v383, 0.2
      %v400 = vmul.f32 %v384, 0.2
      %v401 = vmul.f32 %v385, 0.2
      %v402 = vmul.f32 %v386, 0.2
      %v403 = vmul.f32 %v387, 0.2
      %v404 = vmul.f32 %v388, 0.2
      %v405 = vmul.f32 %v389, 0.2
      %v406 = vsel %vm390, %v382, %v398
      %v407 = vsel %vm391, %v383, %v399
      %v408 = vsel %vm392, %v384, %v400
      %v409 = vsel %vm393, %v385, %v401
      %v410 = vsel %vm394, %v386, %v402
      %v411 = vsel %vm395, %v387, %v403
      %v412 = vsel %vm396, %v388, %v404
      %v413 = vsel %vm397, %v389, %v405
      %v414 = vpack.c.bf16 %v407, %v406
      %v415 = vpack.c.bf16 %v409, %v408
      %v416 = vpack.c.bf16 %v411, %v410
      %v417 = vpack.c.bf16 %v413, %v412
      %v422 = vunpack.c.l.b16 %v414
      %v423 = vunpack.c.h.b16 %v414
      %v424 = vunpack.c.l.b16 %v415
      %v425 = vunpack.c.h.b16 %v415
      %v426 = vunpack.c.l.b16 %v416
      %v427 = vunpack.c.h.b16 %v416
      %v428 = vunpack.c.l.b16 %v417
      %v429 = vunpack.c.h.b16 %v417
      %v430 = vpack.c.b16 %v422, %v422
      %v431 = vpack.c.b16 %v423, %v423
      %v432 = vpack.c.b16 %v424, %v424
      %v433 = vpack.c.b16 %v425, %v425
      %v434 = vpack.c.b16 %v426, %v426
      %v435 = vpack.c.b16 %v427, %v427
      %v436 = vpack.c.b16 %v428, %v428
      %v437 = vpack.c.b16 %v429, %v429
      %vm446 = vcmask 125952
      %447 = vst.msk [vmem:[%s143] sm:$0xf] %vm446, %v430
      %448 = vst.msk [vmem:[%s143 + $0x4] sm:$0xf] %vm446, %v431
      %449 = vst.msk [vmem:[%s143 + $0x8] sm:$0xf] %vm446, %v432
      %450 = vst.msk [vmem:[%s143 + $0xc] sm:$0xf] %vm446, %v433
      %451 = vst.msk [vmem:[%s143 + $0x10] sm:$0xf] %vm446, %v434
      %452 = vst.msk [vmem:[%s143 + $0x14] sm:$0xf] %vm446, %v435
      %453 = vst.msk [vmem:[%s143 + $0x18] sm:$0xf] %vm446, %v436
      %454 = vst.msk [vmem:[%s143 + $0x1c] sm:$0xf] %vm446, %v437
      %p455 = scmp.lt.s32.totalorder %s13, 1
      %s456 = scalar_select %p455, %s13, 1
      %s457 = smul.addr %s456, 8
      %s458 = smul.addr %s457, 4
      %s459 = scalar_lea.vmem %s2, %s458
      // Predicated region
      $region29: #{unet_up_forward.3} parent=27 // pred_check
        %p460 = pneg %p78
      $region30: #{unet_up_forward.3} parent=27 // pred_check_branch
        %462 = sbr.rel (%p460) target = $region32
      $region31: #{unet_up_forward.3} parent=27 // pred_region
        _
      $region32: #{unet_up_forward.3} parent=27 // pred_fallthru
        _
    $region28: #{unet_up_forward.3} parent=5 // pred_fallthru
      _
    %p463 = scmp.le.s32.totalorder 2, %s8
    // Predicated region
    $region33: #{unet_up_forward.3} parent=5 // pred_check
      %p464 = pneg %p463
    $region34: #{unet_up_forward.3} parent=5 // pred_check_branch
      %466 = sbr.rel (%p464) target = $region36
    $region35: #{unet_up_forward.3} parent=5 // pred_region
      %s467 = ssub.s32 %s8, 2
      // Predicated region
      $region37: #{unet_up_forward.3} parent=35 // pred_check
        %p468 = pneg %p84
      $region38: #{unet_up_forward.3} parent=35 // pred_check_branch
        %470 = sbr.rel (%p468) target = $region40
      $region39: #{unet_up_forward.3} parent=35 // pred_region
        %p471 = scmp.lt.s32.totalorder %s14, 1
        %s472 = scalar_select %p471, %s14, 1
        %s473 = smul.addr %s472, 8
        %s474 = smul.addr %s473, 4
        %s475 = scalar_lea.vmem %s2, %s474
      $region40: #{unet_up_forward.3} parent=35 // pred_fallthru
        _
    $region36: #{unet_up_forward.3} parent=5 // pred_fallthru
      _
  $region6: #{unet_up_forward.3} parent=0 // loop_footer
    %s12 = sadd.s32 1, %s8
  $region7: #{unet_up_forward.3} parent=0 // loop_footer_branch
    %7 = sbr.rel target = $region3
  $region8: #{unet_up_forward.3} parent=0 // loop_exit
    _

// kernel: unet_up_forward.5
$region0: #{unet_up_forward.5}
  #allocation0 [shape = 'u32[]', space=smem, size = 0x4, offset = 0x4, fixed_abs, tag = 'smem constant byte address 0x4 - core index']
  #allocation1 [shape = 'u32[144,128]{1,0:T(1,128)}', space=vmem, size = 0x12000, scoped, tag = 'internal scratch']
  %s0 = inlined_call_operand.vmem [shape: bf16[2,18,18,4], index: 0, kind: input, shape index: {}]
  %s1 = inlined_call_operand.vmem [shape: bf16[36,4], index: 1, kind: input, shape index: {}]
  %s2 = inlined_call_operand.vmem [shape: f32[2,256,4], index: 2, kind: output, shape index: {}]
  %s3 = sld [smem:[#allocation0]]
  $region41: #{unet_up_forward.5} parent=0
    _
  %s5 = ssub.s32 1, %s3
  %s6 = scalar_select 0, %s5, %s3
  loop: start=0, step=1, limit=4
  $region2: #{unet_up_forward.5} parent=0 // loop_pre_header
    _
  $region3: #{unet_up_forward.5} parent=0 // loop_header
    %s8 = sphi 0, %s12
    %p9 = scmp.ge.s32.totalorder %s8, 4
    %s18 = sphi 0, %s20
    %s21 = sphi 0, %s18
    %s22 = sphi 0, %s21
    %s38 = sphi 0, %s22
    %s42 = sphi 0, %s42
    %s44 = sphi 0, %s42
    %s45 = sphi 0, %s44
    %s59 = sphi 0, %s45
    %s65 = sphi 0, %s67
    %s68 = sphi 0, %s65
    %s69 = sphi 0, %s68
    %s85 = sphi 0, %s69
  $region4: #{unet_up_forward.5} parent=0 // loop_header_branch
    %11 = sbr.rel (%p9) target = $region8
  $region5: #{unet_up_forward.5} parent=0 // loop_body
    %s13 = ssub.s32 %s8, 1
    %s14 = ssub.s32 %s8, 2
    %s15 = sadd.s32 %s8, 1
    %s16 = ssub.s32 %s8, %s15
    %p17 = scmp.eq.s32.totalorder %s16, 0
    %s19 = sadd.s32 %s18, 1
    %s20 = scalar_select %p17, %s18, %s19
    %p23 = pneg %p17
    %p24 = scmp.eq.s32.totalorder %s8, 1
    %p25 = por %p23, %p24
    %p26 = scmp.ne.s32.totalorder %s18, %s21
    %p27 = scmp.eq.s32.totalorder %s8, 0
    %p28 = por %p26, %p27
    %p29 = scmp.ne.s32.totalorder %s18, %s21
    %p30 = scmp.eq.s32.totalorder %s13, 1
    %p31 = por %p29, %p30
    %p32 = scmp.ne.s32.totalorder %s21, %s22
    %p33 = scmp.eq.s32.totalorder %s13, 0
    %p34 = por %p32, %p33
    %p35 = scmp.ne.s32.totalorder %s21, %s22
    %p36 = scmp.eq.s32.totalorder %s14, 1
    %p37 = por %p35, %p36
    %p39 = scmp.ne.s32.totalorder %s22, %s38
    %p40 = scmp.eq.s32.totalorder %s14, 0
    %p41 = por %p39, %p40
    %s43 = sadd.s32 %s42, 1
    %p46 = scmp.eq.s32.totalorder %s8, 1
    %p47 = scmp.ne.s32.totalorder %s42, %s44
    %p48 = scmp.eq.s32.totalorder %s8, 0
    %p49 = por %p47, %p48
    %p50 = scmp.ne.s32.totalorder %s42, %s44
    %p51 = scmp.eq.s32.totalorder %s13, 1
    %p52 = por %p50, %p51
    %p53 = scmp.ne.s32.totalorder %s44, %s45
    %p54 = scmp.eq.s32.totalorder %s13, 0
    %p55 = por %p53, %p54
    %p56 = scmp.ne.s32.totalorder %s44, %s45
    %p57 = scmp.eq.s32.totalorder %s14, 1
    %p58 = por %p56, %p57
    %p60 = scmp.ne.s32.totalorder %s45, %s59
    %p61 = scmp.eq.s32.totalorder %s14, 0
    %p62 = por %p60, %p61
    %s63 = ssub.s32 %s8, %s15
    %p64 = scmp.eq.s32.totalorder %s63, 0
    %s66 = sadd.s32 %s65, 1
    %s67 = scalar_select %p64, %s65, %s66
    %p70 = pneg %p64
    %p71 = scmp.eq.s32.totalorder %s8, 1
    %p72 = por %p70, %p71
    %p73 = scmp.ne.s32.totalorder %s65, %s68
    %p74 = scmp.eq.s32.totalorder %s8, 0
    %p75 = por %p73, %p74
    %p76 = scmp.ne.s32.totalorder %s65, %s68
    %p77 = scmp.eq.s32.totalorder %s13, 1
    %p78 = por %p76, %p77
    %p79 = scmp.ne.s32.totalorder %s68, %s69
    %p80 = scmp.eq.s32.totalorder %s13, 0
    %p81 = por %p79, %p80
    %p82 = scmp.ne.s32.totalorder %s68, %s69
    %p83 = scmp.eq.s32.totalorder %s14, 1
    %p84 = por %p82, %p83
    %p86 = scmp.ne.s32.totalorder %s69, %s85
    %p87 = scmp.eq.s32.totalorder %s14, 0
    %p88 = por %p86, %p87
    %p89 = scmp.le.s32.totalorder 1, %s8
    %p90 = scmp.lt.s32.totalorder %s8, 3
    %p91 = pnand %p89, %p90
    %p92 = pneg %p91
    // Predicated region
    $region9: #{unet_up_forward.5} parent=5 // pred_check
      _
    $region10: #{unet_up_forward.5} parent=5 // pred_check_branch
      %94 = sbr.rel (%p91) target = $region12
    $region11: #{unet_up_forward.5} parent=5 // pred_region
      %s95 = ssub.s32 %s8, 1
      // Predicated region
      $region13: #{unet_up_forward.5} parent=11 // pred_check
        %p96 = pneg %p55
      $region14: #{unet_up_forward.5} parent=11 // pred_check_branch
        %98 = sbr.rel (%p96) target = $region16
      $region15: #{unet_up_forward.5} parent=11 // pred_region
        _
      $region16: #{unet_up_forward.5} parent=11 // pred_fallthru
        _
    $region12: #{unet_up_forward.5} parent=5 // pred_fallthru
      _
    %p99 = scmp.lt.s32.totalorder %s8, 2
    // Predicated region
    $region17: #{unet_up_forward.5} parent=5 // pred_check
      %p100 = pneg %p99
    $region18: #{unet_up_forward.5} parent=5 // pred_check_branch
      %102 = sbr.rel (%p100) target = $region20
    $region19: #{unet_up_forward.5} parent=5 // pred_region
      // Predicated region
      $region21: #{unet_up_forward.5} parent=19 // pred_check
        %p103 = pneg %p28
      $region22: #{unet_up_forward.5} parent=19 // pred_check_branch
        %105 = sbr.rel (%p103) target = $region24
      $region23: #{unet_up_forward.5} parent=19 // pred_region
        %p106 = scmp.lt.s32.totalorder %s8, 1
        %s107 = scalar_select %p106, %s8, 1
        %s108 = smul.addr %s107, 54
        %s109 = smul.addr %s108, 4
        %s110 = scalar_lea.vmem %s0, %s109
      $region24: #{unet_up_forward.5} parent=19 // pred_fallthru
        _
    $region20: #{unet_up_forward.5} parent=5 // pred_fallthru
      _
    %p111 = scmp.le.s32.totalorder 1, %s8
    %p112 = scmp.lt.s32.totalorder %s8, 3
    %p113 = pnand %p111, %p112
    %p114 = pneg %p113
    // Predicated region
    $region25: #{unet_up_forward.5} parent=5 // pred_check
      _
    $region26: #{unet_up_forward.5} parent=5 // pred_check_branch
      %116 = sbr.rel (%p113) target = $region28
    $region27: #{unet_up_forward.5} parent=5 // pred_region
      %s117 = ssub.s32 %s8, 1
      %p118 = scmp.lt.s32.totalorder %s13, 1
      %s119 = scalar_select %p118, %s13, 1
      %s120 = smul.addr %s119, 54
      %s121 = smul.addr %s120, 4
      %s122 = scalar_lea.vmem %s0, %s121
      %p123 = pneg %p34
      %p124 = pneg %p31
      %p125 = pneg %p55
      %p126 = pneg %p52
      %p127 = pneg %p81
      %p128 = pneg %p78
      %p129 = scmp.lt.s32.totalorder %s13, 1
      %s130 = scalar_select %p129, %s13, 1
      %s131 = smul.addr %s130, 32
      %s132 = smul.addr %s131, 8
      %s133 = scalar_lea.vmem %s2, %s132
      %p134 = scmp.lt.s32.totalorder %s13, 1
      %s135 = scalar_select %p134, %s13, 1
      %s136 = smul.addr %s135, 54
      %s137 = smul.addr %s136, 4
      %s138 = scalar_lea.vmem %s0, %s137
      %p139 = scmp.lt.s32.totalorder %s13, 1
      %s140 = scalar_select %p139, %s13, 1
      %s141 = smul.addr %s140, 32
      %s142 = smul.addr %s141, 8
      %s143 = scalar_lea.vmem %s2, %s142
      %v145 = vld [vmem:[%s138] sm:$0xf]
      %v146 = vld [vmem:[%s138 + $0x4] sm:$0xf]
      %v147 = vld [vmem:[%s138 + $0x8] sm:$0x1]
      %v148 = vld [vmem:[%s138 + $0xc] sm:$0xf]
      %v149 = vld [vmem:[%s138 + $0x10] sm:$0xf]
      %v150 = vld [vmem:[%s138 + $0x14] sm:$0x1]
      %v151 = vld [vmem:[%s138 + $0x18] sm:$0xf]
      %v152 = vld [vmem:[%s138 + $0x1c] sm:$0xf]
      %v153 = vld [vmem:[%s138 + $0x20] sm:$0x1]
      %v154 = vld [vmem:[%s138 + $0x24] sm:$0xf]
      %v155 = vld [vmem:[%s138 + $0x28] sm:$0xf]
      %v156 = vld [vmem:[%s138 + $0x2c] sm:$0x1]
      %v157 = vld [vmem:[%s138 + $0x30] sm:$0xf]
      %v158 = vld [vmem:[%s138 + $0x34] sm:$0xf]
      %v159 = vld [vmem:[%s138 + $0x38] sm:$0x1]
      %v160 = vld [vmem:[%s138 + $0x3c] sm:$0xf]
      %v161 = vld [vmem:[%s138 + $0x40] sm:$0xf]
      %v162 = vld [vmem:[%s138 + $0x44] sm:$0x1]
      %v163 = vld [vmem:[%s138 + $0x48] sm:$0xf]
      %v164 = vld [vmem:[%s138 + $0x4c] sm:$0xf]
      %v165 = vld [vmem:[%s138 + $0x50] sm:$0x1]
      %v166 = vld [vmem:[%s138 + $0x54] sm:$0xf]
      %v167 = vld [vmem:[%s138 + $0x58] sm:$0xf]
      %v168 = vld [vmem:[%s138 + $0x5c] sm:$0x1]
      %v169 = vld [vmem:[%s138 + $0x60] sm:$0xf]
      %v170 = vld [vmem:[%s138 + $0x64] sm:$0xf]
      %v171 = vld [vmem:[%s138 + $0x68] sm:$0x1]
      %v172 = vld [vmem:[%s138 + $0x6c] sm:$0xf]
      %v173 = vld [vmem:[%s138 + $0x70] sm:$0xf]
      %v174 = vld [vmem:[%s138 + $0x74] sm:$0x1]
      %v175 = vld [vmem:[%s138 + $0x78] sm:$0xf]
      %v176 = vld [vmem:[%s138 + $0x7c] sm:$0xf]
      %v177 = vld [vmem:[%s138 + $0x80] sm:$0x1]
      %v178 = vld [vmem:[%s138 + $0x84] sm:$0xf]
      %v179 = vld [vmem:[%s138 + $0x88] sm:$0xf]
      %v180 = vld [vmem:[%s138 + $0x8c] sm:$0x1]
      %v181 = vld [vmem:[%s138 + $0x90] sm:$0xf]
      %v182 = vld [vmem:[%s138 + $0x94] sm:$0xf]
      %v183 = vld [vmem:[%s138 + $0x98] sm:$0x1]
      %v184 = vld [vmem:[%s138 + $0x9c] sm:$0xf]
      %v185 = vld [vmem:[%s138 + $0xa0] sm:$0xf]
      %v186 = vld [vmem:[%s138 + $0xa4] sm:$0x1]
      %v187 = vld [vmem:[%s138 + $0xa8] sm:$0xf]
      %v188 = vld [vmem:[%s138 + $0xac] sm:$0xf]
      %v189 = vld [vmem:[%s138 + $0xb0] sm:$0x1]
      %v190 = vld [vmem:[%s138 + $0xb4] sm:$0xf]
      %v191 = vld [vmem:[%s138 + $0xb8] sm:$0xf]
      %v192 = vld [vmem:[%s138 + $0xbc] sm:$0x1]
      %v193 = vld [vmem:[%s138 + $0xc0] sm:$0xf]
      %v194 = vld [vmem:[%s138 + $0xc4] sm:$0xf]
      %v195 = vld [vmem:[%s138 + $0xc8] sm:$0x1]
      %v196 = vld [vmem:[%s138 + $0xcc] sm:$0xf]
      %v197 = vld [vmem:[%s138 + $0xd0] sm:$0xf]
      %v198 = vld [vmem:[%s138 + $0xd4] sm:$0x1]
      %vm199 = vsmask.f32 3328
      %vm200 = vsmask.f32 7440
      %vm201 = vmor %vm199, %vm200
      %v203 = vshrl.u32 %v145, 16
      %v205 = vrot.slane %v203, 4
      %v206 = vshll.u32 %v145, 16
      %v208 = vrot.slane %v206, 5
      %v209 = vor.u32 %v205, %v208
      %v210 = vrot.slane %v209, 4
      %v212 = vshll.u32 %v146, 16
      %v214 = vrot.slane %v212, 5
      %v215 = vsel %vm201, %v210, %v214
      %v216 = vshrl.u32 %v146, 16
      %v218 = vrot.slane %v216, 4
      %v219 = vor.u32 %v218, %v214
      %v220 = vrot.slane %v219, 4
      %v222 = vshll.u32 %v147, 16
      %v224 = vrot.slane %v222, 5
      %v225 = vsel %vm201, %v220, %v224
      %v227 = vshrl.u32 %v148, 16
      %v229 = vrot.slane %v227, 4
      %v230 = vshll.u32 %v148, 16
      %v232 = vrot.slane %v230, 5
      %v233 = vor.u32 %v229, %v232
      %v234 = vrot.slane %v233, 4
      %v236 = vshll.u32 %v149, 16
      %v238 = vrot.slane %v236, 5
      %v239 = vsel %vm201, %v234, %v238
      %v240 = vshrl.u32 %v149, 16
      %v242 = vrot.slane %v240, 4
      %v243 = vor.u32 %v242, %v238
      %v244 = vrot.slane %v243, 4
      %v246 = vshll.u32 %v150, 16
      %v248 = vrot.slane %v246, 5
      %v249 = vsel %vm201, %v244, %v248
      %v251 = vshrl.u32 %v151, 16
      %v253 = vrot.slane %v251, 4
      %v254 = vshll.u32 %v151, 16
      %v256 = vrot.slane %v254, 5
      %v257 = vor.u32 %v253, %v256
      %v258 = vrot.slane %v257, 4
      %v260 = vshll.u32 %v152, 16
      %v262 = vrot.slane %v260, 5
      %v263 = vsel %vm201, %v258, %v262
      %v264 = vshrl.u32 %v152, 16
      %v266 = vrot.slane %v264, 4
      %v267 = vor.u32 %v266, %v262
      %v268 = vrot.slane %v267, 4
      %v270 = vshll.u32 %v153, 16
      %v272 = vrot.slane %v270, 5
      %v273 = vsel %vm201, %v268, %v272
      %v275 = vshrl.u32 %v154, 16
      %v277 = vrot.slane %v275, 4
      %v278 = vshll.u32 %v154, 16
      %v280 = vrot.slane %v278, 5
      %v281 = vor.u32 %v277, %v280
      %v282 = vrot.slane %v281, 4
      %v284 = vshll.u32 %v155, 16
      %v286 = vrot.slane %v284, 5
      %v287 = vsel %vm201, %v282, %v286
      %v288 = vshrl.u32 %v155, 16
      %v290 = vrot.slane %v288, 4
      %v291 = vor.u32 %v290, %v286
      %v292 = vrot.slane %v291, 4
      %v294 = vshll.u32 %v156, 16
      %v296 = vrot.slane %v294, 5
      %v297 = vsel %vm201, %v292, %v296
      %v299 = vshrl.u32 %v157, 16
      %v301 = vrot.slane %v299, 4
      %v302 = vshll.u32 %v157, 16
      %v304 = vrot.slane %v302, 5
      %v305 = vor.u32 %v301, %v304
      %v306 = vrot.slane %v305, 4
      %v308 = vshll.u32 %v158, 16
      %v310 = vrot.slane %v308, 5
      %v311 = vsel %vm201, %v306, %v310
      %v312 = vshrl.u32 %v158, 16
      %v314 = vrot.slane %v312, 4
      %v315 = vor.u32 %v314, %v310
      %v316 = vrot.slane %v315, 4
      %v318 = vshll.u32 %v159, 16
      %v320 = vrot.slane %v318, 5
      %v321 = vsel %vm201, %v316, %v320
      %v323 = vshrl.u32 %v160, 16
      %v325 = vrot.slane %v323, 4
      %v326 = vshll.u32 %v160, 16
      %v328 = vrot.slane %v326, 5
      %v329 = vor.u32 %v325, %v328
      %v330 = vrot.slane %v329, 4
      %v332 = vshll.u32 %v161, 16
      %v334 = vrot.slane %v332, 5
      %v335 = vsel %vm201, %v330, %v334
      %v336 = vshrl.u32 %v161, 16
      %v338 = vrot.slane %v336, 4
      %v339 = vor.u32 %v338, %v334
      %v340 = vrot.slane %v339, 4
      %v342 = vshll.u32 %v162, 16
      %v344 = vrot.slane %v342, 5
      %v345 = vsel %vm201, %v340, %v344
      %v347 = vshrl.u32 %v163, 16
      %v349 = vrot.slane %v347, 4
      %v350 = vshll.u32 %v163, 16
      %v352 = vrot.slane %v350, 5
      %v353 = vor.u32 %v349, %v352
      %v354 = vrot.slane %v353, 4
      %v356 = vshll.u32 %v164, 16
      %v358 = vrot.slane %v356, 5
      %v359 = vsel %vm201, %v354, %v358
      %v360 = vshrl.u32 %v164, 16
      %v362 = vrot.slane %v360, 4
      %v363 = vor.u32 %v362, %v358
      %v364 = vrot.slane %v363, 4
      %v366 = vshll.u32 %v165, 16
      %v368 = vrot.slane %v366, 5
      %v369 = vsel %vm201, %v364, %v368
      %v371 = vshrl.u32 %v166, 16
      %v373 = vrot.slane %v371, 4
      %v374 = vshll.u32 %v166, 16
      %v376 = vrot.slane %v374, 5
      %v377 = vor.u32 %v373, %v376
      %v378 = vrot.slane %v377, 4
      %v380 = vshll.u32 %v167, 16
      %v382 = vrot.slane %v380, 5
      %v383 = vsel %vm201, %v378, %v382
      %v384 = vshrl.u32 %v167, 16
      %v386 = vrot.slane %v384, 4
      %v387 = vor.u32 %v386, %v382
      %v388 = vrot.slane %v387, 4
      %v390 = vshll.u32 %v168, 16
      %v392 = vrot.slane %v390, 5
      %v393 = vsel %vm201, %v388, %v392
      %v395 = vshrl.u32 %v169, 16
      %v397 = vrot.slane %v395, 4
      %v398 = vshll.u32 %v169, 16
      %v400 = vrot.slane %v398, 5
      %v401 = vor.u32 %v397, %v400
      %v402 = vrot.slane %v401, 4
      %v404 = vshll.u32 %v170, 16
      %v406 = vrot.slane %v404, 5
      %v407 = vsel %vm201, %v402, %v406
      %v408 = vshrl.u32 %v170, 16
      %v410 = vrot.slane %v408, 4
      %v411 = vor.u32 %v410, %v406
      %v412 = vrot.slane %v411, 4
      %v414 = vshll.u32 %v171, 16
      %v416 = vrot.slane %v414, 5
      %v417 = vsel %vm201, %v412, %v416
      %v419 = vshrl.u32 %v172, 16
      %v421 = vrot.slane %v419, 4
      %v422 = vshll.u32 %v172, 16
      %v424 = vrot.slane %v422, 5
      %v425 = vor.u32 %v421, %v424
      %v426 = vrot.slane %v425, 4
      %v428 = vshll.u32 %v173, 16
      %v430 = vrot.slane %v428, 5
      %v431 = vsel %vm201, %v426, %v430
      %v432 = vshrl.u32 %v173, 16
      %v434 = vrot.slane %v432, 4
      %v435 = vor.u32 %v434, %v430
      %v436 = vrot.slane %v435, 4
      %v438 = vshll.u32 %v174, 16
      %v440 = vrot.slane %v438, 5
      %v441 = vsel %vm201, %v436, %v440
      %v443 = vshrl.u32 %v175, 16
      %v445 = vrot.slane %v443, 4
      %v446 = vshll.u32 %v175, 16
      %v448 = vrot.slane %v446, 5
      %v449 = vor.u32 %v445, %v448
      %v450 = vrot.slane %v449, 4
      %v452 = vshll.u32 %v176, 16
      %v454 = vrot.slane %v452, 5
      %v455 = vsel %vm201, %v450, %v454
      %v456 = vshrl.u32 %v176, 16
      %v458 = vrot.slane %v456, 4
      %v459 = vor.u32 %v458, %v454
      %v460 = vrot.slane %v459, 4
      %v462 = vshll.u32 %v177, 16
      %v464 = vrot.slane %v462, 5
      %v465 = vsel %vm201, %v460, %v464
      %v467 = vshrl.u32 %v178, 16
      %v469 = vrot.slane %v467, 4
      %v470 = vshll.u32 %v178, 16
      %v472 = vrot.slane %v470, 5
      %v473 = vor.u32 %v469, %v472
      %v474 = vrot.slane %v473, 4
      %v476 = vshll.u32 %v179, 16
      %v478 = vrot.slane %v476, 5
      %v479 = vsel %vm201, %v474, %v478
      %v480 = vshrl.u32 %v179, 16
      %v482 = vrot.slane %v480, 4
      %v483 = vor.u32 %v482, %v478
      %v484 = vrot.slane %v483, 4
      %v486 = vshll.u32 %v180, 16
      %v488 = vrot.slane %v486, 5
      %v489 = vsel %vm201, %v484, %v488
      %v491 = vshrl.u32 %v181, 16
      %v493 = vrot.slane %v491, 4
      %v494 = vshll.u32 %v181, 16
      %v496 = vrot.slane %v494, 5
      %v497 = vor.u32 %v493, %v496
      %v498 = vrot.slane %v497, 4
      %v500 = vshll.u32 %v182, 16
      %v502 = vrot.slane %v500, 5
      %v503 = vsel %vm201, %v498, %v502
      %v504 = vshrl.u32 %v182, 16
      %v506 = vrot.slane %v504, 4
      %v507 = vor.u32 %v506, %v502
      %v508 = vrot.slane %v507, 4
      %v510 = vshll.u32 %v183, 16
      %v512 = vrot.slane %v510, 5
      %v513 = vsel %vm201, %v508, %v512
      %v515 = vshrl.u32 %v184, 16
      %v517 = vrot.slane %v515, 4
      %v518 = vshll.u32 %v184, 16
      %v520 = vrot.slane %v518, 5
      %v521 = vor.u32 %v517, %v520
      %v522 = vrot.slane %v521, 4
      %v524 = vshll.u32 %v185, 16
      %v526 = vrot.slane %v524, 5
      %v527 = vsel %vm201, %v522, %v526
      %v528 = vshrl.u32 %v185, 16
      %v530 = vrot.slane %v528, 4
      %v531 = vor.u32 %v530, %v526
      %v532 = vrot.slane %v531, 4
      %v534 = vshll.u32 %v186, 16
      %v536 = vrot.slane %v534, 5
      %v537 = vsel %vm201, %v532, %v536
      %v539 = vshrl.u32 %v187, 16
      %v541 = vrot.slane %v539, 4
      %v542 = vshll.u32 %v187, 16
      %v544 = vrot.slane %v542, 5
      %v545 = vor.u32 %v541, %v544
      %v546 = vrot.slane %v545, 4
      %v548 = vshll.u32 %v188, 16
      %v550 = vrot.slane %v548, 5
      %v551 = vsel %vm201, %v546, %v550
      %v552 = vshrl.u32 %v188, 16
      %v554 = vrot.slane %v552, 4
      %v555 = vor.u32 %v554, %v550
      %v556 = vrot.slane %v555, 4
      %v558 = vshll.u32 %v189, 16
      %v560 = vrot.slane %v558, 5
      %v561 = vsel %vm201, %v556, %v560
      %v563 = vshrl.u32 %v190, 16
      %v565 = vrot.slane %v563, 4
      %v566 = vshll.u32 %v190, 16
      %v568 = vrot.slane %v566, 5
      %v569 = vor.u32 %v565, %v568
      %v570 = vrot.slane %v569, 4
      %v572 = vshll.u32 %v191, 16
      %v574 = vrot.slane %v572, 5
      %v575 = vsel %vm201, %v570, %v574
      %v576 = vshrl.u32 %v191, 16
      %v578 = vrot.slane %v576, 4
      %v579 = vor.u32 %v578, %v574
      %v580 = vrot.slane %v579, 4
      %v582 = vshll.u32 %v192, 16
      %v584 = vrot.slane %v582, 5
      %v585 = vsel %vm201, %v580, %v584
      %vm634 = vcmask 1042432
      %vm635 = vcmask 1046532
      %vm636 = vmor %vm634, %vm635
      %v637 = vrot.slane %v145, 5
      %v638 = vrot.slane %v637, 4
      %v639 = vrot.slane %v146, 5
      %v640 = vsel %vm636, %v638, %v639
      %v641 = vrot.slane %v639, 4
      %v642 = vrot.slane %v147, 5
      %v643 = vsel %vm636, %v641, %v642
      %v644 = vrot.slane %v148, 5
      %v645 = vrot.slane %v644, 4
      %v646 = vrot.slane %v149, 5
      %v647 = vsel %vm636, %v645, %v646
      %v648 = vrot.slane %v646, 4
      %v649 = vrot.slane %v150, 5
      %v650 = vsel %vm636, %v648, %v649
      %v651 = vrot.slane %v151, 5
      %v652 = vrot.slane %v651, 4
      %v653 = vrot.slane %v152, 5
      %v654 = vsel %vm636, %v652, %v653
      %v655 = vrot.slane %v653, 4
      %v656 = vrot.slane %v153, 5
      %v657 = vsel %vm636, %v655, %v656
      %v658 = vrot.slane %v154, 5
      %v659 = vrot.slane %v658, 4
      %v660 = vrot.slane %v155, 5
      %v661 = vsel %vm636, %v659, %v660
      %v662 = vrot.slane %v660, 4
      %v663 = vrot.slane %v156, 5
      %v664 = vsel %vm636, %v662, %v663
      %v665 = vrot.slane %v157, 5
      %v666 = vrot.slane %v665, 4
      %v667 = vrot.slane %v158, 5
      %v668 = vsel %vm636, %v666, %v667
      %v669 = vrot.slane %v667, 4
      %v670 = vrot.slane %v159, 5
      %v671 = vsel %vm636, %v669, %v670
      %v672 = vrot.slane %v160, 5
      %v673 = vrot.slane %v672, 4
      %v674 = vrot.slane %v161, 5
      %v675 = vsel %vm636, %v673, %v674
      %v676 = vrot.slane %v674, 4
      %v677 = vrot.slane %v162, 5
      %v678 = vsel %vm636, %v676, %v677
      %v679 = vrot.slane %v163, 5
      %v680 = vrot.slane %v679, 4
      %v681 = vrot.slane %v164, 5
      %v682 = vsel %vm636, %v680, %v681
      %v683 = vrot.slane %v681, 4
      %v684 = vrot.slane %v165, 5
      %v685 = vsel %vm636, %v683, %v684
      %v686 = vrot.slane %v166, 5
      %v687 = vrot.slane %v686, 4
      %v688 = vrot.slane %v167, 5
      %v689 = vsel %vm636, %v687, %v688
      %v690 = vrot.slane %v688, 4
      %v691 = vrot.slane %v168, 5
      %v692 = vsel %vm636, %v690, %v691
      %v693 = vrot.slane %v169, 5
      %v694 = vrot.slane %v693, 4
      %v695 = vrot.slane %v170, 5
      %v696 = vsel %vm636, %v694, %v695
      %v697 = vrot.slane %v695, 4
      %v698 = vrot.slane %v171, 5
      %v699 = vsel %vm636, %v697, %v698
      %v700 = vrot.slane %v172, 5
      %v701 = vrot.slane %v700, 4
      %v702 = vrot.slane %v173, 5
      %v703 = vsel %vm636, %v701, %v702
      %v704 = vrot.slane %v702, 4
      %v705 = vrot.slane %v174, 5
      %v706 = vsel %vm636, %v704, %v705
      %v707 = vrot.slane %v175, 5
      %v708 = vrot.slane %v707, 4
      %v709 = vrot.slane %v176, 5
      %v710 = vsel %vm636, %v708, %v709
      %v711 = vrot.slane %v709, 4
      %v712 = vrot.slane %v177, 5
      %v713 = vsel %vm636, %v711, %v712
      %v714 = vrot.slane %v178, 5
      %v715 = vrot.slane %v714, 4
      %v716 = vrot.slane %v179, 5
      %v717 = vsel %vm636, %v715, %v716
      %v718 = vrot.slane %v716, 4
      %v719 = vrot.slane %v180, 5
      %v720 = vsel %vm636, %v718, %v719
      %v721 = vrot.slane %v181, 5
      %v722 = vrot.slane %v721, 4
      %v723 = vrot.slane %v182, 5
      %v724 = vsel %vm636, %v722, %v723
      %v725 = vrot.slane %v723, 4
      %v726 = vrot.slane %v183, 5
      %v727 = vsel %vm636, %v725, %v726
      %v728 = vrot.slane %v184, 5
      %v729 = vrot.slane %v728, 4
      %v730 = vrot.slane %v185, 5
      %v731 = vsel %vm636, %v729, %v730
      %v732 = vrot.slane %v730, 4
      %v733 = vrot.slane %v186, 5
      %v734 = vsel %vm636, %v732, %v733
      %v735 = vrot.slane %v187, 5
      %v736 = vrot.slane %v735, 4
      %v737 = vrot.slane %v188, 5
      %v738 = vsel %vm636, %v736, %v737
      %v739 = vrot.slane %v737, 4
      %v740 = vrot.slane %v189, 5
      %v741 = vsel %vm636, %v739, %v740
      %v742 = vrot.slane %v190, 5
      %v743 = vrot.slane %v742, 4
      %v744 = vrot.slane %v191, 5
      %v745 = vsel %vm636, %v743, %v744
      %v746 = vrot.slane %v744, 4
      %v747 = vrot.slane %v192, 5
      %v748 = vsel %vm636, %v746, %v747
      %v750 = vshrl.u32 %v193, 16
      %v752 = vrot.slane %v750, 4
      %v753 = vshll.u32 %v193, 16
      %v755 = vrot.slane %v753, 5
      %v756 = vor.u32 %v752, %v755
      %v757 = vrot.slane %v756, 4
      %v759 = vshll.u32 %v194, 16
      %v761 = vrot.slane %v759, 5
      %v762 = vsel %vm201, %v757, %v761
      %v763 = vshrl.u32 %v194, 16
      %v765 = vrot.slane %v763, 4
      %v766 = vor.u32 %v765, %v761
      %v767 = vrot.slane %v766, 4
      %v769 = vshll.u32 %v195, 16
      %v771 = vrot.slane %v769, 5
      %v772 = vsel %vm201, %v767, %v771
      %v776 = vrot.slane %v193, 5
      %v777 = vrot.slane %v776, 4
      %v778 = vrot.slane %v194, 5
      %v779 = vsel %vm636, %v777, %v778
      %v780 = vrot.slane %v778, 4
      %v781 = vrot.slane %v195, 5
      %v782 = vsel %vm636, %v780, %v781
      %v784 = vshrl.u32 %v196, 16
      %v786 = vrot.slane %v784, 4
      %v787 = vshll.u32 %v196, 16
      %v789 = vrot.slane %v787, 5
      %v790 = vor.u32 %v786, %v789
      %v791 = vrot.slane %v790, 4
      %v793 = vshll.u32 %v197, 16
      %v795 = vrot.slane %v793, 5
      %v796 = vsel %vm201, %v791, %v795
      %v797 = vshrl.u32 %v197, 16
      %v799 = vrot.slane %v797, 4
      %v800 = vor.u32 %v799, %v795
      %v801 = vrot.slane %v800, 4
      %v803 = vshll.u32 %v198, 16
      %v805 = vrot.slane %v803, 5
      %v806 = vsel %vm201, %v801, %v805
      %v810 = vrot.slane %v196, 5
      %v811 = vrot.slane %v810, 4
      %v812 = vrot.slane %v197, 5
      %v813 = vsel %vm636, %v811, %v812
      %v814 = vrot.slane %v812, 4
      %v815 = vrot.slane %v198, 5
      %v816 = vsel %vm636, %v814, %v815
      %v817 = vunpack.c.l.b16 %v145
      %v818 = vunpack.c.l.b16 %v146
      %v819 = vunpack.c.l.b16 %v148
      %v820 = vunpack.c.l.b16 %v149
      %v821 = vunpack.c.l.b16 %v151
      %v822 = vunpack.c.l.b16 %v152
      %v823 = vunpack.c.l.b16 %v154
      %v824 = vunpack.c.l.b16 %v155
      %v825 = vunpack.c.l.b16 %v157
      %v826 = vunpack.c.l.b16 %v158
      %v827 = vunpack.c.l.b16 %v160
      %v828 = vunpack.c.l.b16 %v161
      %v829 = vunpack.c.l.b16 %v163
      %v830 = vunpack.c.l.b16 %v164
      %v831 = vunpack.c.l.b16 %v166
      %v832 = vunpack.c.l.b16 %v167
      %v833 = vunpack.c.l.b16 %v169
      %v834 = vunpack.c.l.b16 %v170
      %v835 = vunpack.c.l.b16 %v172
      %v836 = vunpack.c.l.b16 %v173
      %v837 = vunpack.c.l.b16 %v175
      %v838 = vunpack.c.l.b16 %v176
      %v839 = vunpack.c.l.b16 %v178
      %v840 = vunpack.c.l.b16 %v179
      %v841 = vunpack.c.l.b16 %v181
      %v842 = vunpack.c.l.b16 %v182
      %v843 = vunpack.c.l.b16 %v184
      %v844 = vunpack.c.l.b16 %v185
      %v845 = vunpack.c.l.b16 %v187
      %v846 = vunpack.c.l.b16 %v188
      %v847 = vunpack.c.l.b16 %v190
      %v848 = vunpack.c.l.b16 %v191
      %v849 = vpack.c.b16 %v818, %v817
      %v850 = vpack.c.b16 %v820, %v819
      %v851 = vpack.c.b16 %v822, %v821
      %v852 = vpack.c.b16 %v824, %v823
      %v853 = vpack.c.b16 %v826, %v825
      %v854 = vpack.c.b16 %v828, %v827
      %v855 = vpack.c.b16 %v830, %v829
      %v856 = vpack.c.b16 %v832, %v831
      %v857 = vpack.c.b16 %v834, %v833
      %v858 = vpack.c.b16 %v836, %v835
      %v859 = vpack.c.b16 %v838, %v837
      %v860 = vpack.c.b16 %v840, %v839
      %v861 = vpack.c.b16 %v842, %v841
      %v862 = vpack.c.b16 %v844, %v843
      %v863 = vpack.c.b16 %v846, %v845
      %v864 = vpack.c.b16 %v848, %v847
      %v865 = vunpack.c.l.b16 %v215
      %v866 = vunpack.c.l.b16 %v225
      %v867 = vunpack.c.l.b16 %v239
      %v868 = vunpack.c.l.b16 %v249
      %v869 = vunpack.c.l.b16 %v263
      %v870 = vunpack.c.l.b16 %v273
      %v871 = vunpack.c.l.b16 %v287
      %v872 = vunpack.c.l.b16 %v297
      %v873 = vunpack.c.l.b16 %v311
      %v874 = vunpack.c.l.b16 %v321
      %v875 = vunpack.c.l.b16 %v335
      %v876 = vunpack.c.l.b16 %v345
      %v877 = vunpack.c.l.b16 %v359
      %v878 = vunpack.c.l.b16 %v369
      %v879 = vunpack.c.l.b16 %v383
      %v880 = vunpack.c.l.b16 %v393
      %v881 = vunpack.c.l.b16 %v407
      %v882 = vunpack.c.l.b16 %v417
      %v883 = vunpack.c.l.b16 %v431
      %v884 = vunpack.c.l.b16 %v441
      %v885 = vunpack.c.l.b16 %v455
      %v886 = vunpack.c.l.b16 %v465
      %v887 = vunpack.c.l.b16 %v479
      %v888 = vunpack.c.l.b16 %v489
      %v889 = vunpack.c.l.b16 %v503
      %v890 = vunpack.c.l.b16 %v513
      %v891 = vunpack.c.l.b16 %v527
      %v892 = vunpack.c.l.b16 %v537
      %v893 = vunpack.c.l.b16 %v551
      %v894 = vunpack.c.l.b16 %v561
      %v895 = vunpack.c.l.b16 %v575
      %v896 = vunpack.c.l.b16 %v585
      %v897 = vpack.c.b16 %v866, %v865
      %v898 = vpack.c.b16 %v868, %v867
      %v899 = vpack.c.b16 %v870, %v869
      %v900 = vpack.c.b16 %v872, %v871
      %v901 = vpack.c.b16 %v874, %v873
      %v902 = vpack.c.b16 %v876, %v875
      %v903 = vpack.c.b16 %v878, %v877
      %v904 = vpack.c.b16 %v880, %v879
      %v905 = vpack.c.b16 %v882, %v881
      %v906 = vpack.c.b16 %v884, %v883
      %v907 = vpack.c.b16 %v886, %v885
      %v908 = vpack.c.b16 %v888, %v887
      %v909 = vpack.c.b16 %v890, %v889
      %v910 = vpack.c.b16 %v892, %v891
      %v911 = vpack.c.b16 %v894, %v893
      %v912 = vpack.c.b16 %v896, %v895
      %913 = vrot.lane.b32.xlu0 %v897, 4
      %v914 = vpop.permute.xlu0 %913
      %915 = vrot.lane.b32.xlu0 %v898, 4
      %v916 = vpop.permute.xlu0 %915
      %917 = vrot.lane.b32.xlu0 %v899, 4
      %v918 = vpop.permute.xlu0 %917
      %919 = vrot.lane.b32.xlu0 %v900, 4
      %v920 = vpop.permute.xlu0 %919
      %921 = vrot.lane.b32.xlu0 %v901, 4
      %v922 = vpop.permute.xlu0 %921
      %923 = vrot.lane.b32.xlu0 %v902, 4
      %v924 = vpop.permute.xlu0 %923
      %925 = vrot.lane.b32.xlu0 %v903, 4
      %v926 = vpop.permute.xlu0 %925
      %927 = vrot.lane.b32.xlu0 %v904, 4
      %v928 = vpop.permute.xlu0 %927
      %929 = vrot.lane.b32.xlu0 %v905, 4
      %v930 = vpop.permute.xlu0 %929
      %931 = vrot.lane.b32.xlu0 %v906, 4
      %v932 = vpop.permute.xlu0 %931
      %933 = vrot.lane.b32.xlu0 %v907, 4
      %v934 = vpop.permute.xlu0 %933
      %935 = vrot.lane.b32.xlu0 %v908, 4
      %v936 = vpop.permute.xlu0 %935
      %937 = vrot.lane.b32.xlu0 %v909, 4
      %v938 = vpop.permute.xlu0 %937
      %939 = vrot.lane.b32.xlu0 %v910, 4
      %v940 = vpop.permute.xlu0 %939
      %941 = vrot.lane.b32.xlu0 %v911, 4
      %v942 = vpop.permute.xlu0 %941
      %943 = vrot.lane.b32.xlu0 %v912, 4
      %v944 = vpop.permute.xlu0 %943
      %v945 = vunpack.c.l.b16 %v640
      %v946 = vunpack.c.l.b16 %v643
      %v947 = vunpack.c.l.b16 %v647
      %v948 = vunpack.c.l.b16 %v650
      %v949 = vunpack.c.l.b16 %v654
      %v950 = vunpack.c.l.b16 %v657
      %v951 = vunpack.c.l.b16 %v661
      %v952 = vunpack.c.l.b16 %v664
      %v953 = vunpack.c.l.b16 %v668
      %v954 = vunpack.c.l.b16 %v671
      %v955 = vunpack.c.l.b16 %v675
      %v956 = vunpack.c.l.b16 %v678
      %v957 = vunpack.c.l.b16 %v682
      %v958 = vunpack.c.l.b16 %v685
      %v959 = vunpack.c.l.b16 %v689
      %v960 = vunpack.c.l.b16 %v692
      %v961 = vunpack.c.l.b16 %v696
      %v962 = vunpack.c.l.b16 %v699
      %v963 = vunpack.c.l.b16 %v703
      %v964 = vunpack.c.l.b16 %v706
      %v965 = vunpack.c.l.b16 %v710
      %v966 = vunpack.c.l.b16 %v713
      %v967 = vunpack.c.l.b16 %v717
      %v968 = vunpack.c.l.b16 %v720
      %v969 = vunpack.c.l.b16 %v724
      %v970 = vunpack.c.l.b16 %v727
      %v971 = vunpack.c.l.b16 %v731
      %v972 = vunpack.c.l.b16 %v734
      %v973 = vunpack.c.l.b16 %v738
      %v974 = vunpack.c.l.b16 %v741
      %v975 = vunpack.c.l.b16 %v745
      %v976 = vunpack.c.l.b16 %v748
      %v977 = vpack.c.b16 %v946, %v945
      %v978 = vpack.c.b16 %v948, %v947
      %v979 = vpack.c.b16 %v950, %v949
      %v980 = vpack.c.b16 %v952, %v951
      %v981 = vpack.c.b16 %v954, %v953
      %v982 = vpack.c.b16 %v956, %v955
      %v983 = vpack.c.b16 %v958, %v957
      %v984 = vpack.c.b16 %v960, %v959
      %v985 = vpack.c.b16 %v962, %v961
      %v986 = vpack.c.b16 %v964, %v963
      %v987 = vpack.c.b16 %v966, %v965
      %v988 = vpack.c.b16 %v968, %v967
      %v989 = vpack.c.b16 %v970, %v969
      %v990 = vpack.c.b16 %v972, %v971
      %v991 = vpack.c.b16 %v974, %v973
      %v992 = vpack.c.b16 %v976, %v975
      %993 = vrot.lane.b32.xlu0 %v977, 8
      %v994 = vpop.permute.xlu0 %993
      %995 = vrot.lane.b32.xlu0 %v978, 8
      %v996 = vpop.permute.xlu0 %995
      %997 = vrot.lane.b32.xlu0 %v979, 8
      %v998 = vpop.permute.xlu0 %997
      %999 = vrot.lane.b32.xlu0 %v980, 8
      %v1000 = vpop.permute.xlu0 %999
      %1001 = vrot.lane.b32.xlu0 %v981, 8
      %v1002 = vpop.permute.xlu0 %1001
      %1003 = vrot.lane.b32.xlu0 %v982, 8
      %v1004 = vpop.permute.xlu0 %1003
      %1005 = vrot.lane.b32.xlu0 %v983, 8
      %v1006 = vpop.permute.xlu0 %1005
      %1007 = vrot.lane.b32.xlu0 %v984, 8
      %v1008 = vpop.permute.xlu0 %1007
      %1009 = vrot.lane.b32.xlu0 %v985, 8
      %v1010 = vpop.permute.xlu0 %1009
      %1011 = vrot.lane.b32.xlu0 %v986, 8
      %v1012 = vpop.permute.xlu0 %1011
      %1013 = vrot.lane.b32.xlu0 %v987, 8
      %v1014 = vpop.permute.xlu0 %1013
      %1015 = vrot.lane.b32.xlu0 %v988, 8
      %v1016 = vpop.permute.xlu0 %1015
      %1017 = vrot.lane.b32.xlu0 %v989, 8
      %v1018 = vpop.permute.xlu0 %1017
      %1019 = vrot.lane.b32.xlu0 %v990, 8
      %v1020 = vpop.permute.xlu0 %1019
      %1021 = vrot.lane.b32.xlu0 %v991, 8
      %v1022 = vpop.permute.xlu0 %1021
      %1023 = vrot.lane.b32.xlu0 %v992, 8
      %v1024 = vpop.permute.xlu0 %1023
      %v1025 = vunpack.c.l.b16 %v193
      %v1026 = vunpack.c.l.b16 %v194
      %v1027 = vpack.c.b16 %v1026, %v1025
      %1028 = vrot.lane.b32.xlu0 %v850, 12
      %v1029 = vpop.permute.xlu0 %1028
      %1030 = vrot.lane.b32.xlu0 %v851, 12
      %v1031 = vpop.permute.xlu0 %1030
      %1032 = vrot.lane.b32.xlu0 %v852, 12
      %v1033 = vpop.permute.xlu0 %1032
      %1034 = vrot.lane.b32.xlu0 %v853, 12
      %v1035 = vpop.permute.xlu0 %1034
      %1036 = vrot.lane.b32.xlu0 %v854, 12
      %v1037 = vpop.permute.xlu0 %1036
      %1038 = vrot.lane.b32.xlu0 %v855, 12
      %v1039 = vpop.permute.xlu0 %1038
      %1040 = vrot.lane.b32.xlu0 %v856, 12
      %v1041 = vpop.permute.xlu0 %1040
      %1042 = vrot.lane.b32.xlu0 %v857, 12
      %v1043 = vpop.permute.xlu0 %1042
      %1044 = vrot.lane.b32.xlu0 %v858, 12
      %v1045 = vpop.permute.xlu0 %1044
      %1046 = vrot.lane.b32.xlu0 %v859, 12
      %v1047 = vpop.permute.xlu0 %1046
      %1048 = vrot.lane.b32.xlu0 %v860, 12
      %v1049 = vpop.permute.xlu0 %1048
      %1050 = vrot.lane.b32.xlu0 %v861, 12
      %v1051 = vpop.permute.xlu0 %1050
      %1052 = vrot.lane.b32.xlu0 %v862, 12
      %v1053 = vpop.permute.xlu0 %1052
      %1054 = vrot.lane.b32.xlu0 %v863, 12
      %v1055 = vpop.permute.xlu0 %1054
      %1056 = vrot.lane.b32.xlu0 %v864, 12
      %v1057 = vpop.permute.xlu0 %1056
      %1058 = vrot.lane.b32.xlu0 %v1027, 12
      %v1059 = vpop.permute.xlu0 %1058
      %v1060 = vunpack.c.l.b16 %v762
      %v1061 = vunpack.c.l.b16 %v772
      %v1062 = vpack.c.b16 %v1061, %v1060
      %1063 = vrot.lane.b32.xlu0 %v898, 16
      %v1064 = vpop.permute.xlu0 %1063
      %1065 = vrot.lane.b32.xlu0 %v899, 16
      %v1066 = vpop.permute.xlu0 %1065
      %1067 = vrot.lane.b32.xlu0 %v900, 16
      %v1068 = vpop.permute.xlu0 %1067
      %1069 = vrot.lane.b32.xlu0 %v901, 16
      %v1070 = vpop.permute.xlu0 %1069
      %1071 = vrot.lane.b32.xlu0 %v902, 16
      %v1072 = vpop.permute.xlu0 %1071
      %1073 = vrot.lane.b32.xlu0 %v903, 16
      %v1074 = vpop.permute.xlu0 %1073
      %1075 = vrot.lane.b32.xlu0 %v904, 16
      %v1076 = vpop.permute.xlu0 %1075
      %1077 = vrot.lane.b32.xlu0 %v905, 16
      %v1078 = vpop.permute.xlu0 %1077
      %1079 = vrot.lane.b32.xlu0 %v906, 16
      %v1080 = vpop.permute.xlu0 %1079
      %1081 = vrot.lane.b32.xlu0 %v907, 16
      %v1082 = vpop.permute.xlu0 %1081
      %1083 = vrot.lane.b32.xlu0 %v908, 16
      %v1084 = vpop.permute.xlu0 %1083
      %1085 = vrot.lane.b32.xlu0 %v909, 16
      %v1086 = vpop.permute.xlu0 %1085
      %1087 = vrot.lane.b32.xlu0 %v910, 16
      %v1088 = vpop.permute.xlu0 %1087
      %1089 = vrot.lane.b32.xlu0 %v911, 16
      %v1090 = vpop.permute.xlu0 %1089
      %1091 = vrot.lane.b32.xlu0 %v912, 16
      %v1092 = vpop.permute.xlu0 %1091
      %1093 = vrot.lane.b32.xlu0 %v1062, 16
      %v1094 = vpop.permute.xlu0 %1093
      %v1095 = vunpack.c.l.b16 %v779
      %v1096 = vunpack.c.l.b16 %v782
      %v1097 = vpack.c.b16 %v1096, %v1095
      %1098 = vrot.lane.b32.xlu0 %v978, 20
      %v1099 = vpop.permute.xlu0 %1098
      %1100 = vrot.lane.b32.xlu0 %v979, 20
      %v1101 = vpop.permute.xlu0 %1100
      %1102 = vrot.lane.b32.xlu0 %v980, 20
      %v1103 = vpop.permute.xlu0 %1102
      %1104 = vrot.lane.b32.xlu0 %v981, 20
      %v1105 = vpop.permute.xlu0 %1104
      %1106 = vrot.lane.b32.xlu0 %v982, 20
      %v1107 = vpop.permute.xlu0 %1106
      %1108 = vrot.lane.b32.xlu0 %v983, 20
      %v1109 = vpop.permute.xlu0 %1108
      %1110 = vrot.lane.b32.xlu0 %v984, 20
      %v1111 = vpop.permute.xlu0 %1110
      %1112 = vrot.lane.b32.xlu0 %v985, 20
      %v1113 = vpop.permute.xlu0 %1112
      %1114 = vrot.lane.b32.xlu0 %v986, 20
      %v1115 = vpop.permute.xlu0 %1114
      %1116 = vrot.lane.b32.xlu0 %v987, 20
      %v1117 = vpop.permute.xlu0 %1116
      %1118 = vrot.lane.b32.xlu0 %v988, 20
      %v1119 = vpop.permute.xlu0 %1118
      %1120 = vrot.lane.b32.xlu0 %v989, 20
      %v1121 = vpop.permute.xlu0 %1120
      %1122 = vrot.lane.b32.xlu0 %v990, 20
      %v1123 = vpop.permute.xlu0 %1122
      %1124 = vrot.lane.b32.xlu0 %v991, 20
      %v1125 = vpop.permute.xlu0 %1124
      %1126 = vrot.lane.b32.xlu0 %v992, 20
      %v1127 = vpop.permute.xlu0 %1126
      %1128 = vrot.lane.b32.xlu0 %v1097, 20
      %v1129 = vpop.permute.xlu0 %1128
      %v1130 = vunpack.c.l.b16 %v196
      %v1131 = vunpack.c.l.b16 %v197
      %v1132 = vpack.c.b16 %v1131, %v1130
      %1133 = vrot.lane.b32.xlu0 %v851, 24
      %v1134 = vpop.permute.xlu0 %1133
      %1135 = vrot.lane.b32.xlu0 %v852, 24
      %v1136 = vpop.permute.xlu0 %1135
      %1137 = vrot.lane.b32.xlu0 %v853, 24
      %v1138 = vpop.permute.xlu0 %1137
      %1139 = vrot.lane.b32.xlu0 %v854, 24
      %v1140 = vpop.permute.xlu0 %1139
      %1141 = vrot.lane.b32.xlu0 %v855, 24
      %v1142 = vpop.permute.xlu0 %1141
      %1143 = vrot.lane.b32.xlu0 %v856, 24
      %v1144 = vpop.permute.xlu0 %1143
      %1145 = vrot.lane.b32.xlu0 %v857, 24
      %v1146 = vpop.permute.xlu0 %1145
      %1147 = vrot.lane.b32.xlu0 %v858, 24
      %v1148 = vpop.permute.xlu0 %1147
      %1149 = vrot.lane.b32.xlu0 %v859, 24
      %v1150 = vpop.permute.xlu0 %1149
      %1151 = vrot.lane.b32.xlu0 %v860, 24
      %v1152 = vpop.permute.xlu0 %1151
      %1153 = vrot.lane.b32.xlu0 %v861, 24
      %v1154 = vpop.permute.xlu0 %1153
      %1155 = vrot.lane.b32.xlu0 %v862, 24
      %v1156 = vpop.permute.xlu0 %1155
      %1157 = vrot.lane.b32.xlu0 %v863, 24
      %v1158 = vpop.permute.xlu0 %1157
      %1159 = vrot.lane.b32.xlu0 %v864, 24
      %v1160 = vpop.permute.xlu0 %1159
      %1161 = vrot.lane.b32.xlu0 %v1027, 24
      %v1162 = vpop.permute.xlu0 %1161
      %1163 = vrot.lane.b32.xlu0 %v1132, 24
      %v1164 = vpop.permute.xlu0 %1163
      %v1165 = vunpack.c.l.b16 %v796
      %v1166 = vunpack.c.l.b16 %v806
      %v1167 = vpack.c.b16 %v1166, %v1165
      %1168 = vrot.lane.b32.xlu0 %v899, 28
      %v1169 = vpop.permute.xlu0 %1168
      %1170 = vrot.lane.b32.xlu0 %v900, 28
      %v1171 = vpop.permute.xlu0 %1170
      %1172 = vrot.lane.b32.xlu0 %v901, 28
      %v1173 = vpop.permute.xlu0 %1172
      %1174 = vrot.lane.b32.xlu0 %v902, 28
      %v1175 = vpop.permute.xlu0 %1174
      %1176 = vrot.lane.b32.xlu0 %v903, 28
      %v1177 = vpop.permute.xlu0 %1176
      %1178 = vrot.lane.b32.xlu0 %v904, 28
      %v1179 = vpop.permute.xlu0 %1178
      %1180 = vrot.lane.b32.xlu0 %v905, 28
      %v1181 = vpop.permute.xlu0 %1180
      %1182 = vrot.lane.b32.xlu0 %v906, 28
      %v1183 = vpop.permute.xlu0 %1182
      %1184 = vrot.lane.b32.xlu0 %v907, 28
      %v1185 = vpop.permute.xlu0 %1184
      %1186 = vrot.lane.b32.xlu0 %v908, 28
      %v1187 = vpop.permute.xlu0 %1186
      %1188 = vrot.lane.b32.xlu0 %v909, 28
      %v1189 = vpop.permute.xlu0 %1188
      %1190 = vrot.lane.b32.xlu0 %v910, 28
      %v1191 = vpop.permute.xlu0 %1190
      %1192 = vrot.lane.b32.xlu0 %v911, 28
      %v1193 = vpop.permute.xlu0 %1192
      %1194 = vrot.lane.b32.xlu0 %v912, 28
      %v1195 = vpop.permute.xlu0 %1194
      %1196 = vrot.lane.b32.xlu0 %v1062, 28
      %v1197 = vpop.permute.xlu0 %1196
      %1198 = vrot.lane.b32.xlu0 %v1167, 28
      %v1199 = vpop.permute.xlu0 %1198
      %v1200 = vunpack.c.l.b16 %v813
      %v1201 = vunpack.c.l.b16 %v816
      %v1202 = vpack.c.b16 %v1201, %v1200
      %1203 = vrot.lane.b32.xlu0 %v979, 32
      %v1204 = vpop.permute.xlu0 %1203
      %1205 = vrot.lane.b32.xlu0 %v980, 32
      %v1206 = vpop.permute.xlu0 %1205
      %1207 = vrot.lane.b32.xlu0 %v981, 32
      %v1208 = vpop.permute.xlu0 %1207
      %1209 = vrot.lane.b32.xlu0 %v982, 32
      %v1210 = vpop.permute.xlu0 %1209
      %1211 = vrot.lane.b32.xlu0 %v983, 32
      %v1212 = vpop.permute.xlu0 %1211
      %1213 = vrot.lane.b32.xlu0 %v984, 32
      %v1214 = vpop.permute.xlu0 %1213
      %1215 = vrot.lane.b32.xlu0 %v985, 32
      %v1216 = vpop.permute.xlu0 %1215
      %1217 = vrot.lane.b32.xlu0 %v986, 32
      %v1218 = vpop.permute.xlu0 %1217
      %1219 = vrot.lane.b32.xlu0 %v987, 32
      %v1220 = vpop.permute.xlu0 %1219
      %1221 = vrot.lane.b32.xlu0 %v988, 32
      %v1222 = vpop.permute.xlu0 %1221
      %1223 = vrot.lane.b32.xlu0 %v989, 32
      %v1224 = vpop.permute.xlu0 %1223
      %1225 = vrot.lane.b32.xlu0 %v990, 32
      %v1226 = vpop.permute.xlu0 %1225
      %1227 = vrot.lane.b32.xlu0 %v991, 32
      %v1228 = vpop.permute.xlu0 %1227
      %1229 = vrot.lane.b32.xlu0 %v992, 32
      %v1230 = vpop.permute.xlu0 %1229
      %1231 = vrot.lane.b32.xlu0 %v1097, 32
      %v1232 = vpop.permute.xlu0 %1231
      %1233 = vrot.lane.b32.xlu0 %v1202, 32
      %v1234 = vpop.permute.xlu0 %1233
      %vm1235 = vcmask 31744
      %v1238 = vsel %vm1235, %v849, %v914
      %v1241 = vsel %vm1235, %v850, %v916
      %v1244 = vsel %vm1235, %v851, %v918
      %v1247 = vsel %vm1235, %v852, %v920
      %v1250 = vsel %vm1235, %v853, %v922
      %v1253 = vsel %vm1235, %v854, %v924
      %v1256 = vsel %vm1235, %v855, %v926
      %v1259 = vsel %vm1235, %v856, %v928
      %v1262 = vsel %vm1235, %v857, %v930
      %v1265 = vsel %vm1235, %v858, %v932
      %v1268 = vsel %vm1235, %v859, %v934
      %v1271 = vsel %vm1235, %v860, %v936
      %v1274 = vsel %vm1235, %v861, %v938
      %v1277 = vsel %vm1235, %v862, %v940
      %v1280 = vsel %vm1235, %v863, %v942
      %v1283 = vsel %vm1235, %v864, %v944
      %vm1284 = vcmask 64512
      %v1286 = vsel %vm1284, %v1238, %v994
      %v1288 = vsel %vm1284, %v1241, %v996
      %v1290 = vsel %vm1284, %v1244, %v998
      %v1292 = vsel %vm1284, %v1247, %v1000
      %v1294 = vsel %vm1284, %v1250, %v1002
      %v1296 = vsel %vm1284, %v1253, %v1004
      %v1298 = vsel %vm1284, %v1256, %v1006
      %v1300 = vsel %vm1284, %v1259, %v1008
      %v1302 = vsel %vm1284, %v1262, %v1010
      %v1304 = vsel %vm1284, %v1265, %v1012
      %v1306 = vsel %vm1284, %v1268, %v1014
      %v1308 = vsel %vm1284, %v1271, %v1016
      %v1310 = vsel %vm1284, %v1274, %v1018
      %v1312 = vsel %vm1284, %v1277, %v1020
      %v1314 = vsel %vm1284, %v1280, %v1022
      %v1316 = vsel %vm1284, %v1283, %v1024
      %vm1317 = vcmask 97280
      %v1319 = vsel %vm1317, %v1286, %v1029
      %v1321 = vsel %vm1317, %v1288, %v1031
      %v1323 = vsel %vm1317, %v1290, %v1033
      %v1325 = vsel %vm1317, %v1292, %v1035
      %v1327 = vsel %vm1317, %v1294, %v1037
      %v1329 = vsel %vm1317, %v1296, %v1039
      %v1331 = vsel %vm1317, %v1298, %v1041
      %v1333 = vsel %vm1317, %v1300, %v1043
      %v1335 = vsel %vm1317, %v1302, %v1045
      %v1337 = vsel %vm1317, %v1304, %v1047
      %v1339 = vsel %vm1317, %v1306, %v1049
      %v1341 = vsel %vm1317, %v1308, %v1051
      %v1343 = vsel %vm1317, %v1310, %v1053
      %v1345 = vsel %vm1317, %v1312, %v1055
      %v1347 = vsel %vm1317, %v1314, %v1057
      %v1349 = vsel %vm1317, %v1316, %v1059
      %vm1350 = vcmask 130048
      %v1352 = vsel %vm1350, %v1319, %v1064
      %v1354 = vsel %vm1350, %v1321, %v1066
      %v1356 = vsel %vm1350, %v1323, %v1068
      %v1358 = vsel %vm1350, %v1325, %v1070
      %v1360 = vsel %vm1350, %v1327, %v1072
      %v1362 = vsel %vm1350, %v1329, %v1074
      %v1364 = vsel %vm1350, %v1331, %v1076
      %v1366 = vsel %vm1350, %v1333, %v1078
      %v1368 = vsel %vm1350, %v1335, %v1080
      %v1370 = vsel %vm1350, %v1337, %v1082
      %v1372 = vsel %vm1350, %v1339, %v1084
      %v1374 = vsel %vm1350, %v1341, %v1086
      %v1376 = vsel %vm1350, %v1343, %v1088
      %v1378 = vsel %vm1350, %v1345, %v1090
      %v1380 = vsel %vm1350, %v1347, %v1092
      %v1382 = vsel %vm1350, %v1349, %v1094
      %vm1383 = vcmask 162816
      %v1385 = vsel %vm1383, %v1352, %v1099
      %v1387 = vsel %vm1383, %v1354, %v1101
      %v1389 = vsel %vm1383, %v1356, %v1103
      %v1391 = vsel %vm1383, %v1358, %v1105
      %v1393 = vsel %vm1383, %v1360, %v1107
      %v1395 = vsel %vm1383, %v1362, %v1109
      %v1397 = vsel %vm1383, %v1364, %v1111
      %v1399 = vsel %vm1383, %v1366, %v1113
      %v1401 = vsel %vm1383, %v1368, %v1115
      %v1403 = vsel %vm1383, %v1370, %v1117
      %v1405 = vsel %vm1383, %v1372, %v1119
      %v1407 = vsel %vm1383, %v1374, %v1121
      %v1409 = vsel %vm1383, %v1376, %v1123
      %v1411 = vsel %vm1383, %v1378, %v1125
      %v1413 = vsel %vm1383, %v1380, %v1127
      %v1415 = vsel %vm1383, %v1382, %v1129
      %vm1416 = vcmask 195584
      %v1418 = vsel %vm1416, %v1385, %v1134
      %v1420 = vsel %vm1416, %v1387, %v1136
      %v1422 = vsel %vm1416, %v1389, %v1138
      %v1424 = vsel %vm1416, %v1391, %v1140
      %v1426 = vsel %vm1416, %v1393, %v1142
      %v1428 = vsel %vm1416, %v1395, %v1144
      %v1430 = vsel %vm1416, %v1397, %v1146
      %v1432 = vsel %vm1416, %v1399, %v1148
      %v1434 = vsel %vm1416, %v1401, %v1150
      %v1436 = vsel %vm1416, %v1403, %v1152
      %v1438 = vsel %vm1416, %v1405, %v1154
      %v1440 = vsel %vm1416, %v1407, %v1156
      %v1442 = vsel %vm1416, %v1409, %v1158
      %v1444 = vsel %vm1416, %v1411, %v1160
      %v1446 = vsel %vm1416, %v1413, %v1162
      %v1448 = vsel %vm1416, %v1415, %v1164
      %vm1449 = vcmask 228352
      %v1451 = vsel %vm1449, %v1418, %v1169
      %v1453 = vsel %vm1449, %v1420, %v1171
      %v1455 = vsel %vm1449, %v1422, %v1173
      %v1457 = vsel %vm1449, %v1424, %v1175
      %v1459 = vsel %vm1449, %v1426, %v1177
      %v1461 = vsel %vm1449, %v1428, %v1179
      %v1463 = vsel %vm1449, %v1430, %v1181
      %v1465 = vsel %vm1449, %v1432, %v1183
      %v1467 = vsel %vm1449, %v1434, %v1185
      %v1469 = vsel %vm1449, %v1436, %v1187
      %v1471 = vsel %vm1449, %v1438, %v1189
      %v1473 = vsel %vm1449, %v1440, %v1191
      %v1475 = vsel %vm1449, %v1442, %v1193
      %v1477 = vsel %vm1449, %v1444, %v1195
      %v1479 = vsel %vm1449, %v1446, %v1197
      %v1481 = vsel %vm1449, %v1448, %v1199
      %vm1482 = vcmask 261120
      %v1484 = vsel %vm1482, %v1451, %v1204
      %v1486 = vsel %vm1482, %v1453, %v1206
      %v1488 = vsel %vm1482, %v1455, %v1208
      %v1490 = vsel %vm1482, %v1457, %v1210
      %v1492 = vsel %vm1482, %v1459, %v1212
      %v1494 = vsel %vm1482, %v1461, %v1214
      %v1496 = vsel %vm1482, %v1463, %v1216
      %v1498 = vsel %vm1482, %v1465, %v1218
      %v1500 = vsel %vm1482, %v1467, %v1220
      %v1502 = vsel %vm1482, %v1469, %v1222
      %v1504 = vsel %vm1482, %v1471, %v1224
      %v1506 = vsel %vm1482, %v1473, %v1226
      %v1508 = vsel %vm1482, %v1475, %v1228
      %v1510 = vsel %vm1482, %v1477, %v1230
      %v1512 = vsel %vm1482, %v1479, %v1232
      %v1514 = vsel %vm1482, %v1481, %v1234
      %v1515 = vld [vmem:[%s1] sm:$0xf]
      %v1516 = vld [vmem:[%s1 + $0x4] sm:$0xf]
      %v1517 = vld [vmem:[%s1 + $0x8] sm:$0xf]
      %v1518 = vld [vmem:[%s1 + $0xc] sm:$0xf]
      %v1519 = vld [vmem:[%s1 + $0x10] sm:$0x3]
      %v1525 = vunpack.c.l.b16 %v1515
      %v1526 = vunpack.c.l.b16 %v1516
      %v1527 = vunpack.c.l.b16 %v1517
      %v1528 = vunpack.c.l.b16 %v1518
      %v1529 = vunpack.c.l.b16 %v1519
      %v1530 = vpack.c.b16 %v1526, %v1525
      %v1531 = vpack.c.b16 %v1528, %v1527
      %v1532 = vpack.c.b16 %v1529, %v1529
      %vm1535 = vcmask 293888
      %v1536 = vsel %vm1535, %v1484, 0
      %v1538 = vsel %vm1535, %v1486, 0
      %v1540 = vsel %vm1535, %v1488, 0
      %v1542 = vsel %vm1535, %v1490, 0
      %v1544 = vsel %vm1535, %v1492, 0
      %v1546 = vsel %vm1535, %v1494, 0
      %v1548 = vsel %vm1535, %v1496, 0
      %v1550 = vsel %vm1535, %v1498, 0
      %v1552 = vsel %vm1535, %v1500, 0
      %v1554 = vsel %vm1535, %v1502, 0
      %v1556 = vsel %vm1535, %v1504, 0
      %v1558 = vsel %vm1535, %v1506, 0
      %v1560 = vsel %vm1535, %v1508, 0
      %v1562 = vsel %vm1535, %v1510, 0
      %v1564 = vsel %vm1535, %v1512, 0
      %v1566 = vsel %vm1535, %v1514, 0
      %vm1568 = vcmask 1041408
      %v1570 = vsel %vm1568, %v1532, 0
      %1572 = vmatprep.subr.bf16.mxu0 0
      %1573 = vmatpush1.bf16.msra.mxu0 %v1530
      %1574 = vmatprep.subr.bf16.mxu0 0
      %1575 = vmatpush1.bf16.msra.mxu0 %v1531
      %1576 = vmatprep.subr.bf16.mxu0 0
      %1577 = vmatpush1.bf16.msra.mxu0 %v1570
      %1578 = vmatprep.subr.bf16.mxu0 0
      %1579 = vmatpush1.bf16.msra.mxu0 0
      %1580 = vmatprep.subr.bf16.mxu0 0
      %1581 = vmatpush1.bf16.msra.mxu0 0
      %1582 = vmatprep.subr.bf16.mxu0 0
      %1583 = vmatpush1.bf16.msra.mxu0 0
      %1584 = vmatprep.subr.bf16.mxu0 0
      %1585 = vmatpush1.bf16.msra.mxu0 0
      %1586 = vmatprep.subr.bf16.mxu0 0
      %1587 = vmatpush1.bf16.msra.mxu0 0
      %1588 = vmatprep.subr.bf16.mxu0 0
      %1589 = vmatpush1.bf16.msra.mxu0 0
      %1590 = vmatprep.subr.bf16.mxu0 0
      %1591 = vmatpush1.bf16.msra.mxu0 0
      %1592 = vmatprep.subr.bf16.mxu0 0
      %1593 = vmatpush1.bf16.msra.mxu0 0
      %1594 = vmatprep.subr.bf16.mxu0 0
      %1595 = vmatpush1.bf16.msra.mxu0 0
      %1596 = vmatprep.subr.bf16.mxu0 0
      %1597 = vmatpush1.bf16.msra.mxu0 0
      %1598 = vmatprep.subr.bf16.mxu0 0
      %1599 = vmatpush1.bf16.msra.mxu0 0
      %1600 = vmatprep.subr.bf16.mxu0 0
      %1601 = vmatpush1.bf16.msra.mxu0 0
      %1602 = vmatprep.subr.bf16.mxu0 0
      %1603 = vmatpush1.bf16.msra.mxu0 0
      %1604 = vmatprep.mubr.bf16.mxu0 0
      %1605 = vmatmul.mubr.bf16.gmra.mrb[0].mxu0 %v1536
      %v1606 = vpop.f32.mrb[0].mxu0
      %v1607 = vadd.f32 0.0, %v1606
      %v1608 = vpop.f32.mrb[0].mxu0
      %v1609 = vpop.f32.mrb[0].mxu0
      %v1610 = vadd.f32 0.0, %v1609
      %v1611 = vpop.f32.mrb[0].mxu0
      %1612 = vmatprep.mubr.bf16.mxu0 0
      %1613 = vmatmul.mubr.bf16.gmra.mrb[0].mxu0 %v1538
      %v1614 = vpop.f32.mrb[0].mxu0
      %v1615 = vadd.f32 0.0, %v1614
      %v1616 = vpop.f32.mrb[0].mxu0
      %v1617 = vpop.f32.mrb[0].mxu0
      %v1618 = vadd.f32 0.0, %v1617
      %v1619 = vpop.f32.mrb[0].mxu0
      %1620 = vmatprep.mubr.bf16.mxu0 0
      %1621 = vmatmul.mubr.bf16.gmra.mrb[0].mxu0 %v1540
      %v1622 = vpop.f32.mrb[0].mxu0
      %v1623 = vadd.f32 0.0, %v1622
      %v1624 = vpop.f32.mrb[0].mxu0
      %v1625 = vpop.f32.mrb[0].mxu0
      %v1626 = vadd.f32 0.0, %v1625
      %v1627 = vpop.f32.mrb[0].mxu0
      %1628 = vmatprep.mubr.bf16.mxu0 0
      %1629 = vmatmul.mubr.bf16.gmra.mrb[0].mxu0 %v1542
      %v1630 = vpop.f32.mrb[0].mxu0
      %v1631 = vadd.f32 0.0, %v1630
      %v1632 = vpop.f32.mrb[0].mxu0
      %v1633 = vpop.f32.mrb[0].mxu0
      %v1634 = vadd.f32 0.0, %v1633
      %v1635 = vpop.f32.mrb[0].mxu0
      %1636 = vmatprep.mubr.bf16.mxu0 0
      %1637 = vmatmul.mubr.bf16.gmra.mrb[0].mxu0 %v1544
      %v1638 = vpop.f32.mrb[0].mxu0
      %v1639 = vadd.f32 0.0, %v1638
      %v1640 = vpop.f32.mrb[0].mxu0
      %v1641 = vpop.f32.mrb[0].mxu0
      %v1642 = vadd.f32 0.0, %v1641
      %v1643 = vpop.f32.mrb[0].mxu0
      %1644 = vmatprep.mubr.bf16.mxu0 0
      %1645 = vmatmul.mubr.bf16.gmra.mrb[0].mxu0 %v1546
      %v1646 = vpop.f32.mrb[0].mxu0
      %v1647 = vadd.f32 0.0, %v1646
      %v1648 = vpop.f32.mrb[0].mxu0
      %v1649 = vpop.f32.mrb[0].mxu0
      %v1650 = vadd.f32 0.0, %v1649
      %v1651 = vpop.f32.mrb[0].mxu0
      %1652 = vmatprep.mubr.bf16.mxu0 0
      %1653 = vmatmul.mubr.bf16.gmra.mrb[0].mxu0 %v1548
      %v1654 = vpop.f32.mrb[0].mxu0
      %v1655 = vadd.f32 0.0, %v1654
      %v1656 = vpop.f32.mrb[0].mxu0
      %v1657 = vpop.f32.mrb[0].mxu0
      %v1658 = vadd.f32 0.0, %v1657
      %v1659 = vpop.f32.mrb[0].mxu0
      %1660 = vmatprep.mubr.bf16.mxu0 0
      %1661 = vmatmul.mubr.bf16.gmra.mrb[0].mxu0 %v1550
      %v1662 = vpop.f32.mrb[0].mxu0
      %v1663 = vadd.f32 0.0, %v1662
      %v1664 = vpop.f32.mrb[0].mxu0
      %v1665 = vpop.f32.mrb[0].mxu0
      %v1666 = vadd.f32 0.0, %v1665
      %v1667 = vpop.f32.mrb[0].mxu0
      %1668 = vmatprep.mubr.bf16.mxu0 0
      %1669 = vmatmul.mubr.bf16.gmra.mrb[0].mxu0 %v1552
      %v1670 = vpop.f32.mrb[0].mxu0
      %v1671 = vadd.f32 0.0, %v1670
      %v1672 = vpop.f32.mrb[0].mxu0
      %v1673 = vpop.f32.mrb[0].mxu0
      %v1674 = vadd.f32 0.0, %v1673
      %v1675 = vpop.f32.mrb[0].mxu0
      %1676 = vmatprep.mubr.bf16.mxu0 0
      %1677 = vmatmul.mubr.bf16.gmra.mrb[0].mxu0 %v1554
      %v1678 = vpop.f32.mrb[0].mxu0
      %v1679 = vadd.f32 0.0, %v1678
      %v1680 = vpop.f32.mrb[0].mxu0
      %v1681 = vpop.f32.mrb[0].mxu0
      %v1682 = vadd.f32 0.0, %v1681
      %v1683 = vpop.f32.mrb[0].mxu0
      %1684 = vmatprep.mubr.bf16.mxu0 0
      %1685 = vmatmul.mubr.bf16.gmra.mrb[0].mxu0 %v1556
      %v1686 = vpop.f32.mrb[0].mxu0
      %v1687 = vadd.f32 0.0, %v1686
      %v1688 = vpop.f32.mrb[0].mxu0
      %v1689 = vpop.f32.mrb[0].mxu0
      %v1690 = vadd.f32 0.0, %v1689
      %v1691 = vpop.f32.mrb[0].mxu0
      %1692 = vmatprep.mubr.bf16.mxu0 0
      %1693 = vmatmul.mubr.bf16.gmra.mrb[0].mxu0 %v1558
      %v1694 = vpop.f32.mrb[0].mxu0
      %v1695 = vadd.f32 0.0, %v1694
      %v1696 = vpop.f32.mrb[0].mxu0
      %v1697 = vpop.f32.mrb[0].mxu0
      %v1698 = vadd.f32 0.0, %v1697
      %v1699 = vpop.f32.mrb[0].mxu0
      %1700 = vmatprep.mubr.bf16.mxu0 0
      %1701 = vmatmul.mubr.bf16.gmra.mrb[0].mxu0 %v1560
      %v1702 = vpop.f32.mrb[0].mxu0
      %v1703 = vadd.f32 0.0, %v1702
      %v1704 = vpop.f32.mrb[0].mxu0
      %v1705 = vpop.f32.mrb[0].mxu0
      %v1706 = vadd.f32 0.0, %v1705
      %v1707 = vpop.f32.mrb[0].mxu0
      %1708 = vmatprep.mubr.bf16.mxu0 0
      %1709 = vmatmul.mubr.bf16.gmra.mrb[0].mxu0 %v1562
      %v1710 = vpop.f32.mrb[0].mxu0
      %v1711 = vadd.f32 0.0, %v1710
      %v1712 = vpop.f32.mrb[0].mxu0
      %v1713 = vpop.f32.mrb[0].mxu0
      %v1714 = vadd.f32 0.0, %v1713
      %v1715 = vpop.f32.mrb[0].mxu0
      %1716 = vmatprep.mubr.bf16.mxu0 0
      %1717 = vmatmul.mubr.bf16.gmra.mrb[0].mxu0 %v1564
      %v1718 = vpop.f32.mrb[0].mxu0
      %v1719 = vadd.f32 0.0, %v1718
      %v1720 = vpop.f32.mrb[0].mxu0
      %v1721 = vpop.f32.mrb[0].mxu0
      %v1722 = vadd.f32 0.0, %v1721
      %v1723 = vpop.f32.mrb[0].mxu0
      %1724 = vmatprep.mubr.bf16.mxu0 0
      %1725 = vmatmul.mubr.bf16.gmra.mrb[0].mxu0 %v1566
      %v1726 = vpop.f32.mrb[0].mxu0
      %v1727 = vadd.f32 0.0, %v1726
      %v1728 = vpop.f32.mrb[0].mxu0
      %v1729 = vpop.f32.mrb[0].mxu0
      %v1730 = vadd.f32 0.0, %v1729
      %v1731 = vpop.f32.mrb[0].mxu0
      %1732 = vdwg.mxu0
      %v1733 = vsel %vm1235, %v1607, 0.0
      %v1734 = vsel %vm1235, %v1610, 0.0
      %v1735 = vadd.f32 %v1733, %v1734
      %v1736 = vsel %vm1235, %v1615, 0.0
      %v1737 = vadd.f32 %v1735, %v1736
      %v1738 = vsel %vm1235, %v1618, 0.0
      %v1739 = vadd.f32 %v1737, %v1738
      %v1740 = vsel %vm1235, %v1623, 0.0
      %v1741 = vadd.f32 %v1739, %v1740
      %v1742 = vsel %vm1235, %v1626, 0.0
      %v1743 = vadd.f32 %v1741, %v1742
      %v1744 = vsel %vm1235, %v1631, 0.0
      %v1745 = vadd.f32 %v1743, %v1744
      %v1746 = vsel %vm1235, %v1634, 0.0
      %v1747 = vadd.f32 %v1745, %v1746
      %v1748 = vsel %vm1235, %v1639, 0.0
      %v1749 = vadd.f32 %v1747, %v1748
      %v1750 = vsel %vm1235, %v1642, 0.0
      %v1751 = vadd.f32 %v1749, %v1750
      %v1752 = vsel %vm1235, %v1647, 0.0
      %v1753 = vadd.f32 %v1751, %v1752
      %v1754 = vsel %vm1235, %v1650, 0.0
      %v1755 = vadd.f32 %v1753, %v1754
      %v1756 = vsel %vm1235, %v1655, 0.0
      %v1757 = vadd.f32 %v1755, %v1756
      %v1758 = vsel %vm1235, %v1658, 0.0
      %v1759 = vadd.f32 %v1757, %v1758
      %v1760 = vsel %vm1235, %v1663, 0.0
      %v1761 = vadd.f32 %v1759, %v1760
      %v1762 = vsel %vm1235, %v1666, 0.0
      %v1763 = vadd.f32 %v1761, %v1762
      %v1764 = vsel %vm1235, %v1671, 0.0
      %v1765 = vadd.f32 %v1763, %v1764
      %v1766 = vsel %vm1235, %v1674, 0.0
      %v1767 = vadd.f32 %v1765, %v1766
      %v1768 = vsel %vm1235, %v1679, 0.0
      %v1769 = vadd.f32 %v1767, %v1768
      %v1770 = vsel %vm1235, %v1682, 0.0
      %v1771 = vadd.f32 %v1769, %v1770
      %v1772 = vsel %vm1235, %v1687, 0.0
      %v1773 = vadd.f32 %v1771, %v1772
      %v1774 = vsel %vm1235, %v1690, 0.0
      %v1775 = vadd.f32 %v1773, %v1774
      %v1776 = vsel %vm1235, %v1695, 0.0
      %v1777 = vadd.f32 %v1775, %v1776
      %v1778 = vsel %vm1235, %v1698, 0.0
      %v1779 = vadd.f32 %v1777, %v1778
      %v1780 = vsel %vm1235, %v1703, 0.0
      %v1781 = vadd.f32 %v1779, %v1780
      %v1782 = vsel %vm1235, %v1706, 0.0
      %v1783 = vadd.f32 %v1781, %v1782
      %v1784 = vsel %vm1235, %v1711, 0.0
      %v1785 = vadd.f32 %v1783, %v1784
      %v1786 = vsel %vm1235, %v1714, 0.0
      %v1787 = vadd.f32 %v1785, %v1786
      %v1788 = vsel %vm1235, %v1719, 0.0
      %v1789 = vadd.f32 %v1787, %v1788
      %v1790 = vsel %vm1235, %v1722, 0.0
      %v1791 = vadd.f32 %v1789, %v1790
      %v1792 = vsel %vm1235, %v1727, 0.0
      %v1793 = vadd.f32 %v1791, %v1792
      %v1794 = vsel %vm1235, %v1730, 0.0
      %v1795 = vadd.f32 %v1793, %v1794
      %v1796 = vrot.slane %v1795, 4
      %v1797 = vadd.f32 %v1795, %v1796
      %v1798 = vrot.slane %v1797, 2
      %v1799 = vadd.f32 %v1797, %v1798
      %v1800 = vrot.slane %v1799, 1
      %v1801 = vadd.f32 %v1799, %v1800
      %v1802 = vrcp.pop 256.0
      %v1803 = vmul.f32 %v1801, %v1802
      %v1804 = vsub.f32 %v1607, %v1803
      %v1805 = vsub.f32 %v1610, %v1803
      %v1806 = vsub.f32 %v1615, %v1803
      %v1807 = vsub.f32 %v1618, %v1803
      %v1808 = vsub.f32 %v1623, %v1803
      %v1809 = vsub.f32 %v1626, %v1803
      %v1810 = vsub.f32 %v1631, %v1803
      %v1811 = vsub.f32 %v1634, %v1803
      %v1812 = vsub.f32 %v1639, %v1803
      %v1813 = vsub.f32 %v1642, %v1803
      %v1814 = vsub.f32 %v1647, %v1803
      %v1815 = vsub.f32 %v1650, %v1803
      %v1816 = vsub.f32 %v1655, %v1803
      %v1817 = vsub.f32 %v1658, %v1803
      %v1818 = vsub.f32 %v1663, %v1803
      %v1819 = vsub.f32 %v1666, %v1803
      %v1820 = vsub.f32 %v1671, %v1803
      %v1821 = vsub.f32 %v1674, %v1803
      %v1822 = vsub.f32 %v1679, %v1803
      %v1823 = vsub.f32 %v1682, %v1803
      %v1824 = vsub.f32 %v1687, %v1803
      %v1825 = vsub.f32 %v1690, %v1803
      %v1826 = vsub.f32 %v1695, %v1803
      %v1827 = vsub.f32 %v1698, %v1803
      %v1828 = vsub.f32 %v1703, %v1803
      %v1829 = vsub.f32 %v1706, %v1803
      %v1830 = vsub.f32 %v1711, %v1803
      %v1831 = vsub.f32 %v1714, %v1803
      %v1832 = vsub.f32 %v1719, %v1803
      %v1833 = vsub.f32 %v1722, %v1803
      %v1834 = vsub.f32 %v1727, %v1803
      %v1835 = vsub.f32 %v1730, %v1803
      %v1836 = vmul.f32 %v1804, %v1804
      %v1837 = vmul.f32 %v1805, %v1805
      %v1838 = vmul.f32 %v1806, %v1806
      %v1839 = vmul.f32 %v1807, %v1807
      %v1840 = vmul.f32 %v1808, %v1808
      %v1841 = vmul.f32 %v1809, %v1809
      %v1842 = vmul.f32 %v1810, %v1810
      %v1843 = vmul.f32 %v1811, %v1811
      %v1844 = vmul.f32 %v1812, %v1812
      %v1845 = vmul.f32 %v1813, %v1813
      %v1846 = vmul.f32 %v1814, %v1814
      %v1847 = vmul.f32 %v1815, %v1815
      %v1848 = vmul.f32 %v1816, %v1816
      %v1849 = vmul.f32 %v1817, %v1817
      %v1850 = vmul.f32 %v1818, %v1818
      %v1851 = vmul.f32 %v1819, %v1819
      %v1852 = vmul.f32 %v1820, %v1820
      %v1853 = vmul.f32 %v1821, %v1821
      %v1854 = vmul.f32 %v1822, %v1822
      %v1855 = vmul.f32 %v1823, %v1823
      %v1856 = vmul.f32 %v1824, %v1824
      %v1857 = vmul.f32 %v1825, %v1825
      %v1858 = vmul.f32 %v1826, %v1826
      %v1859 = vmul.f32 %v1827, %v1827
      %v1860 = vmul.f32 %v1828, %v1828
      %v1861 = vmul.f32 %v1829, %v1829
      %v1862 = vmul.f32 %v1830, %v1830
      %v1863 = vmul.f32 %v1831, %v1831
      %v1864 = vmul.f32 %v1832, %v1832
      %v1865 = vmul.f32 %v1833, %v1833
      %v1866 = vmul.f32 %v1834, %v1834
      %v1867 = vmul.f32 %v1835, %v1835
      %v1868 = vsel %vm1235, %v1836, 0.0
      %v1869 = vsel %vm1235, %v1837, 0.0
      %v1870 = vadd.f32 %v1868, %v1869
      %v1871 = vsel %vm1235, %v1838, 0.0
      %v1872 = vadd.f32 %v1870, %v1871
      %v1873 = vsel %vm1235, %v1839, 0.0
      %v1874 = vadd.f32 %v1872, %v1873
      %v1875 = vsel %vm1235, %v1840, 0.0
      %v1876 = vadd.f32 %v1874, %v1875
      %v1877 = vsel %vm1235, %v1841, 0.0
      %v1878 = vadd.f32 %v1876, %v1877
      %v1879 = vsel %vm1235, %v1842, 0.0
      %v1880 = vadd.f32 %v1878, %v1879
      %v1881 = vsel %vm1235, %v1843, 0.0
      %v1882 = vadd.f32 %v1880, %v1881
      %v1883 = vsel %vm1235, %v1844, 0.0
      %v1884 = vadd.f32 %v1882, %v1883
      %v1885 = vsel %vm1235, %v1845, 0.0
      %v1886 = vadd.f32 %v1884, %v1885
      %v1887 = vsel %vm1235, %v1846, 0.0
      %v1888 = vadd.f32 %v1886, %v1887
      %v1889 = vsel %vm1235, %v1847, 0.0
      %v1890 = vadd.f32 %v1888, %v1889
      %v1891 = vsel %vm1235, %v1848, 0.0
      %v1892 = vadd.f32 %v1890, %v1891
      %v1893 = vsel %vm1235, %v1849, 0.0
      %v1894 = vadd.f32 %v1892, %v1893
      %v1895 = vsel %vm1235, %v1850, 0.0
      %v1896 = vadd.f32 %v1894, %v1895
      %v1897 = vsel %vm1235, %v1851, 0.0
      %v1898 = vadd.f32 %v1896, %v1897
      %v1899 = vsel %vm1235, %v1852, 0.0
      %v1900 = vadd.f32 %v1898, %v1899
      %v1901 = vsel %vm1235, %v1853, 0.0
      %v1902 = vadd.f32 %v1900, %v1901
      %v1903 = vsel %vm1235, %v1854, 0.0
      %v1904 = vadd.f32 %v1902, %v1903
      %v1905 = vsel %vm1235, %v1855, 0.0
      %v1906 = vadd.f32 %v1904, %v1905
      %v1907 = vsel %vm1235, %v1856, 0.0
      %v1908 = vadd.f32 %v1906, %v1907
      %v1909 = vsel %vm1235, %v1857, 0.0
      %v1910 = vadd.f32 %v1908, %v1909
      %v1911 = vsel %vm1235, %v1858, 0.0
      %v1912 = vadd.f32 %v1910, %v1911
      %v1913 = vsel %vm1235, %v1859, 0.0
      %v1914 = vadd.f32 %v1912, %v1913
      %v1915 = vsel %vm1235, %v1860, 0.0
      %v1916 = vadd.f32 %v1914, %v1915
      %v1917 = vsel %vm1235, %v1861, 0.0
      %v1918 = vadd.f32 %v1916, %v1917
      %v1919 = vsel %vm1235, %v1862, 0.0
      %v1920 = vadd.f32 %v1918, %v1919
      %v1921 = vsel %vm1235, %v1863, 0.0
      %v1922 = vadd.f32 %v1920, %v1921
      %v1923 = vsel %vm1235, %v1864, 0.0
      %v1924 = vadd.f32 %v1922, %v1923
      %v1925 = vsel %vm1235, %v1865, 0.0
      %v1926 = vadd.f32 %v1924, %v1925
      %v1927 = vsel %vm1235, %v1866, 0.0
      %v1928 = vadd.f32 %v1926, %v1927
      %v1929 = vsel %vm1235, %v1867, 0.0
      %v1930 = vadd.f32 %v1928, %v1929
      %v1931 = vrot.slane %v1930, 4
      %v1932 = vadd.f32 %v1930, %v1931
      %v1933 = vrot.slane %v1932, 2
      %v1934 = vadd.f32 %v1932, %v1933
      %v1935 = vrot.slane %v1934, 1
      %v1936 = vadd.f32 %v1934, %v1935
      %v1937 = vmul.f32 %v1936, %v1802
      %v1938 = vadd.f32 %v1937, 1e-05
      %v1939 = vrsqrt.pop %v1938
      %v1940 = vmul.f32 %v1804, %v1939
      %v1941 = vmul.f32 %v1805, %v1939
      %v1942 = vmul.f32 %v1806, %v1939
      %v1943 = vmul.f32 %v1807, %v1939
      %v1944 = vmul.f32 %v1808, %v1939
      %v1945 = vmul.f32 %v1809, %v1939
      %v1946 = vmul.f32 %v1810, %v1939
      %v1947 = vmul.f32 %v1811, %v1939
      %v1948 = vmul.f32 %v1812, %v1939
      %v1949 = vmul.f32 %v1813, %v1939
      %v1950 = vmul.f32 %v1814, %v1939
      %v1951 = vmul.f32 %v1815, %v1939
      %v1952 = vmul.f32 %v1816, %v1939
      %v1953 = vmul.f32 %v1817, %v1939
      %v1954 = vmul.f32 %v1818, %v1939
      %v1955 = vmul.f32 %v1819, %v1939
      %v1956 = vmul.f32 %v1820, %v1939
      %v1957 = vmul.f32 %v1821, %v1939
      %v1958 = vmul.f32 %v1822, %v1939
      %v1959 = vmul.f32 %v1823, %v1939
      %v1960 = vmul.f32 %v1824, %v1939
      %v1961 = vmul.f32 %v1825, %v1939
      %v1962 = vmul.f32 %v1826, %v1939
      %v1963 = vmul.f32 %v1827, %v1939
      %v1964 = vmul.f32 %v1828, %v1939
      %v1965 = vmul.f32 %v1829, %v1939
      %v1966 = vmul.f32 %v1830, %v1939
      %v1967 = vmul.f32 %v1831, %v1939
      %v1968 = vmul.f32 %v1832, %v1939
      %v1969 = vmul.f32 %v1833, %v1939
      %v1970 = vmul.f32 %v1834, %v1939
      %v1971 = vmul.f32 %v1835, %v1939
      %vm1972 = vcmp.ge.f32.partialorder %v1940, 0.0
      %vm1973 = vcmp.ge.f32.partialorder %v1941, 0.0
      %vm1974 = vcmp.ge.f32.partialorder %v1942, 0.0
      %vm1975 = vcmp.ge.f32.partialorder %v1943, 0.0
      %vm1976 = vcmp.ge.f32.partialorder %v1944, 0.0
      %vm1977 = vcmp.ge.f32.partialorder %v1945, 0.0
      %vm1978 = vcmp.ge.f32.partialorder %v1946, 0.0
      %vm1979 = vcmp.ge.f32.partialorder %v1947, 0.0
      %vm1980 = vcmp.ge.f32.partialorder %v1948, 0.0
      %vm1981 = vcmp.ge.f32.partialorder %v1949, 0.0
      %vm1982 = vcmp.ge.f32.partialorder %v1950, 0.0
      %vm1983 = vcmp.ge.f32.partialorder %v1951, 0.0
      %vm1984 = vcmp.ge.f32.partialorder %v1952, 0.0
      %vm1985 = vcmp.ge.f32.partialorder %v1953, 0.0
      %vm1986 = vcmp.ge.f32.partialorder %v1954, 0.0
      %vm1987 = vcmp.ge.f32.partialorder %v1955, 0.0
      %vm1988 = vcmp.ge.f32.partialorder %v1956, 0.0
      %vm1989 = vcmp.ge.f32.partialorder %v1957, 0.0
      %vm1990 = vcmp.ge.f32.partialorder %v1958, 0.0
      %vm1991 = vcmp.ge.f32.partialorder %v1959, 0.0
      %vm1992 = vcmp.ge.f32.partialorder %v1960, 0.0
      %vm1993 = vcmp.ge.f32.partialorder %v1961, 0.0
      %vm1994 = vcmp.ge.f32.partialorder %v1962, 0.0
      %vm1995 = vcmp.ge.f32.partialorder %v1963, 0.0
      %vm1996 = vcmp.ge.f32.partialorder %v1964, 0.0
      %vm1997 = vcmp.ge.f32.partialorder %v1965, 0.0
      %vm1998 = vcmp.ge.f32.partialorder %v1966, 0.0
      %vm1999 = vcmp.ge.f32.partialorder %v1967, 0.0
      %vm2000 = vcmp.ge.f32.partialorder %v1968, 0.0
      %vm2001 = vcmp.ge.f32.partialorder %v1969, 0.0
      %vm2002 = vcmp.ge.f32.partialorder %v1970, 0.0
      %vm2003 = vcmp.ge.f32.partialorder %v1971, 0.0
      %v2004 = vmul.f32 %v1940, 0.2
      %v2005 = vmul.f32 %v1941, 0.2
      %v2006 = vmul.f32 %v1942, 0.2
      %v2007 = vmul.f32 %v1943, 0.2
      %v2008 = vmul.f32 %v1944, 0.2
      %v2009 = vmul.f32 %v1945, 0.2
      %v2010 = vmul.f32 %v1946, 0.2
      %v2011 = vmul.f32 %v1947, 0.2
      %v2012 = vmul.f32 %v1948, 0.2
      %v2013 = vmul.f32 %v1949, 0.2
      %v2014 = vmul.f32 %v1950, 0.2
      %v2015 = vmul.f32 %v1951, 0.2
      %v2016 = vmul.f32 %v1952, 0.2
      %v2017 = vmul.f32 %v1953, 0.2
      %v2018 = vmul.f32 %v1954, 0.2
      %v2019 = vmul.f32 %v1955, 0.2
      %v2020 = vmul.f32 %v1956, 0.2
      %v2021 = vmul.f32 %v1957, 0.2
      %v2022 = vmul.f32 %v1958, 0.2
      %v2023 = vmul.f32 %v1959, 0.2
      %v2024 = vmul.f32 %v1960, 0.2
      %v2025 = vmul.f32 %v1961, 0.2
      %v2026 = vmul.f32 %v1962, 0.2
      %v2027 = vmul.f32 %v1963, 0.2
      %v2028 = vmul.f32 %v1964, 0.2
      %v2029 = vmul.f32 %v1965, 0.2
      %v2030 = vmul.f32 %v1966, 0.2
      %v2031 = vmul.f32 %v1967, 0.2
      %v2032 = vmul.f32 %v1968, 0.2
      %v2033 = vmul.f32 %v1969, 0.2
      %v2034 = vmul.f32 %v1970, 0.2
      %v2035 = vmul.f32 %v1971, 0.2
      %v2036 = vsel %vm1972, %v1940, %v2004
      %v2037 = vsel %vm1973, %v1941, %v2005
      %v2038 = vsel %vm1974, %v1942, %v2006
      %v2039 = vsel %vm1975, %v1943, %v2007
      %v2040 = vsel %vm1976, %v1944, %v2008
      %v2041 = vsel %vm1977, %v1945, %v2009
      %v2042 = vsel %vm1978, %v1946, %v2010
      %v2043 = vsel %vm1979, %v1947, %v2011
      %v2044 = vsel %vm1980, %v1948, %v2012
      %v2045 = vsel %vm1981, %v1949, %v2013
      %v2046 = vsel %vm1982, %v1950, %v2014
      %v2047 = vsel %vm1983, %v1951, %v2015
      %v2048 = vsel %vm1984, %v1952, %v2016
      %v2049 = vsel %vm1985, %v1953, %v2017
      %v2050 = vsel %vm1986, %v1954, %v2018
      %v2051 = vsel %vm1987, %v1955, %v2019
      %v2052 = vsel %vm1988, %v1956, %v2020
      %v2053 = vsel %vm1989, %v1957, %v2021
      %v2054 = vsel %vm1990, %v1958, %v2022
      %v2055 = vsel %vm1991, %v1959, %v2023
      %v2056 = vsel %vm1992, %v1960, %v2024
      %v2057 = vsel %vm1993, %v1961, %v2025
      %v2058 = vsel %vm1994, %v1962, %v2026
      %v2059 = vsel %vm1995, %v1963, %v2027
      %v2060 = vsel %vm1996, %v1964, %v2028
      %v2061 = vsel %vm1997, %v1965, %v2029
      %v2062 = vsel %vm1998, %v1966, %v2030
      %v2063 = vsel %vm1999, %v1967, %v2031
      %v2064 = vsel %vm2000, %v1968, %v2032
      %v2065 = vsel %vm2001, %v1969, %v2033
      %v2066 = vsel %vm2002, %v1970, %v2034
      %v2067 = vsel %vm2003, %v1971, %v2035
      %2068 = vst.msk [vmem:[%s143] sm:$0xff] %vm1235, %v2036
      %2069 = vst.msk [vmem:[%s143 + $0x8] sm:$0xff] %vm1235, %v2037
      %2070 = vst.msk [vmem:[%s143 + $0x10] sm:$0xff] %vm1235, %v2038
      %2071 = vst.msk [vmem:[%s143 + $0x18] sm:$0xff] %vm1235, %v2039
      %2072 = vst.msk [vmem:[%s143 + $0x20] sm:$0xff] %vm1235, %v2040
      %2073 = vst.msk [vmem:[%s143 + $0x28] sm:$0xff] %vm1235, %v2041
      %2074 = vst.msk [vmem:[%s143 + $0x30] sm:$0xff] %vm1235, %v2042
      %2075 = vst.msk [vmem:[%s143 + $0x38] sm:$0xff] %vm1235, %v2043
      %2076 = vst.msk [vmem:[%s143 + $0x40] sm:$0xff] %vm1235, %v2044
      %2077 = vst.msk [vmem:[%s143 + $0x48] sm:$0xff] %vm1235, %v2045
      %2078 = vst.msk [vmem:[%s143 + $0x50] sm:$0xff] %vm1235, %v2046
      %2079 = vst.msk [vmem:[%s143 + $0x58] sm:$0xff] %vm1235, %v2047
      %2080 = vst.msk [vmem:[%s143 + $0x60] sm:$0xff] %vm1235, %v2048
      %2081 = vst.msk [vmem:[%s143 + $0x68] sm:$0xff] %vm1235, %v2049
      %2082 = vst.msk [vmem:[%s143 + $0x70] sm:$0xff] %vm1235, %v2050
      %2083 = vst.msk [vmem:[%s143 + $0x78] sm:$0xff] %vm1235, %v2051
      %2084 = vst.msk [vmem:[%s143 + $0x80] sm:$0xff] %vm1235, %v2052
      %2085 = vst.msk [vmem:[%s143 + $0x88] sm:$0xff] %vm1235, %v2053
      %2086 = vst.msk [vmem:[%s143 + $0x90] sm:$0xff] %vm1235, %v2054
      %2087 = vst.msk [vmem:[%s143 + $0x98] sm:$0xff] %vm1235, %v2055
      %2088 = vst.msk [vmem:[%s143 + $0xa0] sm:$0xff] %vm1235, %v2056
      %2089 = vst.msk [vmem:[%s143 + $0xa8] sm:$0xff] %vm1235, %v2057
      %2090 = vst.msk [vmem:[%s143 + $0xb0] sm:$0xff] %vm1235, %v2058
      %2091 = vst.msk [vmem:[%s143 + $0xb8] sm:$0xff] %vm1235, %v2059
      %2092 = vst.msk [vmem:[%s143 + $0xc0] sm:$0xff] %vm1235, %v2060
      %2093 = vst.msk [vmem:[%s143 + $0xc8] sm:$0xff] %vm1235, %v2061
      %2094 = vst.msk [vmem:[%s143 + $0xd0] sm:$0xff] %vm1235, %v2062
      %2095 = vst.msk [vmem:[%s143 + $0xd8] sm:$0xff] %vm1235, %v2063
      %2096 = vst.msk [vmem:[%s143 + $0xe0] sm:$0xff] %vm1235, %v2064
      %2097 = vst.msk [vmem:[%s143 + $0xe8] sm:$0xff] %vm1235, %v2065
      %2098 = vst.msk [vmem:[%s143 + $0xf0] sm:$0xff] %vm1235, %v2066
      %2099 = vst.msk [vmem:[%s143 + $0xf8] sm:$0xff] %vm1235, %v2067
      %p2100 = scmp.lt.s32.totalorder %s13, 1
      %s2101 = scalar_select %p2100, %s13, 1
      %s2102 = smul.addr %s2101, 32
      %s2103 = smul.addr %s2102, 8
      %s2104 = scalar_lea.vmem %s2, %s2103
      // Predicated region
      $region29: #{unet_up_forward.5} parent=27 // pred_check
        %p2105 = pneg %p78
      $region30: #{unet_up_forward.5} parent=27 // pred_check_branch
        %2107 = sbr.rel (%p2105) target = $region32
      $region31: #{unet_up_forward.5} parent=27 // pred_region
        _
      $region32: #{unet_up_forward.5} parent=27 // pred_fallthru
        _
    $region28: #{unet_up_forward.5} parent=5 // pred_fallthru
      _
    %p2108 = scmp.le.s32.totalorder 2, %s8
    // Predicated region
    $region33: #{unet_up_forward.5} parent=5 // pred_check
      %p2109 = pneg %p2108
    $region34: #{unet_up_forward.5} parent=5 // pred_check_branch
      %2111 = sbr.rel (%p2109) target = $region36
    $region35: #{unet_up_forward.5} parent=5 // pred_region
      %s2112 = ssub.s32 %s8, 2
      // Predicated region
      $region37: #{unet_up_forward.5} parent=35 // pred_check
        %p2113 = pneg %p84
      $region38: #{unet_up_forward.5} parent=35 // pred_check_branch
        %2115 = sbr.rel (%p2113) target = $region40
      $region39: #{unet_up_forward.5} parent=35 // pred_region
        %p2116 = scmp.lt.s32.totalorder %s14, 1
        %s2117 = scalar_select %p2116, %s14, 1
        %s2118 = smul.addr %s2117, 32
        %s2119 = smul.addr %s2118, 8
        %s2120 = scalar_lea.vmem %s2, %s2119
      $region40: #{unet_up_forward.5} parent=35 // pred_fallthru
        _
    $region36: #{unet_up_forward.5} parent=5 // pred_fallthru
      _
  $region6: #{unet_up_forward.5} parent=0 // loop_footer
    %s12 = sadd.s32 1, %s8
  $region7: #{unet_up_forward.5} parent=0 // loop_footer_branch
    %7 = sbr.rel target = $region3
  $region8: #{unet_up_forward.5} parent=0 // loop_exit
    _

// kernel: unet_up_forward.4
$region0: #{unet_up_forward.4}
  #allocation0 [shape = 'u32[]', space=smem, size = 0x4, offset = 0x4, fixed_abs, tag = 'smem constant byte address 0x4 - core index']
  #allocation1 [shape = 'u32[144,128]{1,0:T(1,128)}', space=vmem, size = 0x12000, scoped, tag = 'internal scratch']
  %s0 = inlined_call_operand.vmem [shape: bf16[2,18,18,4], index: 0, kind: input, shape index: {}]
  %s1 = inlined_call_operand.vmem [shape: bf16[2,18,18,4], index: 1, kind: input, shape index: {}]
  %s2 = inlined_call_operand.vmem [shape: bf16[36,4], index: 2, kind: input, shape index: {}]
  %s3 = inlined_call_operand.vmem [shape: bf16[36,4], index: 3, kind: input, shape index: {}]
  %s4 = inlined_call_operand.vmem [shape: bf16[2,256,4], index: 4, kind: output, shape index: {}]
  %s5 = sld [smem:[#allocation0]]
  $region49: #{unet_up_forward.4} parent=0
    _
  %s7 = ssub.s32 1, %s5
  %s8 = scalar_select 0, %s7, %s5
  loop: start=0, step=1, limit=4
  $region2: #{unet_up_forward.4} parent=0 // loop_pre_header
    _
  $region3: #{unet_up_forward.4} parent=0 // loop_header
    %s10 = sphi 0, %s14
    %p11 = scmp.ge.s32.totalorder %s10, 4
    %s20 = sphi 0, %s22
    %s23 = sphi 0, %s20
    %s24 = sphi 0, %s23
    %s40 = sphi 0, %s24
    %s46 = sphi 0, %s48
    %s49 = sphi 0, %s46
    %s50 = sphi 0, %s49
    %s66 = sphi 0, %s50
    %s70 = sphi 0, %s70
    %s72 = sphi 0, %s70
    %s73 = sphi 0, %s72
    %s87 = sphi 0, %s73
    %s91 = sphi 0, %s91
    %s93 = sphi 0, %s91
    %s94 = sphi 0, %s93
    %s108 = sphi 0, %s94
    %s114 = sphi 0, %s116
    %s117 = sphi 0, %s114
    %s118 = sphi 0, %s117
    %s134 = sphi 0, %s118
  $region4: #{unet_up_forward.4} parent=0 // loop_header_branch
    %13 = sbr.rel (%p11) target = $region8
  $region5: #{unet_up_forward.4} parent=0 // loop_body
    %s15 = ssub.s32 %s10, 1
    %s16 = ssub.s32 %s10, 2
    %s17 = sadd.s32 %s10, 1
    %s18 = ssub.s32 %s10, %s17
    %p19 = scmp.eq.s32.totalorder %s18, 0
    %s21 = sadd.s32 %s20, 1
    %s22 = scalar_select %p19, %s20, %s21
    %p25 = pneg %p19
    %p26 = scmp.eq.s32.totalorder %s10, 1
    %p27 = por %p25, %p26
    %p28 = scmp.ne.s32.totalorder %s20, %s23
    %p29 = scmp.eq.s32.totalorder %s10, 0
    %p30 = por %p28, %p29
    %p31 = scmp.ne.s32.totalorder %s20, %s23
    %p32 = scmp.eq.s32.totalorder %s15, 1
    %p33 = por %p31, %p32
    %p34 = scmp.ne.s32.totalorder %s23, %s24
    %p35 = scmp.eq.s32.totalorder %s15, 0
    %p36 = por %p34, %p35
    %p37 = scmp.ne.s32.totalorder %s23, %s24
    %p38 = scmp.eq.s32.totalorder %s16, 1
    %p39 = por %p37, %p38
    %p41 = scmp.ne.s32.totalorder %s24, %s40
    %p42 = scmp.eq.s32.totalorder %s16, 0
    %p43 = por %p41, %p42
    %s44 = ssub.s32 %s10, %s17
    %p45 = scmp.eq.s32.totalorder %s44, 0
    %s47 = sadd.s32 %s46, 1
    %s48 = scalar_select %p45, %s46, %s47
    %p51 = pneg %p45
    %p52 = scmp.eq.s32.totalorder %s10, 1
    %p53 = por %p51, %p52
    %p54 = scmp.ne.s32.totalorder %s46, %s49
    %p55 = scmp.eq.s32.totalorder %s10, 0
    %p56 = por %p54, %p55
    %p57 = scmp.ne.s32.totalorder %s46, %s49
    %p58 = scmp.eq.s32.totalorder %s15, 1
    %p59 = por %p57, %p58
    %p60 = scmp.ne.s32.totalorder %s49, %s50
    %p61 = scmp.eq.s32.totalorder %s15, 0
    %p62 = por %p60, %p61
    %p63 = scmp.ne.s32.totalorder %s49, %s50
    %p64 = scmp.eq.s32.totalorder %s16, 1
    %p65 = por %p63, %p64
    %p67 = scmp.ne.s32.totalorder %s50, %s66
    %p68 = scmp.eq.s32.totalorder %s16, 0
    %p69 = por %p67, %p68
    %s71 = sadd.s32 %s70, 1
    %p74 = scmp.eq.s32.totalorder %s10, 1
    %p75 = scmp.ne.s32.totalorder %s70, %s72
    %p76 = scmp.eq.s32.totalorder %s10, 0
    %p77 = por %p75, %p76
    %p78 = scmp.ne.s32.totalorder %s70, %s72
    %p79 = scmp.eq.s32.totalorder %s15, 1
    %p80 = por %p78, %p79
    %p81 = scmp.ne.s32.totalorder %s72, %s73
    %p82 = scmp.eq.s32.totalorder %s15, 0
    %p83 = por %p81, %p82
    %p84 = scmp.ne.s32.totalorder %s72, %s73
    %p85 = scmp.eq.s32.totalorder %s16, 1
    %p86 = por %p84, %p85
    %p88 = scmp.ne.s32.totalorder %s73, %s87
    %p89 = scmp.eq.s32.totalorder %s16, 0
    %p90 = por %p88, %p89
    %s92 = sadd.s32 %s91, 1
    %p95 = scmp.eq.s32.totalorder %s10, 1
    %p96 = scmp.ne.s32.totalorder %s91, %s93
    %p97 = scmp.eq.s32.totalorder %s10, 0
    %p98 = por %p96, %p97
    %p99 = scmp.ne.s32.totalorder %s91, %s93
    %p100 = scmp.eq.s32.totalorder %s15, 1
    %p101 = por %p99, %p100
    %p102 = scmp.ne.s32.totalorder %s93, %s94
    %p103 = scmp.eq.s32.totalorder %s15, 0
    %p104 = por %p102, %p103
    %p105 = scmp.ne.s32.totalorder %s93, %s94
    %p106 = scmp.eq.s32.totalorder %s16, 1
    %p107 = por %p105, %p106
    %p109 = scmp.ne.s32.totalorder %s94, %s108
    %p110 = scmp.eq.s32.totalorder %s16, 0
    %p111 = por %p109, %p110
    %s112 = ssub.s32 %s10, %s17
    %p113 = scmp.eq.s32.totalorder %s112, 0
    %s115 = sadd.s32 %s114, 1
    %s116 = scalar_select %p113, %s114, %s115
    %p119 = pneg %p113
    %p120 = scmp.eq.s32.totalorder %s10, 1
    %p121 = por %p119, %p120
    %p122 = scmp.ne.s32.totalorder %s114, %s117
    %p123 = scmp.eq.s32.totalorder %s10, 0
    %p124 = por %p122, %p123
    %p125 = scmp.ne.s32.totalorder %s114, %s117
    %p126 = scmp.eq.s32.totalorder %s15, 1
    %p127 = por %p125, %p126
    %p128 = scmp.ne.s32.totalorder %s117, %s118
    %p129 = scmp.eq.s32.totalorder %s15, 0
    %p130 = por %p128, %p129
    %p131 = scmp.ne.s32.totalorder %s117, %s118
    %p132 = scmp.eq.s32.totalorder %s16, 1
    %p133 = por %p131, %p132
    %p135 = scmp.ne.s32.totalorder %s118, %s134
    %p136 = scmp.eq.s32.totalorder %s16, 0
    %p137 = por %p135, %p136
    %p138 = scmp.le.s32.totalorder 1, %s10
    %p139 = scmp.lt.s32.totalorder %s10, 3
    %p140 = pnand %p138, %p139
    %p141 = pneg %p140
    // Predicated region
    $region9: #{unet_up_forward.4} parent=5 // pred_check
      _
    $region10: #{unet_up_forward.4} parent=5 // pred_check_branch
      %143 = sbr.rel (%p140) target = $region12
    $region11: #{unet_up_forward.4} parent=5 // pred_region
      %s144 = ssub.s32 %s10, 1
      // Predicated region
      $region13: #{unet_up_forward.4} parent=11 // pred_check
        %p145 = pneg %p83
      $region14: #{unet_up_forward.4} parent=11 // pred_check_branch
        %147 = sbr.rel (%p145) target = $region16
      $region15: #{unet_up_forward.4} parent=11 // pred_region
        _
      $region16: #{unet_up_forward.4} parent=11 // pred_fallthru
        _
      // Predicated region
      $region17: #{unet_up_forward.4} parent=11 // pred_check
        %p148 = pneg %p104
      $region18: #{unet_up_forward.4} parent=11 // pred_check_branch
        %150 = sbr.rel (%p148) target = $region20
      $region19: #{unet_up_forward.4} parent=11 // pred_region
        _
      $region20: #{unet_up_forward.4} parent=11 // pred_fallthru
        _
    $region12: #{unet_up_forward.4} parent=5 // pred_fallthru
      _
    %p151 = scmp.lt.s32.totalorder %s10, 2
    // Predicated region
    $region21: #{unet_up_forward.4} parent=5 // pred_check
      %p152 = pneg %p151
    $region22: #{unet_up_forward.4} parent=5 // pred_check_branch
      %154 = sbr.rel (%p152) target = $region24
    $region23: #{unet_up_forward.4} parent=5 // pred_region
      // Predicated region
      $region25: #{unet_up_forward.4} parent=23 // pred_check
        %p155 = pneg %p30
      $region26: #{unet_up_forward.4} parent=23 // pred_check_branch
        %157 = sbr.rel (%p155) target = $region28
      $region27: #{unet_up_forward.4} parent=23 // pred_region
        %p158 = scmp.lt.s32.totalorder %s10, 1
        %s159 = scalar_select %p158, %s10, 1
        %s160 = smul.addr %s159, 54
        %s161 = smul.addr %s160, 4
        %s162 = scalar_lea.vmem %s0, %s161
      $region28: #{unet_up_forward.4} parent=23 // pred_fallthru
        _
      // Predicated region
      $region29: #{unet_up_forward.4} parent=23 // pred_check
        %p163 = pneg %p56
      $region30: #{unet_up_forward.4} parent=23 // pred_check_branch
        %165 = sbr.rel (%p163) target = $region32
      $region31: #{unet_up_forward.4} parent=23 // pred_region
        %p166 = scmp.lt.s32.totalorder %s10, 1
        %s167 = scalar_select %p166, %s10, 1
        %s168 = smul.addr %s167, 54
        %s169 = smul.addr %s168, 4
        %s170 = scalar_lea.vmem %s1, %s169
      $region32: #{unet_up_forward.4} parent=23 // pred_fallthru
        _
    $region24: #{unet_up_forward.4} parent=5 // pred_fallthru
      _
    %p171 = scmp.le.s32.totalorder 1, %s10
    %p172 = scmp.lt.s32.totalorder %s10, 3
    %p173 = pnand %p171, %p172
    %p174 = pneg %p173
    // Predicated region
    $region33: #{unet_up_forward.4} parent=5 // pred_check
      _
    $region34: #{unet_up_forward.4} parent=5 // pred_check_branch
      %176 = sbr.rel (%p173) target = $region36
    $region35: #{unet_up_forward.4} parent=5 // pred_region
      %s177 = ssub.s32 %s10, 1
      %p178 = scmp.lt.s32.totalorder %s15, 1
      %s179 = scalar_select %p178, %s15, 1
      %s180 = smul.addr %s179, 54
      %s181 = smul.addr %s180, 4
      %s182 = scalar_lea.vmem %s0, %s181
      %p183 = pneg %p36
      %p184 = pneg %p33
      %p185 = scmp.lt.s32.totalorder %s15, 1
      %s186 = scalar_select %p185, %s15, 1
      %s187 = smul.addr %s186, 54
      %s188 = smul.addr %s187, 4
      %s189 = scalar_lea.vmem %s1, %s188
      %p190 = pneg %p62
      %p191 = pneg %p59
      %p192 = pneg %p83
      %p193 = pneg %p80
      %p194 = pneg %p104
      %p195 = pneg %p101
      %p196 = pneg %p130
      %p197 = pneg %p127
      %p198 = scmp.lt.s32.totalorder %s15, 1
      %s199 = scalar_select %p198, %s15, 1
      %s200 = smul.addr %s199, 32
      %s201 = smul.addr %s200, 4
      %s202 = scalar_lea.vmem %s4, %s201
      %p203 = scmp.lt.s32.totalorder %s15, 1
      %s204 = scalar_select %p203, %s15, 1
      %s205 = smul.addr %s204, 54
      %s206 = smul.addr %s205, 4
      %s207 = scalar_lea.vmem %s0, %s206
      %p208 = scmp.lt.s32.totalorder %s15, 1
      %s209 = scalar_select %p208, %s15, 1
      %s210 = smul.addr %s209, 54
      %s211 = smul.addr %s210, 4
      %s212 = scalar_lea.vmem %s1, %s211
      %p213 = scmp.lt.s32.totalorder %s15, 1
      %s214 = scalar_select %p213, %s15, 1
      %s215 = smul.addr %s214, 32
      %s216 = smul.addr %s215, 4
      %s217 = scalar_lea.vmem %s4, %s216
      %v219 = vld [vmem:[%s207] sm:$0xf]
      %v220 = vld [vmem:[%s207 + $0x4] sm:$0xf]
      %v221 = vld [vmem:[%s207 + $0x8] sm:$0x1]
      %v222 = vld [vmem:[%s207 + $0xc] sm:$0xf]
      %v223 = vld [vmem:[%s207 + $0x10] sm:$0xf]
      %v224 = vld [vmem:[%s207 + $0x14] sm:$0x1]
      %v225 = vld [vmem:[%s207 + $0x18] sm:$0xf]
      %v226 = vld [vmem:[%s207 + $0x1c] sm:$0xf]
      %v227 = vld [vmem:[%s207 + $0x20] sm:$0x1]
      %v228 = vld [vmem:[%s207 + $0x24] sm:$0xf]
      %v229 = vld [vmem:[%s207 + $0x28] sm:$0xf]
      %v230 = vld [vmem:[%s207 + $0x2c] sm:$0x1]
      %v231 = vld [vmem:[%s207 + $0x30] sm:$0xf]
      %v232 = vld [vmem:[%s207 + $0x34] sm:$0xf]
      %v233 = vld [vmem:[%s207 + $0x38] sm:$0x1]
      %v234 = vld [vmem:[%s207 + $0x3c] sm:$0xf]
      %v235 = vld [vmem:[%s207 + $0x40] sm:$0xf]
      %v236 = vld [vmem:[%s207 + $0x44] sm:$0x1]
      %v237 = vld [vmem:[%s207 + $0x48] sm:$0xf]
      %v238 = vld [vmem:[%s207 + $0x4c] sm:$0xf]
      %v239 = vld [vmem:[%s207 + $0x50] sm:$0x1]
      %v240 = vld [vmem:[%s207 + $0x54] sm:$0xf]
      %v241 = vld [vmem:[%s207 + $0x58] sm:$0xf]
      %v242 = vld [vmem:[%s207 + $0x5c] sm:$0x1]
      %v243 = vld [vmem:[%s207 + $0x60] sm:$0xf]
      %v244 = vld [vmem:[%s207 + $0x64] sm:$0xf]
      %v245 = vld [vmem:[%s207 + $0x68] sm:$0x1]
      %v246 = vld [vmem:[%s207 + $0x6c] sm:$0xf]
      %v247 = vld [vmem:[%s207 + $0x70] sm:$0xf]
      %v248 = vld [vmem:[%s207 + $0x74] sm:$0x1]
      %v249 = vld [vmem:[%s207 + $0x78] sm:$0xf]
      %v250 = vld [vmem:[%s207 + $0x7c] sm:$0xf]
      %v251 = vld [vmem:[%s207 + $0x80] sm:$0x1]
      %v252 = vld [vmem:[%s207 + $0x84] sm:$0xf]
      %v253 = vld [vmem:[%s207 + $0x88] sm:$0xf]
      %v254 = vld [vmem:[%s207 + $0x8c] sm:$0x1]
      %v255 = vld [vmem:[%s207 + $0x90] sm:$0xf]
      %v256 = vld [vmem:[%s207 + $0x94] sm:$0xf]
      %v257 = vld [vmem:[%s207 + $0x98] sm:$0x1]
      %v258 = vld [vmem:[%s207 + $0x9c] sm:$0xf]
      %v259 = vld [vmem:[%s207 + $0xa0] sm:$0xf]
      %v260 = vld [vmem:[%s207 + $0xa4] sm:$0x1]
      %v261 = vld [vmem:[%s207 + $0xa8] sm:$0xf]
      %v262 = vld [vmem:[%s207 + $0xac] sm:$0xf]
      %v263 = vld [vmem:[%s207 + $0xb0] sm:$0x1]
      %v264 = vld [vmem:[%s207 + $0xb4] sm:$0xf]
      %v265 = vld [vmem:[%s207 + $0xb8] sm:$0xf]
      %v266 = vld [vmem:[%s207 + $0xbc] sm:$0x1]
      %v267 = vld [vmem:[%s207 + $0xc0] sm:$0xf]
      %v268 = vld [vmem:[%s207 + $0xc4] sm:$0xf]
      %v269 = vld [vmem:[%s207 + $0xc8] sm:$0x1]
      %v270 = vld [vmem:[%s207 + $0xcc] sm:$0xf]
      %v271 = vld [vmem:[%s207 + $0xd0] sm:$0xf]
      %v272 = vld [vmem:[%s207 + $0xd4] sm:$0x1]
      %vm273 = vsmask.f32 3328
      %vm274 = vsmask.f32 7440
      %vm275 = vmor %vm273, %vm274
      %v277 = vshrl.u32 %v219, 16
      %v279 = vrot.slane %v277, 4
      %v280 = vshll.u32 %v219, 16
      %v282 = vrot.slane %v280, 5
      %v283 = vor.u32 %v279, %v282
      %v284 = vrot.slane %v283, 4
      %v286 = vshll.u32 %v220, 16
      %v288 = vrot.slane %v286, 5
      %v289 = vsel %vm275, %v284, %v288
      %v290 = vshrl.u32 %v220, 16
      %v292 = vrot.slane %v290, 4
      %v293 = vor.u32 %v292, %v288
      %v294 = vrot.slane %v293, 4
      %v296 = vshll.u32 %v221, 16
      %v298 = vrot.slane %v296, 5
      %v299 = vsel %vm275, %v294, %v298
      %v301 = vshrl.u32 %v222, 16
      %v303 = vrot.slane %v301, 4
      %v304 = vshll.u32 %v222, 16
      %v306 = vrot.slane %v304, 5
      %v307 = vor.u32 %v303, %v306
      %v308 = vrot.slane %v307, 4
      %v310 = vshll.u32 %v223, 16
      %v312 = vrot.slane %v310, 5
      %v313 = vsel %vm275, %v308, %v312
      %v314 = vshrl.u32 %v223, 16
      %v316 = vrot.slane %v314, 4
      %v317 = vor.u32 %v316, %v312
      %v318 = vrot.slane %v317, 4
      %v320 = vshll.u32 %v224, 16
      %v322 = vrot.slane %v320, 5
      %v323 = vsel %vm275, %v318, %v322
      %v325 = vshrl.u32 %v225, 16
      %v327 = vrot.slane %v325, 4
      %v328 = vshll.u32 %v225, 16
      %v330 = vrot.slane %v328, 5
      %v331 = vor.u32 %v327, %v330
      %v332 = vrot.slane %v331, 4
      %v334 = vshll.u32 %v226, 16
      %v336 = vrot.slane %v334, 5
      %v337 = vsel %vm275, %v332, %v336
      %v338 = vshrl.u32 %v226, 16
      %v340 = vrot.slane %v338, 4
      %v341 = vor.u32 %v340, %v336
      %v342 = vrot.slane %v341, 4
      %v344 = vshll.u32 %v227, 16
      %v346 = vrot.slane %v344, 5
      %v347 = vsel %vm275, %v342, %v346
      %v349 = vshrl.u32 %v228, 16
      %v351 = vrot.slane %v349, 4
      %v352 = vshll.u32 %v228, 16
      %v354 = vrot.slane %v352, 5
      %v355 = vor.u32 %v351, %v354
      %v356 = vrot.slane %v355, 4
      %v358 = vshll.u32 %v229, 16
      %v360 = vrot.slane %v358, 5
      %v361 = vsel %vm275, %v356, %v360
      %v362 = vshrl.u32 %v229, 16
      %v364 = vrot.slane %v362, 4
      %v365 = vor.u32 %v364, %v360
      %v366 = vrot.slane %v365, 4
      %v368 = vshll.u32 %v230, 16
      %v370 = vrot.slane %v368, 5
      %v371 = vsel %vm275, %v366, %v370
      %v373 = vshrl.u32 %v231, 16
      %v375 = vrot.slane %v373, 4
      %v376 = vshll.u32 %v231, 16
      %v378 = vrot.slane %v376, 5
      %v379 = vor.u32 %v375, %v378
      %v380 = vrot.slane %v379, 4
      %v382 = vshll.u32 %v232, 16
      %v384 = vrot.slane %v382, 5
      %v385 = vsel %vm275, %v380, %v384
      %v386 = vshrl.u32 %v232, 16
      %v388 = vrot.slane %v386, 4
      %v389 = vor.u32 %v388, %v384
      %v390 = vrot.slane %v389, 4
      %v392 = vshll.u32 %v233, 16
      %v394 = vrot.slane %v392, 5
      %v395 = vsel %vm275, %v390, %v394
      %v397 = vshrl.u32 %v234, 16
      %v399 = vrot.slane %v397, 4
      %v400 = vshll.u32 %v234, 16
      %v402 = vrot.slane %v400, 5
      %v403 = vor.u32 %v399, %v402
      %v404 = vrot.slane %v403, 4
      %v406 = vshll.u32 %v235, 16
      %v408 = vrot.slane %v406, 5
      %v409 = vsel %vm275, %v404, %v408
      %v410 = vshrl.u32 %v235, 16
      %v412 = vrot.slane %v410, 4
      %v413 = vor.u32 %v412, %v408
      %v414 = vrot.slane %v413, 4
      %v416 = vshll.u32 %v236, 16
      %v418 = vrot.slane %v416, 5
      %v419 = vsel %vm275, %v414, %v418
      %v421 = vshrl.u32 %v237, 16
      %v423 = vrot.slane %v421, 4
      %v424 = vshll.u32 %v237, 16
      %v426 = vrot.slane %v424, 5
      %v427 = vor.u32 %v423, %v426
      %v428 = vrot.slane %v427, 4
      %v430 = vshll.u32 %v238, 16
      %v432 = vrot.slane %v430, 5
      %v433 = vsel %vm275, %v428, %v432
      %v434 = vshrl.u32 %v238, 16
      %v436 = vrot.slane %v434, 4
      %v437 = vor.u32 %v436, %v432
      %v438 = vrot.slane %v437, 4
      %v440 = vshll.u32 %v239, 16
      %v442 = vrot.slane %v440, 5
      %v443 = vsel %vm275, %v438, %v442
      %v445 = vshrl.u32 %v240, 16
      %v447 = vrot.slane %v445, 4
      %v448 = vshll.u32 %v240, 16
      %v450 = vrot.slane %v448, 5
      %v451 = vor.u32 %v447, %v450
      %v452 = vrot.slane %v451, 4
      %v454 = vshll.u32 %v241, 16
      %v456 = vrot.slane %v454, 5
      %v457 = vsel %vm275, %v452, %v456
      %v458 = vshrl.u32 %v241, 16
      %v460 = vrot.slane %v458, 4
      %v461 = vor.u32 %v460, %v456
      %v462 = vrot.slane %v461, 4
      %v464 = vshll.u32 %v242, 16
      %v466 = vrot.slane %v464, 5
      %v467 = vsel %vm275, %v462, %v466
      %v469 = vshrl.u32 %v243, 16
      %v471 = vrot.slane %v469, 4
      %v472 = vshll.u32 %v243, 16
      %v474 = vrot.slane %v472, 5
      %v475 = vor.u32 %v471, %v474
      %v476 = vrot.slane %v475, 4
      %v478 = vshll.u32 %v244, 16
      %v480 = vrot.slane %v478, 5
      %v481 = vsel %vm275, %v476, %v480
      %v482 = vshrl.u32 %v244, 16
      %v484 = vrot.slane %v482, 4
      %v485 = vor.u32 %v484, %v480
      %v486 = vrot.slane %v485, 4
      %v488 = vshll.u32 %v245, 16
      %v490 = vrot.slane %v488, 5
      %v491 = vsel %vm275, %v486, %v490
      %v493 = vshrl.u32 %v246, 16
      %v495 = vrot.slane %v493, 4
      %v496 = vshll.u32 %v246, 16
      %v498 = vrot.slane %v496, 5
      %v499 = vor.u32 %v495, %v498
      %v500 = vrot.slane %v499, 4
      %v502 = vshll.u32 %v247, 16
      %v504 = vrot.slane %v502, 5
      %v505 = vsel %vm275, %v500, %v504
      %v506 = vshrl.u32 %v247, 16
      %v508 = vrot.slane %v506, 4
      %v509 = vor.u32 %v508, %v504
      %v510 = vrot.slane %v509, 4
      %v512 = vshll.u32 %v248, 16
      %v514 = vrot.slane %v512, 5
      %v515 = vsel %vm275, %v510, %v514
      %v517 = vshrl.u32 %v249, 16
      %v519 = vrot.slane %v517, 4
      %v520 = vshll.u32 %v249, 16
      %v522 = vrot.slane %v520, 5
      %v523 = vor.u32 %v519, %v522
      %v524 = vrot.slane %v523, 4
      %v526 = vshll.u32 %v250, 16
      %v528 = vrot.slane %v526, 5
      %v529 = vsel %vm275, %v524, %v528
      %v530 = vshrl.u32 %v250, 16
      %v532 = vrot.slane %v530, 4
      %v533 = vor.u32 %v532, %v528
      %v534 = vrot.slane %v533, 4
      %v536 = vshll.u32 %v251, 16
      %v538 = vrot.slane %v536, 5
      %v539 = vsel %vm275, %v534, %v538
      %v541 = vshrl.u32 %v252, 16
      %v543 = vrot.slane %v541, 4
      %v544 = vshll.u32 %v252, 16
      %v546 = vrot.slane %v544, 5
      %v547 = vor.u32 %v543, %v546
      %v548 = vrot.slane %v547, 4
      %v550 = vshll.u32 %v253, 16
      %v552 = vrot.slane %v550, 5
      %v553 = vsel %vm275, %v548, %v552
      %v554 = vshrl.u32 %v253, 16
      %v556 = vrot.slane %v554, 4
      %v557 = vor.u32 %v556, %v552
      %v558 = vrot.slane %v557, 4
      %v560 = vshll.u32 %v254, 16
      %v562 = vrot.slane %v560, 5
      %v563 = vsel %vm275, %v558, %v562
      %v565 = vshrl.u32 %v255, 16
      %v567 = vrot.slane %v565, 4
      %v568 = vshll.u32 %v255, 16
      %v570 = vrot.slane %v568, 5
      %v571 = vor.u32 %v567, %v570
      %v572 = vrot.slane %v571, 4
      %v574 = vshll.u32 %v256, 16
      %v576 = vrot.slane %v574, 5
      %v577 = vsel %vm275, %v572, %v576
      %v578 = vshrl.u32 %v256, 16
      %v580 = vrot.slane %v578, 4
      %v581 = vor.u32 %v580, %v576
      %v582 = vrot.slane %v581, 4
      %v584 = vshll.u32 %v257, 16
      %v586 = vrot.slane %v584, 5
      %v587 = vsel %vm275, %v582, %v586
      %v589 = vshrl.u32 %v258, 16
      %v591 = vrot.slane %v589, 4
      %v592 = vshll.u32 %v258, 16
      %v594 = vrot.slane %v592, 5
      %v595 = vor.u32 %v591, %v594
      %v596 = vrot.slane %v595, 4
      %v598 = vshll.u32 %v259, 16
      %v600 = vrot.slane %v598, 5
      %v601 = vsel %vm275, %v596, %v600
      %v602 = vshrl.u32 %v259, 16
      %v604 = vrot.slane %v602, 4
      %v605 = vor.u32 %v604, %v600
      %v606 = vrot.slane %v605, 4
      %v608 = vshll.u32 %v260, 16
      %v610 = vrot.slane %v608, 5
      %v611 = vsel %vm275, %v606, %v610
      %v613 = vshrl.u32 %v261, 16
      %v615 = vrot.slane %v613, 4
      %v616 = vshll.u32 %v261, 16
      %v618 = vrot.slane %v616, 5
      %v619 = vor.u32 %v615, %v618
      %v620 = vrot.slane %v619, 4
      %v622 = vshll.u32 %v262, 16
      %v624 = vrot.slane %v622, 5
      %v625 = vsel %vm275, %v620, %v624
      %v626 = vshrl.u32 %v262, 16
      %v628 = vrot.slane %v626, 4
      %v629 = vor.u32 %v628, %v624
      %v630 = vrot.slane %v629, 4
      %v632 = vshll.u32 %v263, 16
      %v634 = vrot.slane %v632, 5
      %v635 = vsel %vm275, %v630, %v634
      %v637 = vshrl.u32 %v264, 16
      %v639 = vrot.slane %v637, 4
      %v640 = vshll.u32 %v264, 16
      %v642 = vrot.slane %v640, 5
      %v643 = vor.u32 %v639, %v642
      %v644 = vrot.slane %v643, 4
      %v646 = vshll.u32 %v265, 16
      %v648 = vrot.slane %v646, 5
      %v649 = vsel %vm275, %v644, %v648
      %v650 = vshrl.u32 %v265, 16
      %v652 = vrot.slane %v650, 4
      %v653 = vor.u32 %v652, %v648
      %v654 = vrot.slane %v653, 4
      %v656 = vshll.u32 %v266, 16
      %v658 = vrot.slane %v656, 5
      %v659 = vsel %vm275, %v654, %v658
      %vm708 = vcmask 1042432
      %vm709 = vcmask 1046532
      %vm710 = vmor %vm708, %vm709
      %v711 = vrot.slane %v219, 5
      %v712 = vrot.slane %v711, 4
      %v713 = vrot.slane %v220, 5
      %v714 = vsel %vm710, %v712, %v713
      %v715 = vrot.slane %v713, 4
      %v716 = vrot.slane %v221, 5
      %v717 = vsel %vm710, %v715, %v716
      %v718 = vrot.slane %v222, 5
      %v719 = vrot.slane %v718, 4
      %v720 = vrot.slane %v223, 5
      %v721 = vsel %vm710, %v719, %v720
      %v722 = vrot.slane %v720, 4
      %v723 = vrot.slane %v224, 5
      %v724 = vsel %vm710, %v722, %v723
      %v725 = vrot.slane %v225, 5
      %v726 = vrot.slane %v725, 4
      %v727 = vrot.slane %v226, 5
      %v728 = vsel %vm710, %v726, %v727
      %v729 = vrot.slane %v727, 4
      %v730 = vrot.slane %v227, 5
      %v731 = vsel %vm710, %v729, %v730
      %v732 = vrot.slane %v228, 5
      %v733 = vrot.slane %v732, 4
      %v734 = vrot.slane %v229, 5
      %v735 = vsel %vm710, %v733, %v734
      %v736 = vrot.slane %v734, 4
      %v737 = vrot.slane %v230, 5
      %v738 = vsel %vm710, %v736, %v737
      %v739 = vrot.slane %v231, 5
      %v740 = vrot.slane %v739, 4
      %v741 = vrot.slane %v232, 5
      %v742 = vsel %vm710, %v740, %v741
      %v743 = vrot.slane %v741, 4
      %v744 = vrot.slane %v233, 5
      %v745 = vsel %vm710, %v743, %v744
      %v746 = vrot.slane %v234, 5
      %v747 = vrot.slane %v746, 4
      %v748 = vrot.slane %v235, 5
      %v749 = vsel %vm710, %v747, %v748
      %v750 = vrot.slane %v748, 4
      %v751 = vrot.slane %v236, 5
      %v752 = vsel %vm710, %v750, %v751
      %v753 = vrot.slane %v237, 5
      %v754 = vrot.slane %v753, 4
      %v755 = vrot.slane %v238, 5
      %v756 = vsel %vm710, %v754, %v755
      %v757 = vrot.slane %v755, 4
      %v758 = vrot.slane %v239, 5
      %v759 = vsel %vm710, %v757, %v758
      %v760 = vrot.slane %v240, 5
      %v761 = vrot.slane %v760, 4
      %v762 = vrot.slane %v241, 5
      %v763 = vsel %vm710, %v761, %v762
      %v764 = vrot.slane %v762, 4
      %v765 = vrot.slane %v242, 5
      %v766 = vsel %vm710, %v764, %v765
      %v767 = vrot.slane %v243, 5
      %v768 = vrot.slane %v767, 4
      %v769 = vrot.slane %v244, 5
      %v770 = vsel %vm710, %v768, %v769
      %v771 = vrot.slane %v769, 4
      %v772 = vrot.slane %v245, 5
      %v773 = vsel %vm710, %v771, %v772
      %v774 = vrot.slane %v246, 5
      %v775 = vrot.slane %v774, 4
      %v776 = vrot.slane %v247, 5
      %v777 = vsel %vm710, %v775, %v776
      %v778 = vrot.slane %v776, 4
      %v779 = vrot.slane %v248, 5
      %v780 = vsel %vm710, %v778, %v779
      %v781 = vrot.slane %v249, 5
      %v782 = vrot.slane %v781, 4
      %v783 = vrot.slane %v250, 5
      %v784 = vsel %vm710, %v782, %v783
      %v785 = vrot.slane %v783, 4
      %v786 = vrot.slane %v251, 5
      %v787 = vsel %vm710, %v785, %v786
      %v788 = vrot.slane %v252, 5
      %v789 = vrot.slane %v788, 4
      %v790 = vrot.slane %v253, 5
      %v791 = vsel %vm710, %v789, %v790
      %v792 = vrot.slane %v790, 4
      %v793 = vrot.slane %v254, 5
      %v794 = vsel %vm710, %v792, %v793
      %v795 = vrot.slane %v255, 5
      %v796 = vrot.slane %v795, 4
      %v797 = vrot.slane %v256, 5
      %v798 = vsel %vm710, %v796, %v797
      %v799 = vrot.slane %v797, 4
      %v800 = vrot.slane %v257, 5
      %v801 = vsel %vm710, %v799, %v800
      %v802 = vrot.slane %v258, 5
      %v803 = vrot.slane %v802, 4
      %v804 = vrot.slane %v259, 5
      %v805 = vsel %vm710, %v803, %v804
      %v806 = vrot.slane %v804, 4
      %v807 = vrot.slane %v260, 5
      %v808 = vsel %vm710, %v806, %v807
      %v809 = vrot.slane %v261, 5
      %v810 = vrot.slane %v809, 4
      %v811 = vrot.slane %v262, 5
      %v812 = vsel %vm710, %v810, %v811
      %v813 = vrot.slane %v811, 4
      %v814 = vrot.slane %v263, 5
      %v815 = vsel %vm710, %v813, %v814
      %v816 = vrot.slane %v264, 5
      %v817 = vrot.slane %v816, 4
      %v818 = vrot.slane %v265, 5
      %v819 = vsel %vm710, %v817, %v818
      %v820 = vrot.slane %v818, 4
      %v821 = vrot.slane %v266, 5
      %v822 = vsel %vm710, %v820, %v821
      %v824 = vshrl.u32 %v267, 16
      %v826 = vrot.slane %v824, 4
      %v827 = vshll.u32 %v267, 16
      %v829 = vrot.slane %v827, 5
      %v830 = vor.u32 %v826, %v829
      %v831 = vrot.slane %v830, 4
      %v833 = vshll.u32 %v268, 16
      %v835 = vrot.slane %v833, 5
      %v836 = vsel %vm275, %v831, %v835
      %v837 = vshrl.u32 %v268, 16
      %v839 = vrot.slane %v837, 4
      %v840 = vor.u32 %v839, %v835
      %v841 = vrot.slane %v840, 4
      %v843 = vshll.u32 %v269, 16
      %v845 = vrot.slane %v843, 5
      %v846 = vsel %vm275, %v841, %v845
      %v850 = vrot.slane %v267, 5
      %v851 = vrot.slane %v850, 4
      %v852 = vrot.slane %v268, 5
      %v853 = vsel %vm710, %v851, %v852
      %v854 = vrot.slane %v852, 4
      %v855 = vrot.slane %v269, 5
      %v856 = vsel %vm710, %v854, %v855
      %v858 = vshrl.u32 %v270, 16
      %v860 = vrot.slane %v858, 4
      %v861 = vshll.u32 %v270, 16
      %v863 = vrot.slane %v861, 5
      %v864 = vor.u32 %v860, %v863
      %v865 = vrot.slane %v864, 4
      %v867 = vshll.u32 %v271, 16
      %v869 = vrot.slane %v867, 5
      %v870 = vsel %vm275, %v865, %v869
      %v871 = vshrl.u32 %v271, 16
      %v873 = vrot.slane %v871, 4
      %v874 = vor.u32 %v873, %v869
      %v875 = vrot.slane %v874, 4
      %v877 = vshll.u32 %v272, 16
      %v879 = vrot.slane %v877, 5
      %v880 = vsel %vm275, %v875, %v879
      %v884 = vrot.slane %v270, 5
      %v885 = vrot.slane %v884, 4
      %v886 = vrot.slane %v271, 5
      %v887 = vsel %vm710, %v885, %v886
      %v888 = vrot.slane %v886, 4
      %v889 = vrot.slane %v272, 5
      %v890 = vsel %vm710, %v888, %v889
      %v891 = vunpack.c.l.b16 %v219
      %v892 = vunpack.c.l.b16 %v220
      %v893 = vunpack.c.l.b16 %v222
      %v894 = vunpack.c.l.b16 %v223
      %v895 = vunpack.c.l.b16 %v225
      %v896 = vunpack.c.l.b16 %v226
      %v897 = vunpack.c.l.b16 %v228
      %v898 = vunpack.c.l.b16 %v229
      %v899 = vunpack.c.l.b16 %v231
      %v900 = vunpack.c.l.b16 %v232
      %v901 = vunpack.c.l.b16 %v234
      %v902 = vunpack.c.l.b16 %v235
      %v903 = vunpack.c.l.b16 %v237
      %v904 = vunpack.c.l.b16 %v238
      %v905 = vunpack.c.l.b16 %v240
      %v906 = vunpack.c.l.b16 %v241
      %v907 = vunpack.c.l.b16 %v243
      %v908 = vunpack.c.l.b16 %v244
      %v909 = vunpack.c.l.b16 %v246
      %v910 = vunpack.c.l.b16 %v247
      %v911 = vunpack.c.l.b16 %v249
      %v912 = vunpack.c.l.b16 %v250
      %v913 = vunpack.c.l.b16 %v252
      %v914 = vunpack.c.l.b16 %v253
      %v915 = vunpack.c.l.b16 %v255
      %v916 = vunpack.c.l.b16 %v256
      %v917 = vunpack.c.l.b16 %v258
      %v918 = vunpack.c.l.b16 %v259
      %v919 = vunpack.c.l.b16 %v261
      %v920 = vunpack.c.l.b16 %v262
      %v921 = vunpack.c.l.b16 %v264
      %v922 = vunpack.c.l.b16 %v265
      %v923 = vpack.c.b16 %v892, %v891
      %v924 = vpack.c.b16 %v894, %v893
      %v925 = vpack.c.b16 %v896, %v895
      %v926 = vpack.c.b16 %v898, %v897
      %v927 = vpack.c.b16 %v900, %v899
      %v928 = vpack.c.b16 %v902, %v901
      %v929 = vpack.c.b16 %v904, %v903
      %v930 = vpack.c.b16 %v906, %v905
      %v931 = vpack.c.b16 %v908, %v907
      %v932 = vpack.c.b16 %v910, %v909
      %v933 = vpack.c.b16 %v912, %v911
      %v934 = vpack.c.b16 %v914, %v913
      %v935 = vpack.c.b16 %v916, %v915
      %v936 = vpack.c.b16 %v918, %v917
      %v937 = vpack.c.b16 %v920, %v919
      %v938 = vpack.c.b16 %v922, %v921
      %v939 = vunpack.c.l.b16 %v289
      %v940 = vunpack.c.l.b16 %v299
      %v941 = vunpack.c.l.b16 %v313
      %v942 = vunpack.c.l.b16 %v323
      %v943 = vunpack.c.l.b16 %v337
      %v944 = vunpack.c.l.b16 %v347
      %v945 = vunpack.c.l.b16 %v361
      %v946 = vunpack.c.l.b16 %v371
      %v947 = vunpack.c.l.b16 %v385
      %v948 = vunpack.c.l.b16 %v395
      %v949 = vunpack.c.l.b16 %v409
      %v950 = vunpack.c.l.b16 %v419
      %v951 = vunpack.c.l.b16 %v433
      %v952 = vunpack.c.l.b16 %v443
      %v953 = vunpack.c.l.b16 %v457
      %v954 = vunpack.c.l.b16 %v467
      %v955 = vunpack.c.l.b16 %v481
      %v956 = vunpack.c.l.b16 %v491
      %v957 = vunpack.c.l.b16 %v505
      %v958 = vunpack.c.l.b16 %v515
      %v959 = vunpack.c.l.b16 %v529
      %v960 = vunpack.c.l.b16 %v539
      %v961 = vunpack.c.l.b16 %v553
      %v962 = vunpack.c.l.b16 %v563
      %v963 = vunpack.c.l.b16 %v577
      %v964 = vunpack.c.l.b16 %v587
      %v965 = vunpack.c.l.b16 %v601
      %v966 = vunpack.c.l.b16 %v611
      %v967 = vunpack.c.l.b16 %v625
      %v968 = vunpack.c.l.b16 %v635
      %v969 = vunpack.c.l.b16 %v649
      %v970 = vunpack.c.l.b16 %v659
      %v971 = vpack.c.b16 %v940, %v939
      %v972 = vpack.c.b16 %v942, %v941
      %v973 = vpack.c.b16 %v944, %v943
      %v974 = vpack.c.b16 %v946, %v945
      %v975 = vpack.c.b16 %v948, %v947
      %v976 = vpack.c.b16 %v950, %v949
      %v977 = vpack.c.b16 %v952, %v951
      %v978 = vpack.c.b16 %v954, %v953
      %v979 = vpack.c.b16 %v956, %v955
      %v980 = vpack.c.b16 %v958, %v957
      %v981 = vpack.c.b16 %v960, %v959
      %v982 = vpack.c.b16 %v962, %v961
      %v983 = vpack.c.b16 %v964, %v963
      %v984 = vpack.c.b16 %v966, %v965
      %v985 = vpack.c.b16 %v968, %v967
      %v986 = vpack.c.b16 %v970, %v969
      %987 = vrot.lane.b32.xlu0 %v971, 4
      %v988 = vpop.permute.xlu0 %987
      %989 = vrot.lane.b32.xlu0 %v972, 4
      %v990 = vpop.permute.xlu0 %989
      %991 = vrot.lane.b32.xlu0 %v973, 4
      %v992 = vpop.permute.xlu0 %991
      %993 = vrot.lane.b32.xlu0 %v974, 4
      %v994 = vpop.permute.xlu0 %993
      %995 = vrot.lane.b32.xlu0 %v975, 4
      %v996 = vpop.permute.xlu0 %995
      %997 = vrot.lane.b32.xlu0 %v976, 4
      %v998 = vpop.permute.xlu0 %997
      %999 = vrot.lane.b32.xlu0 %v977, 4
      %v1000 = vpop.permute.xlu0 %999
      %1001 = vrot.lane.b32.xlu0 %v978, 4
      %v1002 = vpop.permute.xlu0 %1001
      %1003 = vrot.lane.b32.xlu0 %v979, 4
      %v1004 = vpop.permute.xlu0 %1003
      %1005 = vrot.lane.b32.xlu0 %v980, 4
      %v1006 = vpop.permute.xlu0 %1005
      %1007 = vrot.lane.b32.xlu0 %v981, 4
      %v1008 = vpop.permute.xlu0 %1007
      %1009 = vrot.lane.b32.xlu0 %v982, 4
      %v1010 = vpop.permute.xlu0 %1009
      %1011 = vrot.lane.b32.xlu0 %v983, 4
      %v1012 = vpop.permute.xlu0 %1011
      %1013 = vrot.lane.b32.xlu0 %v984, 4
      %v1014 = vpop.permute.xlu0 %1013
      %1015 = vrot.lane.b32.xlu0 %v985, 4
      %v1016 = vpop.permute.xlu0 %1015
      %1017 = vrot.lane.b32.xlu0 %v986, 4
      %v1018 = vpop.permute.xlu0 %1017
      %v1019 = vunpack.c.l.b16 %v714
      %v1020 = vunpack.c.l.b16 %v717
      %v1021 = vunpack.c.l.b16 %v721
      %v1022 = vunpack.c.l.b16 %v724
      %v1023 = vunpack.c.l.b16 %v728
      %v1024 = vunpack.c.l.b16 %v731
      %v1025 = vunpack.c.l.b16 %v735
      %v1026 = vunpack.c.l.b16 %v738
      %v1027 = vunpack.c.l.b16 %v742
      %v1028 = vunpack.c.l.b16 %v745
      %v1029 = vunpack.c.l.b16 %v749
      %v1030 = vunpack.c.l.b16 %v752
      %v1031 = vunpack.c.l.b16 %v756
      %v1032 = vunpack.c.l.b16 %v759
      %v1033 = vunpack.c.l.b16 %v763
      %v1034 = vunpack.c.l.b16 %v766
      %v1035 = vunpack.c.l.b16 %v770
      %v1036 = vunpack.c.l.b16 %v773
      %v1037 = vunpack.c.l.b16 %v777
      %v1038 = vunpack.c.l.b16 %v780
      %v1039 = vunpack.c.l.b16 %v784
      %v1040 = vunpack.c.l.b16 %v787
      %v1041 = vunpack.c.l.b16 %v791
      %v1042 = vunpack.c.l.b16 %v794
      %v1043 = vunpack.c.l.b16 %v798
      %v1044 = vunpack.c.l.b16 %v801
      %v1045 = vunpack.c.l.b16 %v805
      %v1046 = vunpack.c.l.b16 %v808
      %v1047 = vunpack.c.l.b16 %v812
      %v1048 = vunpack.c.l.b16 %v815
      %v1049 = vunpack.c.l.b16 %v819
      %v1050 = vunpack.c.l.b16 %v822
      %v1051 = vpack.c.b16 %v1020, %v1019
      %v1052 = vpack.c.b16 %v1022, %v1021
      %v1053 = vpack.c.b16 %v1024, %v1023
      %v1054 = vpack.c.b16 %v1026, %v1025
      %v1055 = vpack.c.b16 %v1028, %v1027
      %v1056 = vpack.c.b16 %v1030, %v1029
      %v1057 = vpack.c.b16 %v1032, %v1031
      %v1058 = vpack.c.b16 %v1034, %v1033
      %v1059 = vpack.c.b16 %v1036, %v1035
      %v1060 = vpack.c.b16 %v1038, %v1037
      %v1061 = vpack.c.b16 %v1040, %v1039
      %v1062 = vpack.c.b16 %v1042, %v1041
      %v1063 = vpack.c.b16 %v1044, %v1043
      %v1064 = vpack.c.b16 %v1046, %v1045
      %v1065 = vpack.c.b16 %v1048, %v1047
      %v1066 = vpack.c.b16 %v1050, %v1049
      %1067 = vrot.lane.b32.xlu0 %v1051, 8
      %v1068 = vpop.permute.xlu0 %1067
      %1069 = vrot.lane.b32.xlu0 %v1052, 8
      %v1070 = vpop.permute.xlu0 %1069
      %1071 = vrot.lane.b32.xlu0 %v1053, 8
      %v1072 = vpop.permute.xlu0 %1071
      %1073 = vrot.lane.b32.xlu0 %v1054, 8
      %v1074 = vpop.permute.xlu0 %1073
      %1075 = vrot.lane.b32.xlu0 %v1055, 8
      %v1076 = vpop.permute.xlu0 %1075
      %1077 = vrot.lane.b32.xlu0 %v1056, 8
      %v1078 = vpop.permute.xlu0 %1077
      %1079 = vrot.lane.b32.xlu0 %v1057, 8
      %v1080 = vpop.permute.xlu0 %1079
      %1081 = vrot.lane.b32.xlu0 %v1058, 8
      %v1082 = vpop.permute.xlu0 %1081
      %1083 = vrot.lane.b32.xlu0 %v1059, 8
      %v1084 = vpop.permute.xlu0 %1083
      %1085 = vrot.lane.b32.xlu0 %v1060, 8
      %v1086 = vpop.permute.xlu0 %1085
      %1087 = vrot.lane.b32.xlu0 %v1061, 8
      %v1088 = vpop.permute.xlu0 %1087
      %1089 = vrot.lane.b32.xlu0 %v1062, 8
      %v1090 = vpop.permute.xlu0 %1089
      %1091 = vrot.lane.b32.xlu0 %v1063, 8
      %v1092 = vpop.permute.xlu0 %1091
      %1093 = vrot.lane.b32.xlu0 %v1064, 8
      %v1094 = vpop.permute.xlu0 %1093
      %1095 = vrot.lane.b32.xlu0 %v1065, 8
      %v1096 = vpop.permute.xlu0 %1095
      %1097 = vrot.lane.b32.xlu0 %v1066, 8
      %v1098 = vpop.permute.xlu0 %1097
      %v1099 = vunpack.c.l.b16 %v267
      %v1100 = vunpack.c.l.b16 %v268
      %v1101 = vpack.c.b16 %v1100, %v1099
      %1102 = vrot.lane.b32.xlu0 %v924, 12
      %v1103 = vpop.permute.xlu0 %1102
      %1104 = vrot.lane.b32.xlu0 %v925, 12
      %v1105 = vpop.permute.xlu0 %1104
      %1106 = vrot.lane.b32.xlu0 %v926, 12
      %v1107 = vpop.permute.xlu0 %1106
      %1108 = vrot.lane.b32.xlu0 %v927, 12
      %v1109 = vpop.permute.xlu0 %1108
      %1110 = vrot.lane.b32.xlu0 %v928, 12
      %v1111 = vpop.permute.xlu0 %1110
      %1112 = vrot.lane.b32.xlu0 %v929, 12
      %v1113 = vpop.permute.xlu0 %1112
      %1114 = vrot.lane.b32.xlu0 %v930, 12
      %v1115 = vpop.permute.xlu0 %1114
      %1116 = vrot.lane.b32.xlu0 %v931, 12
      %v1117 = vpop.permute.xlu0 %1116
      %1118 = vrot.lane.b32.xlu0 %v932, 12
      %v1119 = vpop.permute.xlu0 %1118
      %1120 = vrot.lane.b32.xlu0 %v933, 12
      %v1121 = vpop.permute.xlu0 %1120
      %1122 = vrot.lane.b32.xlu0 %v934, 12
      %v1123 = vpop.permute.xlu0 %1122
      %1124 = vrot.lane.b32.xlu0 %v935, 12
      %v1125 = vpop.permute.xlu0 %1124
      %1126 = vrot.lane.b32.xlu0 %v936, 12
      %v1127 = vpop.permute.xlu0 %1126
      %1128 = vrot.lane.b32.xlu0 %v937, 12
      %v1129 = vpop.permute.xlu0 %1128
      %1130 = vrot.lane.b32.xlu0 %v938, 12
      %v1131 = vpop.permute.xlu0 %1130
      %1132 = vrot.lane.b32.xlu0 %v1101, 12
      %v1133 = vpop.permute.xlu0 %1132
      %v1134 = vunpack.c.l.b16 %v836
      %v1135 = vunpack.c.l.b16 %v846
      %v1136 = vpack.c.b16 %v1135, %v1134
      %1137 = vrot.lane.b32.xlu0 %v972, 16
      %v1138 = vpop.permute.xlu0 %1137
      %1139 = vrot.lane.b32.xlu0 %v973, 16
      %v1140 = vpop.permute.xlu0 %1139
      %1141 = vrot.lane.b32.xlu0 %v974, 16
      %v1142 = vpop.permute.xlu0 %1141
      %1143 = vrot.lane.b32.xlu0 %v975, 16
      %v1144 = vpop.permute.xlu0 %1143
      %1145 = vrot.lane.b32.xlu0 %v976, 16
      %v1146 = vpop.permute.xlu0 %1145
      %1147 = vrot.lane.b32.xlu0 %v977, 16
      %v1148 = vpop.permute.xlu0 %1147
      %1149 = vrot.lane.b32.xlu0 %v978, 16
      %v1150 = vpop.permute.xlu0 %1149
      %1151 = vrot.lane.b32.xlu0 %v979, 16
      %v1152 = vpop.permute.xlu0 %1151
      %1153 = vrot.lane.b32.xlu0 %v980, 16
      %v1154 = vpop.permute.xlu0 %1153
      %1155 = vrot.lane.b32.xlu0 %v981, 16
      %v1156 = vpop.permute.xlu0 %1155
      %1157 = vrot.lane.b32.xlu0 %v982, 16
      %v1158 = vpop.permute.xlu0 %1157
      %1159 = vrot.lane.b32.xlu0 %v983, 16
      %v1160 = vpop.permute.xlu0 %1159
      %1161 = vrot.lane.b32.xlu0 %v984, 16
      %v1162 = vpop.permute.xlu0 %1161
      %1163 = vrot.lane.b32.xlu0 %v985, 16
      %v1164 = vpop.permute.xlu0 %1163
      %1165 = vrot.lane.b32.xlu0 %v986, 16
      %v1166 = vpop.permute.xlu0 %1165
      %1167 = vrot.lane.b32.xlu0 %v1136, 16
      %v1168 = vpop.permute.xlu0 %1167
      %v1169 = vunpack.c.l.b16 %v853
      %v1170 = vunpack.c.l.b16 %v856
      %v1171 = vpack.c.b16 %v1170, %v1169
      %1172 = vrot.lane.b32.xlu0 %v1052, 20
      %v1173 = vpop.permute.xlu0 %1172
      %1174 = vrot.lane.b32.xlu0 %v1053, 20
      %v1175 = vpop.permute.xlu0 %1174
      %1176 = vrot.lane.b32.xlu0 %v1054, 20
      %v1177 = vpop.permute.xlu0 %1176
      %1178 = vrot.lane.b32.xlu0 %v1055, 20
      %v1179 = vpop.permute.xlu0 %1178
      %1180 = vrot.lane.b32.xlu0 %v1056, 20
      %v1181 = vpop.permute.xlu0 %1180
      %1182 = vrot.lane.b32.xlu0 %v1057, 20
      %v1183 = vpop.permute.xlu0 %1182
      %1184 = vrot.lane.b32.xlu0 %v1058, 20
      %v1185 = vpop.permute.xlu0 %1184
      %1186 = vrot.lane.b32.xlu0 %v1059, 20
      %v1187 = vpop.permute.xlu0 %1186
      %1188 = vrot.lane.b32.xlu0 %v1060, 20
      %v1189 = vpop.permute.xlu0 %1188
      %1190 = vrot.lane.b32.xlu0 %v1061, 20
      %v1191 = vpop.permute.xlu0 %1190
      %1192 = vrot.lane.b32.xlu0 %v1062, 20
      %v1193 = vpop.permute.xlu0 %1192
      %1194 = vrot.lane.b32.xlu0 %v1063, 20
      %v1195 = vpop.permute.xlu0 %1194
      %1196 = vrot.lane.b32.xlu0 %v1064, 20
      %v1197 = vpop.permute.xlu0 %1196
      %1198 = vrot.lane.b32.xlu0 %v1065, 20
      %v1199 = vpop.permute.xlu0 %1198
      %1200 = vrot.lane.b32.xlu0 %v1066, 20
      %v1201 = vpop.permute.xlu0 %1200
      %1202 = vrot.lane.b32.xlu0 %v1171, 20
      %v1203 = vpop.permute.xlu0 %1202
      %v1204 = vunpack.c.l.b16 %v270
      %v1205 = vunpack.c.l.b16 %v271
      %v1206 = vpack.c.b16 %v1205, %v1204
      %1207 = vrot.lane.b32.xlu0 %v925, 24
      %v1208 = vpop.permute.xlu0 %1207
      %1209 = vrot.lane.b32.xlu0 %v926, 24
      %v1210 = vpop.permute.xlu0 %1209
      %1211 = vrot.lane.b32.xlu0 %v927, 24
      %v1212 = vpop.permute.xlu0 %1211
      %1213 = vrot.lane.b32.xlu0 %v928, 24
      %v1214 = vpop.permute.xlu0 %1213
      %1215 = vrot.lane.b32.xlu0 %v929, 24
      %v1216 = vpop.permute.xlu0 %1215
      %1217 = vrot.lane.b32.xlu0 %v930, 24
      %v1218 = vpop.permute.xlu0 %1217
      %1219 = vrot.lane.b32.xlu0 %v931, 24
      %v1220 = vpop.permute.xlu0 %1219
      %1221 = vrot.lane.b32.xlu0 %v932, 24
      %v1222 = vpop.permute.xlu0 %1221
      %1223 = vrot.lane.b32.xlu0 %v933, 24
      %v1224 = vpop.permute.xlu0 %1223
      %1225 = vrot.lane.b32.xlu0 %v934, 24
      %v1226 = vpop.permute.xlu0 %1225
      %1227 = vrot.lane.b32.xlu0 %v935, 24
      %v1228 = vpop.permute.xlu0 %1227
      %1229 = vrot.lane.b32.xlu0 %v936, 24
      %v1230 = vpop.permute.xlu0 %1229
      %1231 = vrot.lane.b32.xlu0 %v937, 24
      %v1232 = vpop.permute.xlu0 %1231
      %1233 = vrot.lane.b32.xlu0 %v938, 24
      %v1234 = vpop.permute.xlu0 %1233
      %1235 = vrot.lane.b32.xlu0 %v1101, 24
      %v1236 = vpop.permute.xlu0 %1235
      %1237 = vrot.lane.b32.xlu0 %v1206, 24
      %v1238 = vpop.permute.xlu0 %1237
      %v1239 = vunpack.c.l.b16 %v870
      %v1240 = vunpack.c.l.b16 %v880
      %v1241 = vpack.c.b16 %v1240, %v1239
      %1242 = vrot.lane.b32.xlu0 %v973, 28
      %v1243 = vpop.permute.xlu0 %1242
      %1244 = vrot.lane.b32.xlu0 %v974, 28
      %v1245 = vpop.permute.xlu0 %1244
      %1246 = vrot.lane.b32.xlu0 %v975, 28
      %v1247 = vpop.permute.xlu0 %1246
      %1248 = vrot.lane.b32.xlu0 %v976, 28
      %v1249 = vpop.permute.xlu0 %1248
      %1250 = vrot.lane.b32.xlu0 %v977, 28
      %v1251 = vpop.permute.xlu0 %1250
      %1252 = vrot.lane.b32.xlu0 %v978, 28
      %v1253 = vpop.permute.xlu0 %1252
      %1254 = vrot.lane.b32.xlu0 %v979, 28
      %v1255 = vpop.permute.xlu0 %1254
      %1256 = vrot.lane.b32.xlu0 %v980, 28
      %v1257 = vpop.permute.xlu0 %1256
      %1258 = vrot.lane.b32.xlu0 %v981, 28
      %v1259 = vpop.permute.xlu0 %1258
      %1260 = vrot.lane.b32.xlu0 %v982, 28
      %v1261 = vpop.permute.xlu0 %1260
      %1262 = vrot.lane.b32.xlu0 %v983, 28
      %v1263 = vpop.permute.xlu0 %1262
      %1264 = vrot.lane.b32.xlu0 %v984, 28
      %v1265 = vpop.permute.xlu0 %1264
      %1266 = vrot.lane.b32.xlu0 %v985, 28
      %v1267 = vpop.permute.xlu0 %1266
      %1268 = vrot.lane.b32.xlu0 %v986, 28
      %v1269 = vpop.permute.xlu0 %1268
      %1270 = vrot.lane.b32.xlu0 %v1136, 28
      %v1271 = vpop.permute.xlu0 %1270
      %1272 = vrot.lane.b32.xlu0 %v1241, 28
      %v1273 = vpop.permute.xlu0 %1272
      %v1274 = vunpack.c.l.b16 %v887
      %v1275 = vunpack.c.l.b16 %v890
      %v1276 = vpack.c.b16 %v1275, %v1274
      %1277 = vrot.lane.b32.xlu0 %v1053, 32
      %v1278 = vpop.permute.xlu0 %1277
      %1279 = vrot.lane.b32.xlu0 %v1054, 32
      %v1280 = vpop.permute.xlu0 %1279
      %1281 = vrot.lane.b32.xlu0 %v1055, 32
      %v1282 = vpop.permute.xlu0 %1281
      %1283 = vrot.lane.b32.xlu0 %v1056, 32
      %v1284 = vpop.permute.xlu0 %1283
      %1285 = vrot.lane.b32.xlu0 %v1057, 32
      %v1286 = vpop.permute.xlu0 %1285
      %1287 = vrot.lane.b32.xlu0 %v1058, 32
      %v1288 = vpop.permute.xlu0 %1287
      %1289 = vrot.lane.b32.xlu0 %v1059, 32
      %v1290 = vpop.permute.xlu0 %1289
      %1291 = vrot.lane.b32.xlu0 %v1060, 32
      %v1292 = vpop.permute.xlu0 %1291
      %1293 = vrot.lane.b32.xlu0 %v1061, 32
      %v1294 = vpop.permute.xlu0 %1293
      %1295 = vrot.lane.b32.xlu0 %v1062, 32
      %v1296 = vpop.permute.xlu0 %1295
      %1297 = vrot.lane.b32.xlu0 %v1063, 32
      %v1298 = vpop.permute.xlu0 %1297
      %1299 = vrot.lane.b32.xlu0 %v1064, 32
      %v1300 = vpop.permute.xlu0 %1299
      %1301 = vrot.lane.b32.xlu0 %v1065, 32
      %v1302 = vpop.permute.xlu0 %1301
      %1303 = vrot.lane.b32.xlu0 %v1066, 32
      %v1304 = vpop.permute.xlu0 %1303
      %1305 = vrot.lane.b32.xlu0 %v1171, 32
      %v1306 = vpop.permute.xlu0 %1305
      %1307 = vrot.lane.b32.xlu0 %v1276, 32
      %v1308 = vpop.permute.xlu0 %1307
      %vm1309 = vcmask 31744
      %v1312 = vsel %vm1309, %v923, %v988
      %v1315 = vsel %vm1309, %v924, %v990
      %v1318 = vsel %vm1309, %v925, %v992
      %v1321 = vsel %vm1309, %v926, %v994
      %v1324 = vsel %vm1309, %v927, %v996
      %v1327 = vsel %vm1309, %v928, %v998
      %v1330 = vsel %vm1309, %v929, %v1000
      %v1333 = vsel %vm1309, %v930, %v1002
      %v1336 = vsel %vm1309, %v931, %v1004
      %v1339 = vsel %vm1309, %v932, %v1006
      %v1342 = vsel %vm1309, %v933, %v1008
      %v1345 = vsel %vm1309, %v934, %v1010
      %v1348 = vsel %vm1309, %v935, %v1012
      %v1351 = vsel %vm1309, %v936, %v1014
      %v1354 = vsel %vm1309, %v937, %v1016
      %v1357 = vsel %vm1309, %v938, %v1018
      %vm1358 = vcmask 64512
      %v1360 = vsel %vm1358, %v1312, %v1068
      %v1362 = vsel %vm1358, %v1315, %v1070
      %v1364 = vsel %vm1358, %v1318, %v1072
      %v1366 = vsel %vm1358, %v1321, %v1074
      %v1368 = vsel %vm1358, %v1324, %v1076
      %v1370 = vsel %vm1358, %v1327, %v1078
      %v1372 = vsel %vm1358, %v1330, %v1080
      %v1374 = vsel %vm1358, %v1333, %v1082
      %v1376 = vsel %vm1358, %v1336, %v1084
      %v1378 = vsel %vm1358, %v1339, %v1086
      %v1380 = vsel %vm1358, %v1342, %v1088
      %v1382 = vsel %vm1358, %v1345, %v1090
      %v1384 = vsel %vm1358, %v1348, %v1092
      %v1386 = vsel %vm1358, %v1351, %v1094
      %v1388 = vsel %vm1358, %v1354, %v1096
      %v1390 = vsel %vm1358, %v1357, %v1098
      %vm1391 = vcmask 97280
      %v1393 = vsel %vm1391, %v1360, %v1103
      %v1395 = vsel %vm1391, %v1362, %v1105
      %v1397 = vsel %vm1391, %v1364, %v1107
      %v1399 = vsel %vm1391, %v1366, %v1109
      %v1401 = vsel %vm1391, %v1368, %v1111
      %v1403 = vsel %vm1391, %v1370, %v1113
      %v1405 = vsel %vm1391, %v1372, %v1115
      %v1407 = vsel %vm1391, %v1374, %v1117
      %v1409 = vsel %vm1391, %v1376, %v1119
      %v1411 = vsel %vm1391, %v1378, %v1121
      %v1413 = vsel %vm1391, %v1380, %v1123
      %v1415 = vsel %vm1391, %v1382, %v1125
      %v1417 = vsel %vm1391, %v1384, %v1127
      %v1419 = vsel %vm1391, %v1386, %v1129
      %v1421 = vsel %vm1391, %v1388, %v1131
      %v1423 = vsel %vm1391, %v1390, %v1133
      %vm1424 = vcmask 130048
      %v1426 = vsel %vm1424, %v1393, %v1138
      %v1428 = vsel %vm1424, %v1395, %v1140
      %v1430 = vsel %vm1424, %v1397, %v1142
      %v1432 = vsel %vm1424, %v1399, %v1144
      %v1434 = vsel %vm1424, %v1401, %v1146
      %v1436 = vsel %vm1424, %v1403, %v1148
      %v1438 = vsel %vm1424, %v1405, %v1150
      %v1440 = vsel %vm1424, %v1407, %v1152
      %v1442 = vsel %vm1424, %v1409, %v1154
      %v1444 = vsel %vm1424, %v1411, %v1156
      %v1446 = vsel %vm1424, %v1413, %v1158
      %v1448 = vsel %vm1424, %v1415, %v1160
      %v1450 = vsel %vm1424, %v1417, %v1162
      %v1452 = vsel %vm1424, %v1419, %v1164
      %v1454 = vsel %vm1424, %v1421, %v1166
      %v1456 = vsel %vm1424, %v1423, %v1168
      %vm1457 = vcmask 162816
      %v1459 = vsel %vm1457, %v1426, %v1173
      %v1461 = vsel %vm1457, %v1428, %v1175
      %v1463 = vsel %vm1457, %v1430, %v1177
      %v1465 = vsel %vm1457, %v1432, %v1179
      %v1467 = vsel %vm1457, %v1434, %v1181
      %v1469 = vsel %vm1457, %v1436, %v1183
      %v1471 = vsel %vm1457, %v1438, %v1185
      %v1473 = vsel %vm1457, %v1440, %v1187
      %v1475 = vsel %vm1457, %v1442, %v1189
      %v1477 = vsel %vm1457, %v1444, %v1191
      %v1479 = vsel %vm1457, %v1446, %v1193
      %v1481 = vsel %vm1457, %v1448, %v1195
      %v1483 = vsel %vm1457, %v1450, %v1197
      %v1485 = vsel %vm1457, %v1452, %v1199
      %v1487 = vsel %vm1457, %v1454, %v1201
      %v1489 = vsel %vm1457, %v1456, %v1203
      %vm1490 = vcmask 195584
      %v1492 = vsel %vm1490, %v1459, %v1208
      %v1494 = vsel %vm1490, %v1461, %v1210
      %v1496 = vsel %vm1490, %v1463, %v1212
      %v1498 = vsel %vm1490, %v1465, %v1214
      %v1500 = vsel %vm1490, %v1467, %v1216
      %v1502 = vsel %vm1490, %v1469, %v1218
      %v1504 = vsel %vm1490, %v1471, %v1220
      %v1506 = vsel %vm1490, %v1473, %v1222
      %v1508 = vsel %vm1490, %v1475, %v1224
      %v1510 = vsel %vm1490, %v1477, %v1226
      %v1512 = vsel %vm1490, %v1479, %v1228
      %v1514 = vsel %vm1490, %v1481, %v1230
      %v1516 = vsel %vm1490, %v1483, %v1232
      %v1518 = vsel %vm1490, %v1485, %v1234
      %v1520 = vsel %vm1490, %v1487, %v1236
      %v1522 = vsel %vm1490, %v1489, %v1238
      %vm1523 = vcmask 228352
      %v1525 = vsel %vm1523, %v1492, %v1243
      %v1527 = vsel %vm1523, %v1494, %v1245
      %v1529 = vsel %vm1523, %v1496, %v1247
      %v1531 = vsel %vm1523, %v1498, %v1249
      %v1533 = vsel %vm1523, %v1500, %v1251
      %v1535 = vsel %vm1523, %v1502, %v1253
      %v1537 = vsel %vm1523, %v1504, %v1255
      %v1539 = vsel %vm1523, %v1506, %v1257
      %v1541 = vsel %vm1523, %v1508, %v1259
      %v1543 = vsel %vm1523, %v1510, %v1261
      %v1545 = vsel %vm1523, %v1512, %v1263
      %v1547 = vsel %vm1523, %v1514, %v1265
      %v1549 = vsel %vm1523, %v1516, %v1267
      %v1551 = vsel %vm1523, %v1518, %v1269
      %v1553 = vsel %vm1523, %v1520, %v1271
      %v1555 = vsel %vm1523, %v1522, %v1273
      %vm1556 = vcmask 261120
      %v1558 = vsel %vm1556, %v1525, %v1278
      %v1560 = vsel %vm1556, %v1527, %v1280
      %v1562 = vsel %vm1556, %v1529, %v1282
      %v1564 = vsel %vm1556, %v1531, %v1284
      %v1566 = vsel %vm1556, %v1533, %v1286
      %v1568 = vsel %vm1556, %v1535, %v1288
      %v1570 = vsel %vm1556, %v1537, %v1290
      %v1572 = vsel %vm1556, %v1539, %v1292
      %v1574 = vsel %vm1556, %v1541, %v1294
      %v1576 = vsel %vm1556, %v1543, %v1296
      %v1578 = vsel %vm1556, %v1545, %v1298
      %v1580 = vsel %vm1556, %v1547, %v1300
      %v1582 = vsel %vm1556, %v1549, %v1302
      %v1584 = vsel %vm1556, %v1551, %v1304
      %v1586 = vsel %vm1556, %v1553, %v1306
      %v1588 = vsel %vm1556, %v1555, %v1308
      %v1589 = vld [vmem:[%s2] sm:$0xf]
      %v1590 = vld [vmem:[%s2 + $0x4] sm:$0xf]
      %v1591 = vld [vmem:[%s2 + $0x8] sm:$0xf]
      %v1592 = vld [vmem:[%s2 + $0xc] sm:$0xf]
      %v1593 = vld [vmem:[%s2 + $0x10] sm:$0x3]
      %v1594 = vld [vmem:[%s212] sm:$0xf]
      %v1595 = vld [vmem:[%s212 + $0x4] sm:$0xf]
      %v1596 = vld [vmem:[%s212 + $0x8] sm:$0x1]
      %v1597 = vld [vmem:[%s212 + $0xc] sm:$0xf]
      %v1598 = vld [vmem:[%s212 + $0x10] sm:$0xf]
      %v1599 = vld [vmem:[%s212 + $0x14] sm:$0x1]
      %v1600 = vld [vmem:[%s212 + $0x18] sm:$0xf]
      %v1601 = vld [vmem:[%s212 + $0x1c] sm:$0xf]
      %v1602 = vld [vmem:[%s212 + $0x20] sm:$0x1]
      %v1603 = vld [vmem:[%s212 + $0x24] sm:$0xf]
      %v1604 = vld [vmem:[%s212 + $0x28] sm:$0xf]
      %v1605 = vld [vmem:[%s212 + $0x2c] sm:$0x1]
      %v1606 = vld [vmem:[%s212 + $0x30] sm:$0xf]
      %v1607 = vld [vmem:[%s212 + $0x34] sm:$0xf]
      %v1608 = vld [vmem:[%s212 + $0x38] sm:$0x1]
      %v1609 = vld [vmem:[%s212 + $0x3c] sm:$0xf]
      %v1610 = vld [vmem:[%s212 + $0x40] sm:$0xf]
      %v1611 = vld [vmem:[%s212 + $0x44] sm:$0x1]
      %v1612 = vld [vmem:[%s212 + $0x48] sm:$0xf]
      %v1613 = vld [vmem:[%s212 + $0x4c] sm:$0xf]
      %v1614 = vld [vmem:[%s212 + $0x50] sm:$0x1]
      %v1615 = vld [vmem:[%s212 + $0x54] sm:$0xf]
      %v1616 = vld [vmem:[%s212 + $0x58] sm:$0xf]
      %v1617 = vld [vmem:[%s212 + $0x5c] sm:$0x1]
      %v1618 = vld [vmem:[%s212 + $0x60] sm:$0xf]
      %v1619 = vld [vmem:[%s212 + $0x64] sm:$0xf]
      %v1620 = vld [vmem:[%s212 + $0x68] sm:$0x1]
      %v1621 = vld [vmem:[%s212 + $0x6c] sm:$0xf]
      %v1622 = vld [vmem:[%s212 + $0x70] sm:$0xf]
      %v1623 = vld [vmem:[%s212 + $0x74] sm:$0x1]
      %v1624 = vld [vmem:[%s212 + $0x78] sm:$0xf]
      %v1625 = vld [vmem:[%s212 + $0x7c] sm:$0xf]
      %v1626 = vld [vmem:[%s212 + $0x80] sm:$0x1]
      %v1627 = vld [vmem:[%s212 + $0x84] sm:$0xf]
      %v1628 = vld [vmem:[%s212 + $0x88] sm:$0xf]
      %v1629 = vld [vmem:[%s212 + $0x8c] sm:$0x1]
      %v1630 = vld [vmem:[%s212 + $0x90] sm:$0xf]
      %v1631 = vld [vmem:[%s212 + $0x94] sm:$0xf]
      %v1632 = vld [vmem:[%s212 + $0x98] sm:$0x1]
      %v1633 = vld [vmem:[%s212 + $0x9c] sm:$0xf]
      %v1634 = vld [vmem:[%s212 + $0xa0] sm:$0xf]
      %v1635 = vld [vmem:[%s212 + $0xa4] sm:$0x1]
      %v1636 = vld [vmem:[%s212 + $0xa8] sm:$0xf]
      %v1637 = vld [vmem:[%s212 + $0xac] sm:$0xf]
      %v1638 = vld [vmem:[%s212 + $0xb0] sm:$0x1]
      %v1639 = vld [vmem:[%s212 + $0xb4] sm:$0xf]
      %v1640 = vld [vmem:[%s212 + $0xb8] sm:$0xf]
      %v1641 = vld [vmem:[%s212 + $0xbc] sm:$0x1]
      %v1642 = vld [vmem:[%s212 + $0xc0] sm:$0xf]
      %v1643 = vld [vmem:[%s212 + $0xc4] sm:$0xf]
      %v1644 = vld [vmem:[%s212 + $0xc8] sm:$0x1]
      %v1645 = vld [vmem:[%s212 + $0xcc] sm:$0xf]
      %v1646 = vld [vmem:[%s212 + $0xd0] sm:$0xf]
      %v1647 = vld [vmem:[%s212 + $0xd4] sm:$0x1]
      %v1649 = vshrl.u32 %v1594, 16
      %v1651 = vrot.slane %v1649, 4
      %v1652 = vshll.u32 %v1594, 16
      %v1654 = vrot.slane %v1652, 5
      %v1655 = vor.u32 %v1651, %v1654
      %v1656 = vrot.slane %v1655, 4
      %v1658 = vshll.u32 %v1595, 16
      %v1660 = vrot.slane %v1658, 5
      %v1661 = vsel %vm275, %v1656, %v1660
      %v1662 = vshrl.u32 %v1595, 16
      %v1664 = vrot.slane %v1662, 4
      %v1665 = vor.u32 %v1664, %v1660
      %v1666 = vrot.slane %v1665, 4
      %v1668 = vshll.u32 %v1596, 16
      %v1670 = vrot.slane %v1668, 5
      %v1671 = vsel %vm275, %v1666, %v1670
      %v1673 = vshrl.u32 %v1597, 16
      %v1675 = vrot.slane %v1673, 4
      %v1676 = vshll.u32 %v1597, 16
      %v1678 = vrot.slane %v1676, 5
      %v1679 = vor.u32 %v1675, %v1678
      %v1680 = vrot.slane %v1679, 4
      %v1682 = vshll.u32 %v1598, 16
      %v1684 = vrot.slane %v1682, 5
      %v1685 = vsel %vm275, %v1680, %v1684
      %v1686 = vshrl.u32 %v1598, 16
      %v1688 = vrot.slane %v1686, 4
      %v1689 = vor.u32 %v1688, %v1684
      %v1690 = vrot.slane %v1689, 4
      %v1692 = vshll.u32 %v1599, 16
      %v1694 = vrot.slane %v1692, 5
      %v1695 = vsel %vm275, %v1690, %v1694
      %v1697 = vshrl.u32 %v1600, 16
      %v1699 = vrot.slane %v1697, 4
      %v1700 = vshll.u32 %v1600, 16
      %v1702 = vrot.slane %v1700, 5
      %v1703 = vor.u32 %v1699, %v1702
      %v1704 = vrot.slane %v1703, 4
      %v1706 = vshll.u32 %v1601, 16
      %v1708 = vrot.slane %v1706, 5
      %v1709 = vsel %vm275, %v1704, %v1708
      %v1710 = vshrl.u32 %v1601, 16
      %v1712 = vrot.slane %v1710, 4
      %v1713 = vor.u32 %v1712, %v1708
      %v1714 = vrot.slane %v1713, 4
      %v1716 = vshll.u32 %v1602, 16
      %v1718 = vrot.slane %v1716, 5
      %v1719 = vsel %vm275, %v1714, %v1718
      %v1721 = vshrl.u32 %v1603, 16
      %v1723 = vrot.slane %v1721, 4
      %v1724 = vshll.u32 %v1603, 16
      %v1726 = vrot.slane %v1724, 5
      %v1727 = vor.u32 %v1723, %v1726
      %v1728 = vrot.slane %v1727, 4
      %v1730 = vshll.u32 %v1604, 16
      %v1732 = vrot.slane %v1730, 5
      %v1733 = vsel %vm275, %v1728, %v1732
      %v1734 = vshrl.u32 %v1604, 16
      %v1736 = vrot.slane %v1734, 4
      %v1737 = vor.u32 %v1736, %v1732
      %v1738 = vrot.slane %v1737, 4
      %v1740 = vshll.u32 %v1605, 16
      %v1742 = vrot.slane %v1740, 5
      %v1743 = vsel %vm275, %v1738, %v1742
      %v1745 = vshrl.u32 %v1606, 16
      %v1747 = vrot.slane %v1745, 4
      %v1748 = vshll.u32 %v1606, 16
      %v1750 = vrot.slane %v1748, 5
      %v1751 = vor.u32 %v1747, %v1750
      %v1752 = vrot.slane %v1751, 4
      %v1754 = vshll.u32 %v1607, 16
      %v1756 = vrot.slane %v1754, 5
      %v1757 = vsel %vm275, %v1752, %v1756
      %v1758 = vshrl.u32 %v1607, 16
      %v1760 = vrot.slane %v1758, 4
      %v1761 = vor.u32 %v1760, %v1756
      %v1762 = vrot.slane %v1761, 4
      %v1764 = vshll.u32 %v1608, 16
      %v1766 = vrot.slane %v1764, 5
      %v1767 = vsel %vm275, %v1762, %v1766
      %v1769 = vshrl.u32 %v1609, 16
      %v1771 = vrot.slane %v1769, 4
      %v1772 = vshll.u32 %v1609, 16
      %v1774 = vrot.slane %v1772, 5
      %v1775 = vor.u32 %v1771, %v1774
      %v1776 = vrot.slane %v1775, 4
      %v1778 = vshll.u32 %v1610, 16
      %v1780 = vrot.slane %v1778, 5
      %v1781 = vsel %vm275, %v1776, %v1780
      %v1782 = vshrl.u32 %v1610, 16
      %v1784 = vrot.slane %v1782, 4
      %v1785 = vor.u32 %v1784, %v1780
      %v1786 = vrot.slane %v1785, 4
      %v1788 = vshll.u32 %v1611, 16
      %v1790 = vrot.slane %v1788, 5
      %v1791 = vsel %vm275, %v1786, %v1790
      %v1793 = vshrl.u32 %v1612, 16
      %v1795 = vrot.slane %v1793, 4
      %v1796 = vshll.u32 %v1612, 16
      %v1798 = vrot.slane %v1796, 5
      %v1799 = vor.u32 %v1795, %v1798
      %v1800 = vrot.slane %v1799, 4
      %v1802 = vshll.u32 %v1613, 16
      %v1804 = vrot.slane %v1802, 5
      %v1805 = vsel %vm275, %v1800, %v1804
      %v1806 = vshrl.u32 %v1613, 16
      %v1808 = vrot.slane %v1806, 4
      %v1809 = vor.u32 %v1808, %v1804
      %v1810 = vrot.slane %v1809, 4
      %v1812 = vshll.u32 %v1614, 16
      %v1814 = vrot.slane %v1812, 5
      %v1815 = vsel %vm275, %v1810, %v1814
      %v1817 = vshrl.u32 %v1615, 16
      %v1819 = vrot.slane %v1817, 4
      %v1820 = vshll.u32 %v1615, 16
      %v1822 = vrot.slane %v1820, 5
      %v1823 = vor.u32 %v1819, %v1822
      %v1824 = vrot.slane %v1823, 4
      %v1826 = vshll.u32 %v1616, 16
      %v1828 = vrot.slane %v1826, 5
      %v1829 = vsel %vm275, %v1824, %v1828
      %v1830 = vshrl.u32 %v1616, 16
      %v1832 = vrot.slane %v1830, 4
      %v1833 = vor.u32 %v1832, %v1828
      %v1834 = vrot.slane %v1833, 4
      %v1836 = vshll.u32 %v1617, 16
      %v1838 = vrot.slane %v1836, 5
      %v1839 = vsel %vm275, %v1834, %v1838
      %v1841 = vshrl.u32 %v1618, 16
      %v1843 = vrot.slane %v1841, 4
      %v1844 = vshll.u32 %v1618, 16
      %v1846 = vrot.slane %v1844, 5
      %v1847 = vor.u32 %v1843, %v1846
      %v1848 = vrot.slane %v1847, 4
      %v1850 = vshll.u32 %v1619, 16
      %v1852 = vrot.slane %v1850, 5
      %v1853 = vsel %vm275, %v1848, %v1852
      %v1854 = vshrl.u32 %v1619, 16
      %v1856 = vrot.slane %v1854, 4
      %v1857 = vor.u32 %v1856, %v1852
      %v1858 = vrot.slane %v1857, 4
      %v1860 = vshll.u32 %v1620, 16
      %v1862 = vrot.slane %v1860, 5
      %v1863 = vsel %vm275, %v1858, %v1862
      %v1865 = vshrl.u32 %v1621, 16
      %v1867 = vrot.slane %v1865, 4
      %v1868 = vshll.u32 %v1621, 16
      %v1870 = vrot.slane %v1868, 5
      %v1871 = vor.u32 %v1867, %v1870
      %v1872 = vrot.slane %v1871, 4
      %v1874 = vshll.u32 %v1622, 16
      %v1876 = vrot.slane %v1874, 5
      %v1877 = vsel %vm275, %v1872, %v1876
      %v1878 = vshrl.u32 %v1622, 16
      %v1880 = vrot.slane %v1878, 4
      %v1881 = vor.u32 %v1880, %v1876
      %v1882 = vrot.slane %v1881, 4
      %v1884 = vshll.u32 %v1623, 16
      %v1886 = vrot.slane %v1884, 5
      %v1887 = vsel %vm275, %v1882, %v1886
      %v1889 = vshrl.u32 %v1624, 16
      %v1891 = vrot.slane %v1889, 4
      %v1892 = vshll.u32 %v1624, 16
      %v1894 = vrot.slane %v1892, 5
      %v1895 = vor.u32 %v1891, %v1894
      %v1896 = vrot.slane %v1895, 4
      %v1898 = vshll.u32 %v1625, 16
      %v1900 = vrot.slane %v1898, 5
      %v1901 = vsel %vm275, %v1896, %v1900
      %v1902 = vshrl.u32 %v1625, 16
      %v1904 = vrot.slane %v1902, 4
      %v1905 = vor.u32 %v1904, %v1900
      %v1906 = vrot.slane %v1905, 4
      %v1908 = vshll.u32 %v1626, 16
      %v1910 = vrot.slane %v1908, 5
      %v1911 = vsel %vm275, %v1906, %v1910
      %v1913 = vshrl.u32 %v1627, 16
      %v1915 = vrot.slane %v1913, 4
      %v1916 = vshll.u32 %v1627, 16
      %v1918 = vrot.slane %v1916, 5
      %v1919 = vor.u32 %v1915, %v1918
      %v1920 = vrot.slane %v1919, 4
      %v1922 = vshll.u32 %v1628, 16
      %v1924 = vrot.slane %v1922, 5
      %v1925 = vsel %vm275, %v1920, %v1924
      %v1926 = vshrl.u32 %v1628, 16
      %v1928 = vrot.slane %v1926, 4
      %v1929 = vor.u32 %v1928, %v1924
      %v1930 = vrot.slane %v1929, 4
      %v1932 = vshll.u32 %v1629, 16
      %v1934 = vrot.slane %v1932, 5
      %v1935 = vsel %vm275, %v1930, %v1934
      %v1937 = vshrl.u32 %v1630, 16
      %v1939 = vrot.slane %v1937, 4
      %v1940 = vshll.u32 %v1630, 16
      %v1942 = vrot.slane %v1940, 5
      %v1943 = vor.u32 %v1939, %v1942
      %v1944 = vrot.slane %v1943, 4
      %v1946 = vshll.u32 %v1631, 16
      %v1948 = vrot.slane %v1946, 5
      %v1949 = vsel %vm275, %v1944, %v1948
      %v1950 = vshrl.u32 %v1631, 16
      %v1952 = vrot.slane %v1950, 4
      %v1953 = vor.u32 %v1952, %v1948
      %v1954 = vrot.slane %v1953, 4
      %v1956 = vshll.u32 %v1632, 16
      %v1958 = vrot.slane %v1956, 5
      %v1959 = vsel %vm275, %v1954, %v1958
      %v1961 = vshrl.u32 %v1633, 16
      %v1963 = vrot.slane %v1961, 4
      %v1964 = vshll.u32 %v1633, 16
      %v1966 = vrot.slane %v1964, 5
      %v1967 = vor.u32 %v1963, %v1966
      %v1968 = vrot.slane %v1967, 4
      %v1970 = vshll.u32 %v1634, 16
      %v1972 = vrot.slane %v1970, 5
      %v1973 = vsel %vm275, %v1968, %v1972
      %v1974 = vshrl.u32 %v1634, 16
      %v1976 = vrot.slane %v1974, 4
      %v1977 = vor.u32 %v1976, %v1972
      %v1978 = vrot.slane %v1977, 4
      %v1980 = vshll.u32 %v1635, 16
      %v1982 = vrot.slane %v1980, 5
      %v1983 = vsel %vm275, %v1978, %v1982
      %v1985 = vshrl.u32 %v1636, 16
      %v1987 = vrot.slane %v1985, 4
      %v1988 = vshll.u32 %v1636, 16
      %v1990 = vrot.slane %v1988, 5
      %v1991 = vor.u32 %v1987, %v1990
      %v1992 = vrot.slane %v1991, 4
      %v1994 = vshll.u32 %v1637, 16
      %v1996 = vrot.slane %v1994, 5
      %v1997 = vsel %vm275, %v1992, %v1996
      %v1998 = vshrl.u32 %v1637, 16
      %v2000 = vrot.slane %v1998, 4
      %v2001 = vor.u32 %v2000, %v1996
      %v2002 = vrot.slane %v2001, 4
      %v2004 = vshll.u32 %v1638, 16
      %v2006 = vrot.slane %v2004, 5
      %v2007 = vsel %vm275, %v2002, %v2006
      %v2009 = vshrl.u32 %v1639, 16
      %v2011 = vrot.slane %v2009, 4
      %v2012 = vshll.u32 %v1639, 16
      %v2014 = vrot.slane %v2012, 5
      %v2015 = vor.u32 %v2011, %v2014
      %v2016 = vrot.slane %v2015, 4
      %v2018 = vshll.u32 %v1640, 16
      %v2020 = vrot.slane %v2018, 5
      %v2021 = vsel %vm275, %v2016, %v2020
      %v2022 = vshrl.u32 %v1640, 16
      %v2024 = vrot.slane %v2022, 4
      %v2025 = vor.u32 %v2024, %v2020
      %v2026 = vrot.slane %v2025, 4
      %v2028 = vshll.u32 %v1641, 16
      %v2030 = vrot.slane %v2028, 5
      %v2031 = vsel %vm275, %v2026, %v2030
      %v2080 = vrot.slane %v1594, 5
      %v2081 = vrot.slane %v2080, 4
      %v2082 = vrot.slane %v1595, 5
      %v2083 = vsel %vm710, %v2081, %v2082
      %v2084 = vrot.slane %v2082, 4
      %v2085 = vrot.slane %v1596, 5
      %v2086 = vsel %vm710, %v2084, %v2085
      %v2087 = vrot.slane %v1597, 5
      %v2088 = vrot.slane %v2087, 4
      %v2089 = vrot.slane %v1598, 5
      %v2090 = vsel %vm710, %v2088, %v2089
      %v2091 = vrot.slane %v2089, 4
      %v2092 = vrot.slane %v1599, 5
      %v2093 = vsel %vm710, %v2091, %v2092
      %v2094 = vrot.slane %v1600, 5
      %v2095 = vrot.slane %v2094, 4
      %v2096 = vrot.slane %v1601, 5
      %v2097 = vsel %vm710, %v2095, %v2096
      %v2098 = vrot.slane %v2096, 4
      %v2099 = vrot.slane %v1602, 5
      %v2100 = vsel %vm710, %v2098, %v2099
      %v2101 = vrot.slane %v1603, 5
      %v2102 = vrot.slane %v2101, 4
      %v2103 = vrot.slane %v1604, 5
      %v2104 = vsel %vm710, %v2102, %v2103
      %v2105 = vrot.slane %v2103, 4
      %v2106 = vrot.slane %v1605, 5
      %v2107 = vsel %vm710, %v2105, %v2106
      %v2108 = vrot.slane %v1606, 5
      %v2109 = vrot.slane %v2108, 4
      %v2110 = vrot.slane %v1607, 5
      %v2111 = vsel %vm710, %v2109, %v2110
      %v2112 = vrot.slane %v2110, 4
      %v2113 = vrot.slane %v1608, 5
      %v2114 = vsel %vm710, %v2112, %v2113
      %v2115 = vrot.slane %v1609, 5
      %v2116 = vrot.slane %v2115, 4
      %v2117 = vrot.slane %v1610, 5
      %v2118 = vsel %vm710, %v2116, %v2117
      %v2119 = vrot.slane %v2117, 4
      %v2120 = vrot.slane %v1611, 5
      %v2121 = vsel %vm710, %v2119, %v2120
      %v2122 = vrot.slane %v1612, 5
      %v2123 = vrot.slane %v2122, 4
      %v2124 = vrot.slane %v1613, 5
      %v2125 = vsel %vm710, %v2123, %v2124
      %v2126 = vrot.slane %v2124, 4
      %v2127 = vrot.slane %v1614, 5
      %v2128 = vsel %vm710, %v2126, %v2127
      %v2129 = vrot.slane %v1615, 5
      %v2130 = vrot.slane %v2129, 4
      %v2131 = vrot.slane %v1616, 5
      %v2132 = vsel %vm710, %v2130, %v2131
      %v2133 = vrot.slane %v2131, 4
      %v2134 = vrot.slane %v1617, 5
      %v2135 = vsel %vm710, %v2133, %v2134
      %v2136 = vrot.slane %v1618, 5
      %v2137 = vrot.slane %v2136, 4
      %v2138 = vrot.slane %v1619, 5
      %v2139 = vsel %vm710, %v2137, %v2138
      %v2140 = vrot.slane %v2138, 4
      %v2141 = vrot.slane %v1620, 5
      %v2142 = vsel %vm710, %v2140, %v2141
      %v2143 = vrot.slane %v1621, 5
      %v2144 = vrot.slane %v2143, 4
      %v2145 = vrot.slane %v1622, 5
      %v2146 = vsel %vm710, %v2144, %v2145
      %v2147 = vrot.slane %v2145, 4
      %v2148 = vrot.slane %v1623, 5
      %v2149 = vsel %vm710, %v2147, %v2148
      %v2150 = vrot.slane %v1624, 5
      %v2151 = vrot.slane %v2150, 4
      %v2152 = vrot.slane %v1625, 5
      %v2153 = vsel %vm710, %v2151, %v2152
      %v2154 = vrot.slane %v2152, 4
      %v2155 = vrot.slane %v1626, 5
      %v2156 = vsel %vm710, %v2154, %v2155
      %v2157 = vrot.slane %v1627, 5
      %v2158 = vrot.slane %v2157, 4
      %v2159 = vrot.slane %v1628, 5
      %v2160 = vsel %vm710, %v2158, %v2159
      %v2161 = vrot.slane %v2159, 4
      %v2162 = vrot.slane %v1629, 5
      %v2163 = vsel %vm710, %v2161, %v2162
      %v2164 = vrot.slane %v1630, 5
      %v2165 = vrot.slane %v2164, 4
      %v2166 = vrot.slane %v1631, 5
      %v2167 = vsel %vm710, %v2165, %v2166
      %v2168 = vrot.slane %v2166, 4
      %v2169 = vrot.slane %v1632, 5
      %v2170 = vsel %vm710, %v2168, %v2169
      %v2171 = vrot.slane %v1633, 5
      %v2172 = vrot.slane %v2171, 4
      %v2173 = vrot.slane %v1634, 5
      %v2174 = vsel %vm710, %v2172, %v2173
      %v2175 = vrot.slane %v2173, 4
      %v2176 = vrot.slane %v1635, 5
      %v2177 = vsel %vm710, %v2175, %v2176
      %v2178 = vrot.slane %v1636, 5
      %v2179 = vrot.slane %v2178, 4
      %v2180 = vrot.slane %v1637, 5
      %v2181 = vsel %vm710, %v2179, %v2180
      %v2182 = vrot.slane %v2180, 4
      %v2183 = vrot.slane %v1638, 5
      %v2184 = vsel %vm710, %v2182, %v2183
      %v2185 = vrot.slane %v1639, 5
      %v2186 = vrot.slane %v2185, 4
      %v2187 = vrot.slane %v1640, 5
      %v2188 = vsel %vm710, %v2186, %v2187
      %v2189 = vrot.slane %v2187, 4
      %v2190 = vrot.slane %v1641, 5
      %v2191 = vsel %vm710, %v2189, %v2190
      %v2193 = vshrl.u32 %v1642, 16
      %v2195 = vrot.slane %v2193, 4
      %v2196 = vshll.u32 %v1642, 16
      %v2198 = vrot.slane %v2196, 5
      %v2199 = vor.u32 %v2195, %v2198
      %v2200 = vrot.slane %v2199, 4
      %v2202 = vshll.u32 %v1643, 16
      %v2204 = vrot.slane %v2202, 5
      %v2205 = vsel %vm275, %v2200, %v2204
      %v2206 = vshrl.u32 %v1643, 16
      %v2208 = vrot.slane %v2206, 4
      %v2209 = vor.u32 %v2208, %v2204
      %v2210 = vrot.slane %v2209, 4
      %v2212 = vshll.u32 %v1644, 16
      %v2214 = vrot.slane %v2212, 5
      %v2215 = vsel %vm275, %v2210, %v2214
      %v2219 = vrot.slane %v1642, 5
      %v2220 = vrot.slane %v2219, 4
      %v2221 = vrot.slane %v1643, 5
      %v2222 = vsel %vm710, %v2220, %v2221
      %v2223 = vrot.slane %v2221, 4
      %v2224 = vrot.slane %v1644, 5
      %v2225 = vsel %vm710, %v2223, %v2224
      %v2227 = vshrl.u32 %v1645, 16
      %v2229 = vrot.slane %v2227, 4
      %v2230 = vshll.u32 %v1645, 16
      %v2232 = vrot.slane %v2230, 5
      %v2233 = vor.u32 %v2229, %v2232
      %v2234 = vrot.slane %v2233, 4
      %v2236 = vshll.u32 %v1646, 16
      %v2238 = vrot.slane %v2236, 5
      %v2239 = vsel %vm275, %v2234, %v2238
      %v2240 = vshrl.u32 %v1646, 16
      %v2242 = vrot.slane %v2240, 4
      %v2243 = vor.u32 %v2242, %v2238
      %v2244 = vrot.slane %v2243, 4
      %v2246 = vshll.u32 %v1647, 16
      %v2248 = vrot.slane %v2246, 5
      %v2249 = vsel %vm275, %v2244, %v2248
      %v2253 = vrot.slane %v1645, 5
      %v2254 = vrot.slane %v2253, 4
      %v2255 = vrot.slane %v1646, 5
      %v2256 = vsel %vm710, %v2254, %v2255
      %v2257 = vrot.slane %v2255, 4
      %v2258 = vrot.slane %v1647, 5
      %v2259 = vsel %vm710, %v2257, %v2258
      %v2260 = vunpack.c.l.b16 %v1594
      %v2261 = vunpack.c.l.b16 %v1595
      %v2262 = vunpack.c.l.b16 %v1597
      %v2263 = vunpack.c.l.b16 %v1598
      %v2264 = vunpack.c.l.b16 %v1600
      %v2265 = vunpack.c.l.b16 %v1601
      %v2266 = vunpack.c.l.b16 %v1603
      %v2267 = vunpack.c.l.b16 %v1604
      %v2268 = vunpack.c.l.b16 %v1606
      %v2269 = vunpack.c.l.b16 %v1607
      %v2270 = vunpack.c.l.b16 %v1609
      %v2271 = vunpack.c.l.b16 %v1610
      %v2272 = vunpack.c.l.b16 %v1612
      %v2273 = vunpack.c.l.b16 %v1613
      %v2274 = vunpack.c.l.b16 %v1615
      %v2275 = vunpack.c.l.b16 %v1616
      %v2276 = vunpack.c.l.b16 %v1618
      %v2277 = vunpack.c.l.b16 %v1619
      %v2278 = vunpack.c.l.b16 %v1621
      %v2279 = vunpack.c.l.b16 %v1622
      %v2280 = vunpack.c.l.b16 %v1624
      %v2281 = vunpack.c.l.b16 %v1625
      %v2282 = vunpack.c.l.b16 %v1627
      %v2283 = vunpack.c.l.b16 %v1628
      %v2284 = vunpack.c.l.b16 %v1630
      %v2285 = vunpack.c.l.b16 %v1631
      %v2286 = vunpack.c.l.b16 %v1633
      %v2287 = vunpack.c.l.b16 %v1634
      %v2288 = vunpack.c.l.b16 %v1636
      %v2289 = vunpack.c.l.b16 %v1637
      %v2290 = vunpack.c.l.b16 %v1639
      %v2291 = vunpack.c.l.b16 %v1640
      %v2292 = vpack.c.b16 %v2261, %v2260
      %v2293 = vpack.c.b16 %v2263, %v2262
      %v2294 = vpack.c.b16 %v2265, %v2264
      %v2295 = vpack.c.b16 %v2267, %v2266
      %v2296 = vpack.c.b16 %v2269, %v2268
      %v2297 = vpack.c.b16 %v2271, %v2270
      %v2298 = vpack.c.b16 %v2273, %v2272
      %v2299 = vpack.c.b16 %v2275, %v2274
      %v2300 = vpack.c.b16 %v2277, %v2276
      %v2301 = vpack.c.b16 %v2279, %v2278
      %v2302 = vpack.c.b16 %v2281, %v2280
      %v2303 = vpack.c.b16 %v2283, %v2282
      %v2304 = vpack.c.b16 %v2285, %v2284
      %v2305 = vpack.c.b16 %v2287, %v2286
      %v2306 = vpack.c.b16 %v2289, %v2288
      %v2307 = vpack.c.b16 %v2291, %v2290
      %v2308 = vunpack.c.l.b16 %v1661
      %v2309 = vunpack.c.l.b16 %v1671
      %v2310 = vunpack.c.l.b16 %v1685
      %v2311 = vunpack.c.l.b16 %v1695
      %v2312 = vunpack.c.l.b16 %v1709
      %v2313 = vunpack.c.l.b16 %v1719
      %v2314 = vunpack.c.l.b16 %v1733
      %v2315 = vunpack.c.l.b16 %v1743
      %v2316 = vunpack.c.l.b16 %v1757
      %v2317 = vunpack.c.l.b16 %v1767
      %v2318 = vunpack.c.l.b16 %v1781
      %v2319 = vunpack.c.l.b16 %v1791
      %v2320 = vunpack.c.l.b16 %v1805
      %v2321 = vunpack.c.l.b16 %v1815
      %v2322 = vunpack.c.l.b16 %v1829
      %v2323 = vunpack.c.l.b16 %v1839
      %v2324 = vunpack.c.l.b16 %v1853
      %v2325 = vunpack.c.l.b16 %v1863
      %v2326 = vunpack.c.l.b16 %v1877
      %v2327 = vunpack.c.l.b16 %v1887
      %v2328 = vunpack.c.l.b16 %v1901
      %v2329 = vunpack.c.l.b16 %v1911
      %v2330 = vunpack.c.l.b16 %v1925
      %v2331 = vunpack.c.l.b16 %v1935
      %v2332 = vunpack.c.l.b16 %v1949
      %v2333 = vunpack.c.l.b16 %v1959
      %v2334 = vunpack.c.l.b16 %v1973
      %v2335 = vunpack.c.l.b16 %v1983
      %v2336 = vunpack.c.l.b16 %v1997
      %v2337 = vunpack.c.l.b16 %v2007
      %v2338 = vunpack.c.l.b16 %v2021
      %v2339 = vunpack.c.l.b16 %v2031
      %v2340 = vpack.c.b16 %v2309, %v2308
      %v2341 = vpack.c.b16 %v2311, %v2310
      %v2342 = vpack.c.b16 %v2313, %v2312
      %v2343 = vpack.c.b16 %v2315, %v2314
      %v2344 = vpack.c.b16 %v2317, %v2316
      %v2345 = vpack.c.b16 %v2319, %v2318
      %v2346 = vpack.c.b16 %v2321, %v2320
      %v2347 = vpack.c.b16 %v2323, %v2322
      %v2348 = vpack.c.b16 %v2325, %v2324
      %v2349 = vpack.c.b16 %v2327, %v2326
      %v2350 = vpack.c.b16 %v2329, %v2328
      %v2351 = vpack.c.b16 %v2331, %v2330
      %v2352 = vpack.c.b16 %v2333, %v2332
      %v2353 = vpack.c.b16 %v2335, %v2334
      %v2354 = vpack.c.b16 %v2337, %v2336
      %v2355 = vpack.c.b16 %v2339, %v2338
      %2356 = vrot.lane.b32.xlu0 %v2340, 4
      %v2357 = vpop.permute.xlu0 %2356
      %2358 = vrot.lane.b32.xlu0 %v2341, 4
      %v2359 = vpop.permute.xlu0 %2358
      %2360 = vrot.lane.b32.xlu0 %v2342, 4
      %v2361 = vpop.permute.xlu0 %2360
      %2362 = vrot.lane.b32.xlu0 %v2343, 4
      %v2363 = vpop.permute.xlu0 %2362
      %2364 = vrot.lane.b32.xlu0 %v2344, 4
      %v2365 = vpop.permute.xlu0 %2364
      %2366 = vrot.lane.b32.xlu0 %v2345, 4
      %v2367 = vpop.permute.xlu0 %2366
      %2368 = vrot.lane.b32.xlu0 %v2346, 4
      %v2369 = vpop.permute.xlu0 %2368
      %2370 = vrot.lane.b32.xlu0 %v2347, 4
      %v2371 = vpop.permute.xlu0 %2370
      %2372 = vrot.lane.b32.xlu0 %v2348, 4
      %v2373 = vpop.permute.xlu0 %2372
      %2374 = vrot.lane.b32.xlu0 %v2349, 4
      %v2375 = vpop.permute.xlu0 %2374
      %2376 = vrot.lane.b32.xlu0 %v2350, 4
      %v2377 = vpop.permute.xlu0 %2376
      %2378 = vrot.lane.b32.xlu0 %v2351, 4
      %v2379 = vpop.permute.xlu0 %2378
      %2380 = vrot.lane.b32.xlu0 %v2352, 4
      %v2381 = vpop.permute.xlu0 %2380
      %2382 = vrot.lane.b32.xlu0 %v2353, 4
      %v2383 = vpop.permute.xlu0 %2382
      %2384 = vrot.lane.b32.xlu0 %v2354, 4
      %v2385 = vpop.permute.xlu0 %2384
      %2386 = vrot.lane.b32.xlu0 %v2355, 4
      %v2387 = vpop.permute.xlu0 %2386
      %v2388 = vunpack.c.l.b16 %v2083
      %v2389 = vunpack.c.l.b16 %v2086
      %v2390 = vunpack.c.l.b16 %v2090
      %v2391 = vunpack.c.l.b16 %v2093
      %v2392 = vunpack.c.l.b16 %v2097
      %v2393 = vunpack.c.l.b16 %v2100
      %v2394 = vunpack.c.l.b16 %v2104
      %v2395 = vunpack.c.l.b16 %v2107
      %v2396 = vunpack.c.l.b16 %v2111
      %v2397 = vunpack.c.l.b16 %v2114
      %v2398 = vunpack.c.l.b16 %v2118
      %v2399 = vunpack.c.l.b16 %v2121
      %v2400 = vunpack.c.l.b16 %v2125
      %v2401 = vunpack.c.l.b16 %v2128
      %v2402 = vunpack.c.l.b16 %v2132
      %v2403 = vunpack.c.l.b16 %v2135
      %v2404 = vunpack.c.l.b16 %v2139
      %v2405 = vunpack.c.l.b16 %v2142
      %v2406 = vunpack.c.l.b16 %v2146
      %v2407 = vunpack.c.l.b16 %v2149
      %v2408 = vunpack.c.l.b16 %v2153
      %v2409 = vunpack.c.l.b16 %v2156
      %v2410 = vunpack.c.l.b16 %v2160
      %v2411 = vunpack.c.l.b16 %v2163
      %v2412 = vunpack.c.l.b16 %v2167
      %v2413 = vunpack.c.l.b16 %v2170
      %v2414 = vunpack.c.l.b16 %v2174
      %v2415 = vunpack.c.l.b16 %v2177
      %v2416 = vunpack.c.l.b16 %v2181
      %v2417 = vunpack.c.l.b16 %v2184
      %v2418 = vunpack.c.l.b16 %v2188
      %v2419 = vunpack.c.l.b16 %v2191
      %v2420 = vpack.c.b16 %v2389, %v2388
      %v2421 = vpack.c.b16 %v2391, %v2390
      %v2422 = vpack.c.b16 %v2393, %v2392
      %v2423 = vpack.c.b16 %v2395, %v2394
      %v2424 = vpack.c.b16 %v2397, %v2396
      %v2425 = vpack.c.b16 %v2399, %v2398
      %v2426 = vpack.c.b16 %v2401, %v2400
      %v2427 = vpack.c.b16 %v2403, %v2402
      %v2428 = vpack.c.b16 %v2405, %v2404
      %v2429 = vpack.c.b16 %v2407, %v2406
      %v2430 = vpack.c.b16 %v2409, %v2408
      %v2431 = vpack.c.b16 %v2411, %v2410
      %v2432 = vpack.c.b16 %v2413, %v2412
      %v2433 = vpack.c.b16 %v2415, %v2414
      %v2434 = vpack.c.b16 %v2417, %v2416
      %v2435 = vpack.c.b16 %v2419, %v2418
      %2436 = vrot.lane.b32.xlu0 %v2420, 8
      %v2437 = vpop.permute.xlu0 %2436
      %2438 = vrot.lane.b32.xlu0 %v2421, 8
      %v2439 = vpop.permute.xlu0 %2438
      %2440 = vrot.lane.b32.xlu0 %v2422, 8
      %v2441 = vpop.permute.xlu0 %2440
      %2442 = vrot.lane.b32.xlu0 %v2423, 8
      %v2443 = vpop.permute.xlu0 %2442
      %2444 = vrot.lane.b32.xlu0 %v2424, 8
      %v2445 = vpop.permute.xlu0 %2444
      %2446 = vrot.lane.b32.xlu0 %v2425, 8
      %v2447 = vpop.permute.xlu0 %2446
      %2448 = vrot.lane.b32.xlu0 %v2426, 8
      %v2449 = vpop.permute.xlu0 %2448
      %2450 = vrot.lane.b32.xlu0 %v2427, 8
      %v2451 = vpop.permute.xlu0 %2450
      %2452 = vrot.lane.b32.xlu0 %v2428, 8
      %v2453 = vpop.permute.xlu0 %2452
      %2454 = vrot.lane.b32.xlu0 %v2429, 8
      %v2455 = vpop.permute.xlu0 %2454
      %2456 = vrot.lane.b32.xlu0 %v2430, 8
      %v2457 = vpop.permute.xlu0 %2456
      %2458 = vrot.lane.b32.xlu0 %v2431, 8
      %v2459 = vpop.permute.xlu0 %2458
      %2460 = vrot.lane.b32.xlu0 %v2432, 8
      %v2461 = vpop.permute.xlu0 %2460
      %2462 = vrot.lane.b32.xlu0 %v2433, 8
      %v2463 = vpop.permute.xlu0 %2462
      %2464 = vrot.lane.b32.xlu0 %v2434, 8
      %v2465 = vpop.permute.xlu0 %2464
      %2466 = vrot.lane.b32.xlu0 %v2435, 8
      %v2467 = vpop.permute.xlu0 %2466
      %v2468 = vunpack.c.l.b16 %v1642
      %v2469 = vunpack.c.l.b16 %v1643
      %v2470 = vpack.c.b16 %v2469, %v2468
      %2471 = vrot.lane.b32.xlu0 %v2293, 12
      %v2472 = vpop.permute.xlu0 %2471
      %2473 = vrot.lane.b32.xlu0 %v2294, 12
      %v2474 = vpop.permute.xlu0 %2473
      %2475 = vrot.lane.b32.xlu0 %v2295, 12
      %v2476 = vpop.permute.xlu0 %2475
      %2477 = vrot.lane.b32.xlu0 %v2296, 12
      %v2478 = vpop.permute.xlu0 %2477
      %2479 = vrot.lane.b32.xlu0 %v2297, 12
      %v2480 = vpop.permute.xlu0 %2479
      %2481 = vrot.lane.b32.xlu0 %v2298, 12
      %v2482 = vpop.permute.xlu0 %2481
      %2483 = vrot.lane.b32.xlu0 %v2299, 12
      %v2484 = vpop.permute.xlu0 %2483
      %2485 = vrot.lane.b32.xlu0 %v2300, 12
      %v2486 = vpop.permute.xlu0 %2485
      %2487 = vrot.lane.b32.xlu0 %v2301, 12
      %v2488 = vpop.permute.xlu0 %2487
      %2489 = vrot.lane.b32.xlu0 %v2302, 12
      %v2490 = vpop.permute.xlu0 %2489
      %2491 = vrot.lane.b32.xlu0 %v2303, 12
      %v2492 = vpop.permute.xlu0 %2491
      %2493 = vrot.lane.b32.xlu0 %v2304, 12
      %v2494 = vpop.permute.xlu0 %2493
      %2495 = vrot.lane.b32.xlu0 %v2305, 12
      %v2496 = vpop.permute.xlu0 %2495
      %2497 = vrot.lane.b32.xlu0 %v2306, 12
      %v2498 = vpop.permute.xlu0 %2497
      %2499 = vrot.lane.b32.xlu0 %v2307, 12
      %v2500 = vpop.permute.xlu0 %2499
      %2501 = vrot.lane.b32.xlu0 %v2470, 12
      %v2502 = vpop.permute.xlu0 %2501
      %v2503 = vunpack.c.l.b16 %v2205
      %v2504 = vunpack.c.l.b16 %v2215
      %v2505 = vpack.c.b16 %v2504, %v2503
      %2506 = vrot.lane.b32.xlu0 %v2341, 16
      %v2507 = vpop.permute.xlu0 %2506
      %2508 = vrot.lane.b32.xlu0 %v2342, 16
      %v2509 = vpop.permute.xlu0 %2508
      %2510 = vrot.lane.b32.xlu0 %v2343, 16
      %v2511 = vpop.permute.xlu0 %2510
      %2512 = vrot.lane.b32.xlu0 %v2344, 16
      %v2513 = vpop.permute.xlu0 %2512
      %2514 = vrot.lane.b32.xlu0 %v2345, 16
      %v2515 = vpop.permute.xlu0 %2514
      %2516 = vrot.lane.b32.xlu0 %v2346, 16
      %v2517 = vpop.permute.xlu0 %2516
      %2518 = vrot.lane.b32.xlu0 %v2347, 16
      %v2519 = vpop.permute.xlu0 %2518
      %2520 = vrot.lane.b32.xlu0 %v2348, 16
      %v2521 = vpop.permute.xlu0 %2520
      %2522 = vrot.lane.b32.xlu0 %v2349, 16
      %v2523 = vpop.permute.xlu0 %2522
      %2524 = vrot.lane.b32.xlu0 %v2350, 16
      %v2525 = vpop.permute.xlu0 %2524
      %2526 = vrot.lane.b32.xlu0 %v2351, 16
      %v2527 = vpop.permute.xlu0 %2526
      %2528 = vrot.lane.b32.xlu0 %v2352, 16
      %v2529 = vpop.permute.xlu0 %2528
      %2530 = vrot.lane.b32.xlu0 %v2353, 16
      %v2531 = vpop.permute.xlu0 %2530
      %2532 = vrot.lane.b32.xlu0 %v2354, 16
      %v2533 = vpop.permute.xlu0 %2532
      %2534 = vrot.lane.b32.xlu0 %v2355, 16
      %v2535 = vpop.permute.xlu0 %2534
      %2536 = vrot.lane.b32.xlu0 %v2505, 16
      %v2537 = vpop.permute.xlu0 %2536
      %v2538 = vunpack.c.l.b16 %v2222
      %v2539 = vunpack.c.l.b16 %v2225
      %v2540 = vpack.c.b16 %v2539, %v2538
      %2541 = vrot.lane.b32.xlu0 %v2421, 20
      %v2542 = vpop.permute.xlu0 %2541
      %2543 = vrot.lane.b32.xlu0 %v2422, 20
      %v2544 = vpop.permute.xlu0 %2543
      %2545 = vrot.lane.b32.xlu0 %v2423, 20
      %v2546 = vpop.permute.xlu0 %2545
      %2547 = vrot.lane.b32.xlu0 %v2424, 20
      %v2548 = vpop.permute.xlu0 %2547
      %2549 = vrot.lane.b32.xlu0 %v2425, 20
      %v2550 = vpop.permute.xlu0 %2549
      %2551 = vrot.lane.b32.xlu0 %v2426, 20
      %v2552 = vpop.permute.xlu0 %2551
      %2553 = vrot.lane.b32.xlu0 %v2427, 20
      %v2554 = vpop.permute.xlu0 %2553
      %2555 = vrot.lane.b32.xlu0 %v2428, 20
      %v2556 = vpop.permute.xlu0 %2555
      %2557 = vrot.lane.b32.xlu0 %v2429, 20
      %v2558 = vpop.permute.xlu0 %2557
      %2559 = vrot.lane.b32.xlu0 %v2430, 20
      %v2560 = vpop.permute.xlu0 %2559
      %2561 = vrot.lane.b32.xlu0 %v2431, 20
      %v2562 = vpop.permute.xlu0 %2561
      %2563 = vrot.lane.b32.xlu0 %v2432, 20
      %v2564 = vpop.permute.xlu0 %2563
      %2565 = vrot.lane.b32.xlu0 %v2433, 20
      %v2566 = vpop.permute.xlu0 %2565
      %2567 = vrot.lane.b32.xlu0 %v2434, 20
      %v2568 = vpop.permute.xlu0 %2567
      %2569 = vrot.lane.b32.xlu0 %v2435, 20
      %v2570 = vpop.permute.xlu0 %2569
      %2571 = vrot.lane.b32.xlu0 %v2540, 20
      %v2572 = vpop.permute.xlu0 %2571
      %v2573 = vunpack.c.l.b16 %v1645
      %v2574 = vunpack.c.l.b16 %v1646
      %v2575 = vpack.c.b16 %v2574, %v2573
      %2576 = vrot.lane.b32.xlu0 %v2294, 24
      %v2577 = vpop.permute.xlu0 %2576
      %2578 = vrot.lane.b32.xlu0 %v2295, 24
      %v2579 = vpop.permute.xlu0 %2578
      %2580 = vrot.lane.b32.xlu0 %v2296, 24
      %v2581 = vpop.permute.xlu0 %2580
      %2582 = vrot.lane.b32.xlu0 %v2297, 24
      %v2583 = vpop.permute.xlu0 %2582
      %2584 = vrot.lane.b32.xlu0 %v2298, 24
      %v2585 = vpop.permute.xlu0 %2584
      %2586 = vrot.lane.b32.xlu0 %v2299, 24
      %v2587 = vpop.permute.xlu0 %2586
      %2588 = vrot.lane.b32.xlu0 %v2300, 24
      %v2589 = vpop.permute.xlu0 %2588
      %2590 = vrot.lane.b32.xlu0 %v2301, 24
      %v2591 = vpop.permute.xlu0 %2590
      %2592 = vrot.lane.b32.xlu0 %v2302, 24
      %v2593 = vpop.permute.xlu0 %2592
      %2594 = vrot.lane.b32.xlu0 %v2303, 24
      %v2595 = vpop.permute.xlu0 %2594
      %2596 = vrot.lane.b32.xlu0 %v2304, 24
      %v2597 = vpop.permute.xlu0 %2596
      %2598 = vrot.lane.b32.xlu0 %v2305, 24
      %v2599 = vpop.permute.xlu0 %2598
      %2600 = vrot.lane.b32.xlu0 %v2306, 24
      %v2601 = vpop.permute.xlu0 %2600
      %2602 = vrot.lane.b32.xlu0 %v2307, 24
      %v2603 = vpop.permute.xlu0 %2602
      %2604 = vrot.lane.b32.xlu0 %v2470, 24
      %v2605 = vpop.permute.xlu0 %2604
      %2606 = vrot.lane.b32.xlu0 %v2575, 24
      %v2607 = vpop.permute.xlu0 %2606
      %v2608 = vunpack.c.l.b16 %v2239
      %v2609 = vunpack.c.l.b16 %v2249
      %v2610 = vpack.c.b16 %v2609, %v2608
      %2611 = vrot.lane.b32.xlu0 %v2342, 28
      %v2612 = vpop.permute.xlu0 %2611
      %2613 = vrot.lane.b32.xlu0 %v2343, 28
      %v2614 = vpop.permute.xlu0 %2613
      %2615 = vrot.lane.b32.xlu0 %v2344, 28
      %v2616 = vpop.permute.xlu0 %2615
      %2617 = vrot.lane.b32.xlu0 %v2345, 28
      %v2618 = vpop.permute.xlu0 %2617
      %2619 = vrot.lane.b32.xlu0 %v2346, 28
      %v2620 = vpop.permute.xlu0 %2619
      %2621 = vrot.lane.b32.xlu0 %v2347, 28
      %v2622 = vpop.permute.xlu0 %2621
      %2623 = vrot.lane.b32.xlu0 %v2348, 28
      %v2624 = vpop.permute.xlu0 %2623
      %2625 = vrot.lane.b32.xlu0 %v2349, 28
      %v2626 = vpop.permute.xlu0 %2625
      %2627 = vrot.lane.b32.xlu0 %v2350, 28
      %v2628 = vpop.permute.xlu0 %2627
      %2629 = vrot.lane.b32.xlu0 %v2351, 28
      %v2630 = vpop.permute.xlu0 %2629
      %2631 = vrot.lane.b32.xlu0 %v2352, 28
      %v2632 = vpop.permute.xlu0 %2631
      %2633 = vrot.lane.b32.xlu0 %v2353, 28
      %v2634 = vpop.permute.xlu0 %2633
      %2635 = vrot.lane.b32.xlu0 %v2354, 28
      %v2636 = vpop.permute.xlu0 %2635
      %2637 = vrot.lane.b32.xlu0 %v2355, 28
      %v2638 = vpop.permute.xlu0 %2637
      %2639 = vrot.lane.b32.xlu0 %v2505, 28
      %v2640 = vpop.permute.xlu0 %2639
      %2641 = vrot.lane.b32.xlu0 %v2610, 28
      %v2642 = vpop.permute.xlu0 %2641
      %v2643 = vunpack.c.l.b16 %v2256
      %v2644 = vunpack.c.l.b16 %v2259
      %v2645 = vpack.c.b16 %v2644, %v2643
      %2646 = vrot.lane.b32.xlu0 %v2422, 32
      %v2647 = vpop.permute.xlu0 %2646
      %2648 = vrot.lane.b32.xlu0 %v2423, 32
      %v2649 = vpop.permute.xlu0 %2648
      %2650 = vrot.lane.b32.xlu0 %v2424, 32
      %v2651 = vpop.permute.xlu0 %2650
      %2652 = vrot.lane.b32.xlu0 %v2425, 32
      %v2653 = vpop.permute.xlu0 %2652
      %2654 = vrot.lane.b32.xlu0 %v2426, 32
      %v2655 = vpop.permute.xlu0 %2654
      %2656 = vrot.lane.b32.xlu0 %v2427, 32
      %v2657 = vpop.permute.xlu0 %2656
      %2658 = vrot.lane.b32.xlu0 %v2428, 32
      %v2659 = vpop.permute.xlu0 %2658
      %2660 = vrot.lane.b32.xlu0 %v2429, 32
      %v2661 = vpop.permute.xlu0 %2660
      %2662 = vrot.lane.b32.xlu0 %v2430, 32
      %v2663 = vpop.permute.xlu0 %2662
      %2664 = vrot.lane.b32.xlu0 %v2431, 32
      %v2665 = vpop.permute.xlu0 %2664
      %2666 = vrot.lane.b32.xlu0 %v2432, 32
      %v2667 = vpop.permute.xlu0 %2666
      %2668 = vrot.lane.b32.xlu0 %v2433, 32
      %v2669 = vpop.permute.xlu0 %2668
      %2670 = vrot.lane.b32.xlu0 %v2434, 32
      %v2671 = vpop.permute.xlu0 %2670
      %2672 = vrot.lane.b32.xlu0 %v2435, 32
      %v2673 = vpop.permute.xlu0 %2672
      %2674 = vrot.lane.b32.xlu0 %v2540, 32
      %v2675 = vpop.permute.xlu0 %2674
      %2676 = vrot.lane.b32.xlu0 %v2645, 32
      %v2677 = vpop.permute.xlu0 %2676
      %v2680 = vsel %vm1309, %v2292, %v2357
      %v2683 = vsel %vm1309, %v2293, %v2359
      %v2686 = vsel %vm1309, %v2294, %v2361
      %v2689 = vsel %vm1309, %v2295, %v2363
      %v2692 = vsel %vm1309, %v2296, %v2365
      %v2695 = vsel %vm1309, %v2297, %v2367
      %v2698 = vsel %vm1309, %v2298, %v2369
      %v2701 = vsel %vm1309, %v2299, %v2371
      %v2704 = vsel %vm1309, %v2300, %v2373
      %v2707 = vsel %vm1309, %v2301, %v2375
      %v2710 = vsel %vm1309, %v2302, %v2377
      %v2713 = vsel %vm1309, %v2303, %v2379
      %v2716 = vsel %vm1309, %v2304, %v2381
      %v2719 = vsel %vm1309, %v2305, %v2383
      %v2722 = vsel %vm1309, %v2306, %v2385
      %v2725 = vsel %vm1309, %v2307, %v2387
      %v2727 = vsel %vm1358, %v2680, %v2437
      %v2729 = vsel %vm1358, %v2683, %v2439
      %v2731 = vsel %vm1358, %v2686, %v2441
      %v2733 = vsel %vm1358, %v2689, %v2443
      %v2735 = vsel %vm1358, %v2692, %v2445
      %v2737 = vsel %vm1358, %v2695, %v2447
      %v2739 = vsel %vm1358, %v2698, %v2449
      %v2741 = vsel %vm1358, %v2701, %v2451
      %v2743 = vsel %vm1358, %v2704, %v2453
      %v2745 = vsel %vm1358, %v2707, %v2455
      %v2747 = vsel %vm1358, %v2710, %v2457
      %v2749 = vsel %vm1358, %v2713, %v2459
      %v2751 = vsel %vm1358, %v2716, %v2461
      %v2753 = vsel %vm1358, %v2719, %v2463
      %v2755 = vsel %vm1358, %v2722, %v2465
      %v2757 = vsel %vm1358, %v2725, %v2467
      %v2759 = vsel %vm1391, %v2727, %v2472
      %v2761 = vsel %vm1391, %v2729, %v2474
      %v2763 = vsel %vm1391, %v2731, %v2476
      %v2765 = vsel %vm1391, %v2733, %v2478
      %v2767 = vsel %vm1391, %v2735, %v2480
      %v2769 = vsel %vm1391, %v2737, %v2482
      %v2771 = vsel %vm1391, %v2739, %v2484
      %v2773 = vsel %vm1391, %v2741, %v2486
      %v2775 = vsel %vm1391, %v2743, %v2488
      %v2777 = vsel %vm1391, %v2745, %v2490
      %v2779 = vsel %vm1391, %v2747, %v2492
      %v2781 = vsel %vm1391, %v2749, %v2494
      %v2783 = vsel %vm1391, %v2751, %v2496
      %v2785 = vsel %vm1391, %v2753, %v2498
      %v2787 = vsel %vm1391, %v2755, %v2500
      %v2789 = vsel %vm1391, %v2757, %v2502
      %v2791 = vsel %vm1424, %v2759, %v2507
      %v2793 = vsel %vm1424, %v2761, %v2509
      %v2795 = vsel %vm1424, %v2763, %v2511
      %v2797 = vsel %vm1424, %v2765, %v2513
      %v2799 = vsel %vm1424, %v2767, %v2515
      %v2801 = vsel %vm1424, %v2769, %v2517
      %v2803 = vsel %vm1424, %v2771, %v2519
      %v2805 = vsel %vm1424, %v2773, %v2521
      %v2807 = vsel %vm1424, %v2775, %v2523
      %v2809 = vsel %vm1424, %v2777, %v2525
      %v2811 = vsel %vm1424, %v2779, %v2527
      %v2813 = vsel %vm1424, %v2781, %v2529
      %v2815 = vsel %vm1424, %v2783, %v2531
      %v2817 = vsel %vm1424, %v2785, %v2533
      %v2819 = vsel %vm1424, %v2787, %v2535
      %v2821 = vsel %vm1424, %v2789, %v2537
      %v2823 = vsel %vm1457, %v2791, %v2542
      %v2825 = vsel %vm1457, %v2793, %v2544
      %v2827 = vsel %vm1457, %v2795, %v2546
      %v2829 = vsel %vm1457, %v2797, %v2548
      %v2831 = vsel %vm1457, %v2799, %v2550
      %v2833 = vsel %vm1457, %v2801, %v2552
      %v2835 = vsel %vm1457, %v2803, %v2554
      %v2837 = vsel %vm1457, %v2805, %v2556
      %v2839 = vsel %vm1457, %v2807, %v2558
      %v2841 = vsel %vm1457, %v2809, %v2560
      %v2843 = vsel %vm1457, %v2811, %v2562
      %v2845 = vsel %vm1457, %v2813, %v2564
      %v2847 = vsel %vm1457, %v2815, %v2566
      %v2849 = vsel %vm1457, %v2817, %v2568
      %v2851 = vsel %vm1457, %v2819, %v2570
      %v2853 = vsel %vm1457, %v2821, %v2572
      %v2855 = vsel %vm1490, %v2823, %v2577
      %v2857 = vsel %vm1490, %v2825, %v2579
      %v2859 = vsel %vm1490, %v2827, %v2581
      %v2861 = vsel %vm1490, %v2829, %v2583
      %v2863 = vsel %vm1490, %v2831, %v2585
      %v2865 = vsel %vm1490, %v2833, %v2587
      %v2867 = vsel %vm1490, %v2835, %v2589
      %v2869 = vsel %vm1490, %v2837, %v2591
      %v2871 = vsel %vm1490, %v2839, %v2593
      %v2873 = vsel %vm1490, %v2841, %v2595
      %v2875 = vsel %vm1490, %v2843, %v2597
      %v2877 = vsel %vm1490, %v2845, %v2599
      %v2879 = vsel %vm1490, %v2847, %v2601
      %v2881 = vsel %vm1490, %v2849, %v2603
      %v2883 = vsel %vm1490, %v2851, %v2605
      %v2885 = vsel %vm1490, %v2853, %v2607
      %v2887 = vsel %vm1523, %v2855, %v2612
      %v2889 = vsel %vm1523, %v2857, %v2614
      %v2891 = vsel %vm1523, %v2859, %v2616
      %v2893 = vsel %vm1523, %v2861, %v2618
      %v2895 = vsel %vm1523, %v2863, %v2620
      %v2897 = vsel %vm1523, %v2865, %v2622
      %v2899 = vsel %vm1523, %v2867, %v2624
      %v2901 = vsel %vm1523, %v2869, %v2626
      %v2903 = vsel %vm1523, %v2871, %v2628
      %v2905 = vsel %vm1523, %v2873, %v2630
      %v2907 = vsel %vm1523, %v2875, %v2632
      %v2909 = vsel %vm1523, %v2877, %v2634
      %v2911 = vsel %vm1523, %v2879, %v2636
      %v2913 = vsel %vm1523, %v2881, %v2638
      %v2915 = vsel %vm1523, %v2883, %v2640
      %v2917 = vsel %vm1523, %v2885, %v2642
      %v2919 = vsel %vm1556, %v2887, %v2647
      %v2921 = vsel %vm1556, %v2889, %v2649
      %v2923 = vsel %vm1556, %v2891, %v2651
      %v2925 = vsel %vm1556, %v2893, %v2653
      %v2927 = vsel %vm1556, %v2895, %v2655
      %v2929 = vsel %vm1556, %v2897, %v2657
      %v2931 = vsel %vm1556, %v2899, %v2659
      %v2933 = vsel %vm1556, %v2901, %v2661
      %v2935 = vsel %vm1556, %v2903, %v2663
      %v2937 = vsel %vm1556, %v2905, %v2665
      %v2939 = vsel %vm1556, %v2907, %v2667
      %v2941 = vsel %vm1556, %v2909, %v2669
      %v2943 = vsel %vm1556, %v2911, %v2671
      %v2945 = vsel %vm1556, %v2913, %v2673
      %v2947 = vsel %vm1556, %v2915, %v2675
      %v2949 = vsel %vm1556, %v2917, %v2677
      %v2950 = vld [vmem:[%s3] sm:$0xf]
      %v2951 = vld [vmem:[%s3 + $0x4] sm:$0xf]
      %v2952 = vld [vmem:[%s3 + $0x8] sm:$0xf]
      %v2953 = vld [vmem:[%s3 + $0xc] sm:$0xf]
      %v2954 = vld [vmem:[%s3 + $0x10] sm:$0x3]
      %v2960 = vunpack.c.l.b16 %v2950
      %v2961 = vunpack.c.l.b16 %v2951
      %v2962 = vunpack.c.l.b16 %v2952
      %v2963 = vunpack.c.l.b16 %v2953
      %v2964 = vunpack.c.l.b16 %v2954
      %v2965 = vpack.c.b16 %v2961, %v2960
      %v2966 = vpack.c.b16 %v2963, %v2962
      %v2967 = vpack.c.b16 %v2964, %v2964
      %vm2970 = vcmask 293888
      %v2971 = vsel %vm2970, %v2919, 0
      %v2973 = vsel %vm2970, %v2921, 0
      %v2975 = vsel %vm2970, %v2923, 0
      %v2977 = vsel %vm2970, %v2925, 0
      %v2979 = vsel %vm2970, %v2927, 0
      %v2981 = vsel %vm2970, %v2929, 0
      %v2983 = vsel %vm2970, %v2931, 0
      %v2985 = vsel %vm2970, %v2933, 0
      %v2987 = vsel %vm2970, %v2935, 0
      %v2989 = vsel %vm2970, %v2937, 0
      %v2991 = vsel %vm2970, %v2939, 0
      %v2993 = vsel %vm2970, %v2941, 0
      %v2995 = vsel %vm2970, %v2943, 0
      %v2997 = vsel %vm2970, %v2945, 0
      %v2999 = vsel %vm2970, %v2947, 0
      %v3001 = vsel %vm2970, %v2949, 0
      %vm3003 = vcmask 1041408
      %v3005 = vsel %vm3003, %v2967, 0
      %3007 = vmatprep.subr.bf16.mxu0 0
      %3008 = vmatpush1.bf16.msra.mxu0 %v2965
      %3009 = vmatprep.subr.bf16.mxu0 0
      %3010 = vmatpush1.bf16.msra.mxu0 %v2966
      %3011 = vmatprep.subr.bf16.mxu0 0
      %3012 = vmatpush1.bf16.msra.mxu0 %v3005
      %3013 = vmatprep.subr.bf16.mxu0 0
      %3014 = vmatpush1.bf16.msra.mxu0 0
      %3015 = vmatprep.subr.bf16.mxu0 0
      %3016 = vmatpush1.bf16.msra.mxu0 0
      %3017 = vmatprep.subr.bf16.mxu0 0
      %3018 = vmatpush1.bf16.msra.mxu0 0
      %3019 = vmatprep.subr.bf16.mxu0 0
      %3020 = vmatpush1.bf16.msra.mxu0 0
      %3021 = vmatprep.subr.bf16.mxu0 0
      %3022 = vmatpush1.bf16.msra.mxu0 0
      %3023 = vmatprep.subr.bf16.mxu0 0
      %3024 = vmatpush1.bf16.msra.mxu0 0
      %3025 = vmatprep.subr.bf16.mxu0 0
      %3026 = vmatpush1.bf16.msra.mxu0 0
      %3027 = vmatprep.subr.bf16.mxu0 0
      %3028 = vmatpush1.bf16.msra.mxu0 0
      %3029 = vmatprep.subr.bf16.mxu0 0
      %3030 = vmatpush1.bf16.msra.mxu0 0
      %3031 = vmatprep.subr.bf16.mxu0 0
      %3032 = vmatpush1.bf16.msra.mxu0 0
      %3033 = vmatprep.subr.bf16.mxu0 0
      %3034 = vmatpush1.bf16.msra.mxu0 0
      %3035 = vmatprep.subr.bf16.mxu0 0
      %3036 = vmatpush1.bf16.msra.mxu0 0
      %3037 = vmatprep.subr.bf16.mxu0 0
      %3038 = vmatpush1.bf16.msra.mxu0 0
      %3039 = vmatprep.mubr.bf16.mxu0 0
      %3040 = vmatmul.mubr.bf16.gmra.mrb[0].mxu0 %v2971
      %v3041 = vpop.f32.mrb[0].mxu0
      %v3042 = vadd.f32 0.0, %v3041
      %v3043 = vpop.f32.mrb[0].mxu0
      %v3044 = vpop.f32.mrb[0].mxu0
      %v3045 = vadd.f32 0.0, %v3044
      %v3046 = vpop.f32.mrb[0].mxu0
      %3047 = vmatprep.mubr.bf16.mxu0 0
      %3048 = vmatmul.mubr.bf16.gmra.mrb[0].mxu0 %v2973
      %v3049 = vpop.f32.mrb[0].mxu0
      %v3050 = vadd.f32 0.0, %v3049
      %v3051 = vpop.f32.mrb[0].mxu0
      %v3052 = vpop.f32.mrb[0].mxu0
      %v3053 = vadd.f32 0.0, %v3052
      %v3054 = vpop.f32.mrb[0].mxu0
      %3055 = vmatprep.mubr.bf16.mxu0 0
      %3056 = vmatmul.mubr.bf16.gmra.mrb[0].mxu0 %v2975
      %v3057 = vpop.f32.mrb[0].mxu0
      %v3058 = vadd.f32 0.0, %v3057
      %v3059 = vpop.f32.mrb[0].mxu0
      %v3060 = vpop.f32.mrb[0].mxu0
      %v3061 = vadd.f32 0.0, %v3060
      %v3062 = vpop.f32.mrb[0].mxu0
      %3063 = vmatprep.mubr.bf16.mxu0 0
      %3064 = vmatmul.mubr.bf16.gmra.mrb[0].mxu0 %v2977
      %v3065 = vpop.f32.mrb[0].mxu0
      %v3066 = vadd.f32 0.0, %v3065
      %v3067 = vpop.f32.mrb[0].mxu0
      %v3068 = vpop.f32.mrb[0].mxu0
      %v3069 = vadd.f32 0.0, %v3068
      %v3070 = vpop.f32.mrb[0].mxu0
      %3071 = vmatprep.mubr.bf16.mxu0 0
      %3072 = vmatmul.mubr.bf16.gmra.mrb[0].mxu0 %v2979
      %v3073 = vpop.f32.mrb[0].mxu0
      %v3074 = vadd.f32 0.0, %v3073
      %v3075 = vpop.f32.mrb[0].mxu0
      %v3076 = vpop.f32.mrb[0].mxu0
      %v3077 = vadd.f32 0.0, %v3076
      %v3078 = vpop.f32.mrb[0].mxu0
      %3079 = vmatprep.mubr.bf16.mxu0 0
      %3080 = vmatmul.mubr.bf16.gmra.mrb[0].mxu0 %v2981
      %v3081 = vpop.f32.mrb[0].mxu0
      %v3082 = vadd.f32 0.0, %v3081
      %v3083 = vpop.f32.mrb[0].mxu0
      %v3084 = vpop.f32.mrb[0].mxu0
      %v3085 = vadd.f32 0.0, %v3084
      %v3086 = vpop.f32.mrb[0].mxu0
      %3087 = vmatprep.mubr.bf16.mxu0 0
      %3088 = vmatmul.mubr.bf16.gmra.mrb[0].mxu0 %v2983
      %v3089 = vpop.f32.mrb[0].mxu0
      %v3090 = vadd.f32 0.0, %v3089
      %v3091 = vpop.f32.mrb[0].mxu0
      %v3092 = vpop.f32.mrb[0].mxu0
      %v3093 = vadd.f32 0.0, %v3092
      %v3094 = vpop.f32.mrb[0].mxu0
      %3095 = vmatprep.mubr.bf16.mxu0 0
      %3096 = vmatmul.mubr.bf16.gmra.mrb[0].mxu0 %v2985
      %v3097 = vpop.f32.mrb[0].mxu0
      %v3098 = vadd.f32 0.0, %v3097
      %v3099 = vpop.f32.mrb[0].mxu0
      %v3100 = vpop.f32.mrb[0].mxu0
      %v3101 = vadd.f32 0.0, %v3100
      %v3102 = vpop.f32.mrb[0].mxu0
      %3103 = vmatprep.mubr.bf16.mxu0 0
      %3104 = vmatmul.mubr.bf16.gmra.mrb[0].mxu0 %v2987
      %v3105 = vpop.f32.mrb[0].mxu0
      %v3106 = vadd.f32 0.0, %v3105
      %v3107 = vpop.f32.mrb[0].mxu0
      %v3108 = vpop.f32.mrb[0].mxu0
      %v3109 = vadd.f32 0.0, %v3108
      %v3110 = vpop.f32.mrb[0].mxu0
      %3111 = vmatprep.mubr.bf16.mxu0 0
      %3112 = vmatmul.mubr.bf16.gmra.mrb[0].mxu0 %v2989
      %v3113 = vpop.f32.mrb[0].mxu0
      %v3114 = vadd.f32 0.0, %v3113
      %v3115 = vpop.f32.mrb[0].mxu0
      %v3116 = vpop.f32.mrb[0].mxu0
      %v3117 = vadd.f32 0.0, %v3116
      %v3118 = vpop.f32.mrb[0].mxu0
      %3119 = vmatprep.mubr.bf16.mxu0 0
      %3120 = vmatmul.mubr.bf16.gmra.mrb[0].mxu0 %v2991
      %v3121 = vpop.f32.mrb[0].mxu0
      %v3122 = vadd.f32 0.0, %v3121
      %v3123 = vpop.f32.mrb[0].mxu0
      %v3124 = vpop.f32.mrb[0].mxu0
      %v3125 = vadd.f32 0.0, %v3124
      %v3126 = vpop.f32.mrb[0].mxu0
      %3127 = vmatprep.mubr.bf16.mxu0 0
      %3128 = vmatmul.mubr.bf16.gmra.mrb[0].mxu0 %v2993
      %v3129 = vpop.f32.mrb[0].mxu0
      %v3130 = vadd.f32 0.0, %v3129
      %v3131 = vpop.f32.mrb[0].mxu0
      %v3132 = vpop.f32.mrb[0].mxu0
      %v3133 = vadd.f32 0.0, %v3132
      %v3134 = vpop.f32.mrb[0].mxu0
      %3135 = vmatprep.mubr.bf16.mxu0 0
      %3136 = vmatmul.mubr.bf16.gmra.mrb[0].mxu0 %v2995
      %v3137 = vpop.f32.mrb[0].mxu0
      %v3138 = vadd.f32 0.0, %v3137
      %v3139 = vpop.f32.mrb[0].mxu0
      %v3140 = vpop.f32.mrb[0].mxu0
      %v3141 = vadd.f32 0.0, %v3140
      %v3142 = vpop.f32.mrb[0].mxu0
      %3143 = vmatprep.mubr.bf16.mxu0 0
      %3144 = vmatmul.mubr.bf16.gmra.mrb[0].mxu0 %v2997
      %v3145 = vpop.f32.mrb[0].mxu0
      %v3146 = vadd.f32 0.0, %v3145
      %v3147 = vpop.f32.mrb[0].mxu0
      %v3148 = vpop.f32.mrb[0].mxu0
      %v3149 = vadd.f32 0.0, %v3148
      %v3150 = vpop.f32.mrb[0].mxu0
      %3151 = vmatprep.mubr.bf16.mxu0 0
      %3152 = vmatmul.mubr.bf16.gmra.mrb[0].mxu0 %v2999
      %v3153 = vpop.f32.mrb[0].mxu0
      %v3154 = vadd.f32 0.0, %v3153
      %v3155 = vpop.f32.mrb[0].mxu0
      %v3156 = vpop.f32.mrb[0].mxu0
      %v3157 = vadd.f32 0.0, %v3156
      %v3158 = vpop.f32.mrb[0].mxu0
      %3159 = vmatprep.mubr.bf16.mxu0 0
      %3160 = vmatmul.mubr.bf16.gmra.mrb[0].mxu0 %v3001
      %v3161 = vpop.f32.mrb[0].mxu0
      %v3162 = vadd.f32 0.0, %v3161
      %v3163 = vpop.f32.mrb[0].mxu0
      %v3164 = vpop.f32.mrb[0].mxu0
      %v3165 = vadd.f32 0.0, %v3164
      %v3166 = vpop.f32.mrb[0].mxu0
      %3167 = vdwg.mxu0
      %v3173 = vunpack.c.l.b16 %v1589
      %v3174 = vunpack.c.l.b16 %v1590
      %v3175 = vunpack.c.l.b16 %v1591
      %v3176 = vunpack.c.l.b16 %v1592
      %v3177 = vunpack.c.l.b16 %v1593
      %v3178 = vpack.c.b16 %v3174, %v3173
      %v3179 = vpack.c.b16 %v3176, %v3175
      %v3180 = vpack.c.b16 %v3177, %v3177
      %v3183 = vsel %vm2970, %v1558, 0
      %v3185 = vsel %vm2970, %v1560, 0
      %v3187 = vsel %vm2970, %v1562, 0
      %v3189 = vsel %vm2970, %v1564, 0
      %v3191 = vsel %vm2970, %v1566, 0
      %v3193 = vsel %vm2970, %v1568, 0
      %v3195 = vsel %vm2970, %v1570, 0
      %v3197 = vsel %vm2970, %v1572, 0
      %v3199 = vsel %vm2970, %v1574, 0
      %v3201 = vsel %vm2970, %v1576, 0
      %v3203 = vsel %vm2970, %v1578, 0
      %v3205 = vsel %vm2970, %v1580, 0
      %v3207 = vsel %vm2970, %v1582, 0
      %v3209 = vsel %vm2970, %v1584, 0
      %v3211 = vsel %vm2970, %v1586, 0
      %v3213 = vsel %vm2970, %v1588, 0
      %v3216 = vsel %vm3003, %v3180, 0
      %3218 = vmatprep.subr.bf16.mxu0 0
      %3219 = vmatpush1.bf16.msra.mxu0 %v3178
      %3220 = vmatprep.subr.bf16.mxu0 0
      %3221 = vmatpush1.bf16.msra.mxu0 %v3179
      %3222 = vmatprep.subr.bf16.mxu0 0
      %3223 = vmatpush1.bf16.msra.mxu0 %v3216
      %3224 = vmatprep.subr.bf16.mxu0 0
      %3225 = vmatpush1.bf16.msra.mxu0 0
      %3226 = vmatprep.subr.bf16.mxu0 0
      %3227 = vmatpush1.bf16.msra.mxu0 0
      %3228 = vmatprep.subr.bf16.mxu0 0
      %3229 = vmatpush1.bf16.msra.mxu0 0
      %3230 = vmatprep.subr.bf16.mxu0 0
      %3231 = vmatpush1.bf16.msra.mxu0 0
      %3232 = vmatprep.subr.bf16.mxu0 0
      %3233 = vmatpush1.bf16.msra.mxu0 0
      %3234 = vmatprep.subr.bf16.mxu0 0
      %3235 = vmatpush1.bf16.msra.mxu0 0
      %3236 = vmatprep.subr.bf16.mxu0 0
      %3237 = vmatpush1.bf16.msra.mxu0 0
      %3238 = vmatprep.subr.bf16.mxu0 0
      %3239 = vmatpush1.bf16.msra.mxu0 0
      %3240 = vmatprep.subr.bf16.mxu0 0
      %3241 = vmatpush1.bf16.msra.mxu0 0
      %3242 = vmatprep.subr.bf16.mxu0 0
      %3243 = vmatpush1.bf16.msra.mxu0 0
      %3244 = vmatprep.subr.bf16.mxu0 0
      %3245 = vmatpush1.bf16.msra.mxu0 0
      %3246 = vmatprep.subr.bf16.mxu0 0
      %3247 = vmatpush1.bf16.msra.mxu0 0
      %3248 = vmatprep.subr.bf16.mxu0 0
      %3249 = vmatpush1.bf16.msra.mxu0 0
      %3250 = vmatprep.mubr.bf16.mxu0 0
      %3251 = vmatmul.mubr.bf16.gmra.mrb[0].mxu0 %v3183
      %v3252 = vpop.f32.mrb[0].mxu0
      %v3253 = vadd.f32 %v3042, %v3252
      %v3254 = vpop.f32.mrb[0].mxu0
      %v3255 = vpop.f32.mrb[0].mxu0
      %v3256 = vadd.f32 %v3045, %v3255
      %v3257 = vpop.f32.mrb[0].mxu0
      %3258 = vmatprep.mubr.bf16.mxu0 0
      %3259 = vmatmul.mubr.bf16.gmra.mrb[0].mxu0 %v3185
      %v3260 = vpop.f32.mrb[0].mxu0
      %v3261 = vadd.f32 %v3050, %v3260
      %v3262 = vpop.f32.mrb[0].mxu0
      %v3263 = vpop.f32.mrb[0].mxu0
      %v3264 = vadd.f32 %v3053, %v3263
      %v3265 = vpop.f32.mrb[0].mxu0
      %3266 = vmatprep.mubr.bf16.mxu0 0
      %3267 = vmatmul.mubr.bf16.gmra.mrb[0].mxu0 %v3187
      %v3268 = vpop.f32.mrb[0].mxu0
      %v3269 = vadd.f32 %v3058, %v3268
      %v3270 = vpop.f32.mrb[0].mxu0
      %v3271 = vpop.f32.mrb[0].mxu0
      %v3272 = vadd.f32 %v3061, %v3271
      %v3273 = vpop.f32.mrb[0].mxu0
      %3274 = vmatprep.mubr.bf16.mxu0 0
      %3275 = vmatmul.mubr.bf16.gmra.mrb[0].mxu0 %v3189
      %v3276 = vpop.f32.mrb[0].mxu0
      %v3277 = vadd.f32 %v3066, %v3276
      %v3278 = vpop.f32.mrb[0].mxu0
      %v3279 = vpop.f32.mrb[0].mxu0
      %v3280 = vadd.f32 %v3069, %v3279
      %v3281 = vpop.f32.mrb[0].mxu0
      %3282 = vmatprep.mubr.bf16.mxu0 0
      %3283 = vmatmul.mubr.bf16.gmra.mrb[0].mxu0 %v3191
      %v3284 = vpop.f32.mrb[0].mxu0
      %v3285 = vadd.f32 %v3074, %v3284
      %v3286 = vpop.f32.mrb[0].mxu0
      %v3287 = vpop.f32.mrb[0].mxu0
      %v3288 = vadd.f32 %v3077, %v3287
      %v3289 = vpop.f32.mrb[0].mxu0
      %3290 = vmatprep.mubr.bf16.mxu0 0
      %3291 = vmatmul.mubr.bf16.gmra.mrb[0].mxu0 %v3193
      %v3292 = vpop.f32.mrb[0].mxu0
      %v3293 = vadd.f32 %v3082, %v3292
      %v3294 = vpop.f32.mrb[0].mxu0
      %v3295 = vpop.f32.mrb[0].mxu0
      %v3296 = vadd.f32 %v3085, %v3295
      %v3297 = vpop.f32.mrb[0].mxu0
      %3298 = vmatprep.mubr.bf16.mxu0 0
      %3299 = vmatmul.mubr.bf16.gmra.mrb[0].mxu0 %v3195
      %v3300 = vpop.f32.mrb[0].mxu0
      %v3301 = vadd.f32 %v3090, %v3300
      %v3302 = vpop.f32.mrb[0].mxu0
      %v3303 = vpop.f32.mrb[0].mxu0
      %v3304 = vadd.f32 %v3093, %v3303
      %v3305 = vpop.f32.mrb[0].mxu0
      %3306 = vmatprep.mubr.bf16.mxu0 0
      %3307 = vmatmul.mubr.bf16.gmra.mrb[0].mxu0 %v3197
      %v3308 = vpop.f32.mrb[0].mxu0
      %v3309 = vadd.f32 %v3098, %v3308
      %v3310 = vpop.f32.mrb[0].mxu0
      %v3311 = vpop.f32.mrb[0].mxu0
      %v3312 = vadd.f32 %v3101, %v3311
      %v3313 = vpop.f32.mrb[0].mxu0
      %3314 = vmatprep.mubr.bf16.mxu0 0
      %3315 = vmatmul.mubr.bf16.gmra.mrb[0].mxu0 %v3199
      %v3316 = vpop.f32.mrb[0].mxu0
      %v3317 = vadd.f32 %v3106, %v3316
      %v3318 = vpop.f32.mrb[0].mxu0
      %v3319 = vpop.f32.mrb[0].mxu0
      %v3320 = vadd.f32 %v3109, %v3319
      %v3321 = vpop.f32.mrb[0].mxu0
      %3322 = vmatprep.mubr.bf16.mxu0 0
      %3323 = vmatmul.mubr.bf16.gmra.mrb[0].mxu0 %v3201
      %v3324 = vpop.f32.mrb[0].mxu0
      %v3325 = vadd.f32 %v3114, %v3324
      %v3326 = vpop.f32.mrb[0].mxu0
      %v3327 = vpop.f32.mrb[0].mxu0
      %v3328 = vadd.f32 %v3117, %v3327
      %v3329 = vpop.f32.mrb[0].mxu0
      %3330 = vmatprep.mubr.bf16.mxu0 0
      %3331 = vmatmul.mubr.bf16.gmra.mrb[0].mxu0 %v3203
      %v3332 = vpop.f32.mrb[0].mxu0
      %v3333 = vadd.f32 %v3122, %v3332
      %v3334 = vpop.f32.mrb[0].mxu0
      %v3335 = vpop.f32.mrb[0].mxu0
      %v3336 = vadd.f32 %v3125, %v3335
      %v3337 = vpop.f32.mrb[0].mxu0
      %3338 = vmatprep.mubr.bf16.mxu0 0
      %3339 = vmatmul.mubr.bf16.gmra.mrb[0].mxu0 %v3205
      %v3340 = vpop.f32.mrb[0].mxu0
      %v3341 = vadd.f32 %v3130, %v3340
      %v3342 = vpop.f32.mrb[0].mxu0
      %v3343 = vpop.f32.mrb[0].mxu0
      %v3344 = vadd.f32 %v3133, %v3343
      %v3345 = vpop.f32.mrb[0].mxu0
      %3346 = vmatprep.mubr.bf16.mxu0 0
      %3347 = vmatmul.mubr.bf16.gmra.mrb[0].mxu0 %v3207
      %v3348 = vpop.f32.mrb[0].mxu0
      %v3349 = vadd.f32 %v3138, %v3348
      %v3350 = vpop.f32.mrb[0].mxu0
      %v3351 = vpop.f32.mrb[0].mxu0
      %v3352 = vadd.f32 %v3141, %v3351
      %v3353 = vpop.f32.mrb[0].mxu0
      %3354 = vmatprep.mubr.bf16.mxu0 0
      %3355 = vmatmul.mubr.bf16.gmra.mrb[0].mxu0 %v3209
      %v3356 = vpop.f32.mrb[0].mxu0
      %v3357 = vadd.f32 %v3146, %v3356
      %v3358 = vpop.f32.mrb[0].mxu0
      %v3359 = vpop.f32.mrb[0].mxu0
      %v3360 = vadd.f32 %v3149, %v3359
      %v3361 = vpop.f32.mrb[0].mxu0
      %3362 = vmatprep.mubr.bf16.mxu0 0
      %3363 = vmatmul.mubr.bf16.gmra.mrb[0].mxu0 %v3211
      %v3364 = vpop.f32.mrb[0].mxu0
      %v3365 = vadd.f32 %v3154, %v3364
      %v3366 = vpop.f32.mrb[0].mxu0
      %v3367 = vpop.f32.mrb[0].mxu0
      %v3368 = vadd.f32 %v3157, %v3367
      %v3369 = vpop.f32.mrb[0].mxu0
      %3370 = vmatprep.mubr.bf16.mxu0 0
      %3371 = vmatmul.mubr.bf16.gmra.mrb[0].mxu0 %v3213
      %v3372 = vpop.f32.mrb[0].mxu0
      %v3373 = vadd.f32 %v3162, %v3372
      %v3374 = vpop.f32.mrb[0].mxu0
      %v3375 = vpop.f32.mrb[0].mxu0
      %v3376 = vadd.f32 %v3165, %v3375
      %v3377 = vpop.f32.mrb[0].mxu0
      %3378 = vdwg.mxu0
      %v3379 = vsel %vm1309, %v3253, 0.0
      %v3380 = vsel %vm1309, %v3256, 0.0
      %v3381 = vadd.f32 %v3379, %v3380
      %v3382 = vsel %vm1309, %v3261, 0.0
      %v3383 = vadd.f32 %v3381, %v3382
      %v3384 = vsel %vm1309, %v3264, 0.0
      %v3385 = vadd.f32 %v3383, %v3384
      %v3386 = vsel %vm1309, %v3269, 0.0
      %v3387 = vadd.f32 %v3385, %v3386
      %v3388 = vsel %vm1309, %v3272, 0.0
      %v3389 = vadd.f32 %v3387, %v3388
      %v3390 = vsel %vm1309, %v3277, 0.0
      %v3391 = vadd.f32 %v3389, %v3390
      %v3392 = vsel %vm1309, %v3280, 0.0
      %v3393 = vadd.f32 %v3391, %v3392
      %v3394 = vsel %vm1309, %v3285, 0.0
      %v3395 = vadd.f32 %v3393, %v3394
      %v3396 = vsel %vm1309, %v3288, 0.0
      %v3397 = vadd.f32 %v3395, %v3396
      %v3398 = vsel %vm1309, %v3293, 0.0
      %v3399 = vadd.f32 %v3397, %v3398
      %v3400 = vsel %vm1309, %v3296, 0.0
      %v3401 = vadd.f32 %v3399, %v3400
      %v3402 = vsel %vm1309, %v3301, 0.0
      %v3403 = vadd.f32 %v3401, %v3402
      %v3404 = vsel %vm1309, %v3304, 0.0
      %v3405 = vadd.f32 %v3403, %v3404
      %v3406 = vsel %vm1309, %v3309, 0.0
      %v3407 = vadd.f32 %v3405, %v3406
      %v3408 = vsel %vm1309, %v3312, 0.0
      %v3409 = vadd.f32 %v3407, %v3408
      %v3410 = vsel %vm1309, %v3317, 0.0
      %v3411 = vadd.f32 %v3409, %v3410
      %v3412 = vsel %vm1309, %v3320, 0.0
      %v3413 = vadd.f32 %v3411, %v3412
      %v3414 = vsel %vm1309, %v3325, 0.0
      %v3415 = vadd.f32 %v3413, %v3414
      %v3416 = vsel %vm1309, %v3328, 0.0
      %v3417 = vadd.f32 %v3415, %v3416
      %v3418 = vsel %vm1309, %v3333, 0.0
      %v3419 = vadd.f32 %v3417, %v3418
      %v3420 = vsel %vm1309, %v3336, 0.0
      %v3421 = vadd.f32 %v3419, %v3420
      %v3422 = vsel %vm1309, %v3341, 0.0
      %v3423 = vadd.f32 %v3421, %v3422
      %v3424 = vsel %vm1309, %v3344, 0.0
      %v3425 = vadd.f32 %v3423, %v3424
      %v3426 = vsel %vm1309, %v3349, 0.0
      %v3427 = vadd.f32 %v3425, %v3426
      %v3428 = vsel %vm1309, %v3352, 0.0
      %v3429 = vadd.f32 %v3427, %v3428
      %v3430 = vsel %vm1309, %v3357, 0.0
      %v3431 = vadd.f32 %v3429, %v3430
      %v3432 = vsel %vm1309, %v3360, 0.0
      %v3433 = vadd.f32 %v3431, %v3432
      %v3434 = vsel %vm1309, %v3365, 0.0
      %v3435 = vadd.f32 %v3433, %v3434
      %v3436 = vsel %vm1309, %v3368, 0.0
      %v3437 = vadd.f32 %v3435, %v3436
      %v3438 = vsel %vm1309, %v3373, 0.0
      %v3439 = vadd.f32 %v3437, %v3438
      %v3440 = vsel %vm1309, %v3376, 0.0
      %v3441 = vadd.f32 %v3439, %v3440
      %v3442 = vrot.slane %v3441, 4
      %v3443 = vadd.f32 %v3441, %v3442
      %v3444 = vrot.slane %v3443, 2
      %v3445 = vadd.f32 %v3443, %v3444
      %v3446 = vrot.slane %v3445, 1
      %v3447 = vadd.f32 %v3445, %v3446
      %v3448 = vrcp.pop 256.0
      %v3449 = vmul.f32 %v3447, %v3448
      %v3450 = vsub.f32 %v3253, %v3449
      %v3451 = vsub.f32 %v3256, %v3449
      %v3452 = vsub.f32 %v3261, %v3449
      %v3453 = vsub.f32 %v3264, %v3449
      %v3454 = vsub.f32 %v3269, %v3449
      %v3455 = vsub.f32 %v3272, %v3449
      %v3456 = vsub.f32 %v3277, %v3449
      %v3457 = vsub.f32 %v3280, %v3449
      %v3458 = vsub.f32 %v3285, %v3449
      %v3459 = vsub.f32 %v3288, %v3449
      %v3460 = vsub.f32 %v3293, %v3449
      %v3461 = vsub.f32 %v3296, %v3449
      %v3462 = vsub.f32 %v3301, %v3449
      %v3463 = vsub.f32 %v3304, %v3449
      %v3464 = vsub.f32 %v3309, %v3449
      %v3465 = vsub.f32 %v3312, %v3449
      %v3466 = vsub.f32 %v3317, %v3449
      %v3467 = vsub.f32 %v3320, %v3449
      %v3468 = vsub.f32 %v3325, %v3449
      %v3469 = vsub.f32 %v3328, %v3449
      %v3470 = vsub.f32 %v3333, %v3449
      %v3471 = vsub.f32 %v3336, %v3449
      %v3472 = vsub.f32 %v3341, %v3449
      %v3473 = vsub.f32 %v3344, %v3449
      %v3474 = vsub.f32 %v3349, %v3449
      %v3475 = vsub.f32 %v3352, %v3449
      %v3476 = vsub.f32 %v3357, %v3449
      %v3477 = vsub.f32 %v3360, %v3449
      %v3478 = vsub.f32 %v3365, %v3449
      %v3479 = vsub.f32 %v3368, %v3449
      %v3480 = vsub.f32 %v3373, %v3449
      %v3481 = vsub.f32 %v3376, %v3449
      %v3482 = vmul.f32 %v3450, %v3450
      %v3483 = vmul.f32 %v3451, %v3451
      %v3484 = vmul.f32 %v3452, %v3452
      %v3485 = vmul.f32 %v3453, %v3453
      %v3486 = vmul.f32 %v3454, %v3454
      %v3487 = vmul.f32 %v3455, %v3455
      %v3488 = vmul.f32 %v3456, %v3456
      %v3489 = vmul.f32 %v3457, %v3457
      %v3490 = vmul.f32 %v3458, %v3458
      %v3491 = vmul.f32 %v3459, %v3459
      %v3492 = vmul.f32 %v3460, %v3460
      %v3493 = vmul.f32 %v3461, %v3461
      %v3494 = vmul.f32 %v3462, %v3462
      %v3495 = vmul.f32 %v3463, %v3463
      %v3496 = vmul.f32 %v3464, %v3464
      %v3497 = vmul.f32 %v3465, %v3465
      %v3498 = vmul.f32 %v3466, %v3466
      %v3499 = vmul.f32 %v3467, %v3467
      %v3500 = vmul.f32 %v3468, %v3468
      %v3501 = vmul.f32 %v3469, %v3469
      %v3502 = vmul.f32 %v3470, %v3470
      %v3503 = vmul.f32 %v3471, %v3471
      %v3504 = vmul.f32 %v3472, %v3472
      %v3505 = vmul.f32 %v3473, %v3473
      %v3506 = vmul.f32 %v3474, %v3474
      %v3507 = vmul.f32 %v3475, %v3475
      %v3508 = vmul.f32 %v3476, %v3476
      %v3509 = vmul.f32 %v3477, %v3477
      %v3510 = vmul.f32 %v3478, %v3478
      %v3511 = vmul.f32 %v3479, %v3479
      %v3512 = vmul.f32 %v3480, %v3480
      %v3513 = vmul.f32 %v3481, %v3481
      %v3514 = vsel %vm1309, %v3482, 0.0
      %v3515 = vsel %vm1309, %v3483, 0.0
      %v3516 = vadd.f32 %v3514, %v3515
      %v3517 = vsel %vm1309, %v3484, 0.0
      %v3518 = vadd.f32 %v3516, %v3517
      %v3519 = vsel %vm1309, %v3485, 0.0
      %v3520 = vadd.f32 %v3518, %v3519
      %v3521 = vsel %vm1309, %v3486, 0.0
      %v3522 = vadd.f32 %v3520, %v3521
      %v3523 = vsel %vm1309, %v3487, 0.0
      %v3524 = vadd.f32 %v3522, %v3523
      %v3525 = vsel %vm1309, %v3488, 0.0
      %v3526 = vadd.f32 %v3524, %v3525
      %v3527 = vsel %vm1309, %v3489, 0.0
      %v3528 = vadd.f32 %v3526, %v3527
      %v3529 = vsel %vm1309, %v3490, 0.0
      %v3530 = vadd.f32 %v3528, %v3529
      %v3531 = vsel %vm1309, %v3491, 0.0
      %v3532 = vadd.f32 %v3530, %v3531
      %v3533 = vsel %vm1309, %v3492, 0.0
      %v3534 = vadd.f32 %v3532, %v3533
      %v3535 = vsel %vm1309, %v3493, 0.0
      %v3536 = vadd.f32 %v3534, %v3535
      %v3537 = vsel %vm1309, %v3494, 0.0
      %v3538 = vadd.f32 %v3536, %v3537
      %v3539 = vsel %vm1309, %v3495, 0.0
      %v3540 = vadd.f32 %v3538, %v3539
      %v3541 = vsel %vm1309, %v3496, 0.0
      %v3542 = vadd.f32 %v3540, %v3541
      %v3543 = vsel %vm1309, %v3497, 0.0
      %v3544 = vadd.f32 %v3542, %v3543
      %v3545 = vsel %vm1309, %v3498, 0.0
      %v3546 = vadd.f32 %v3544, %v3545
      %v3547 = vsel %vm1309, %v3499, 0.0
      %v3548 = vadd.f32 %v3546, %v3547
      %v3549 = vsel %vm1309, %v3500, 0.0
      %v3550 = vadd.f32 %v3548, %v3549
      %v3551 = vsel %vm1309, %v3501, 0.0
      %v3552 = vadd.f32 %v3550, %v3551
      %v3553 = vsel %vm1309, %v3502, 0.0
      %v3554 = vadd.f32 %v3552, %v3553
      %v3555 = vsel %vm1309, %v3503, 0.0
      %v3556 = vadd.f32 %v3554, %v3555
      %v3557 = vsel %vm1309, %v3504, 0.0
      %v3558 = vadd.f32 %v3556, %v3557
      %v3559 = vsel %vm1309, %v3505, 0.0
      %v3560 = vadd.f32 %v3558, %v3559
      %v3561 = vsel %vm1309, %v3506, 0.0
      %v3562 = vadd.f32 %v3560, %v3561
      %v3563 = vsel %vm1309, %v3507, 0.0
      %v3564 = vadd.f32 %v3562, %v3563
      %v3565 = vsel %vm1309, %v3508, 0.0
      %v3566 = vadd.f32 %v3564, %v3565
      %v3567 = vsel %vm1309, %v3509, 0.0
      %v3568 = vadd.f32 %v3566, %v3567
      %v3569 = vsel %vm1309, %v3510, 0.0
      %v3570 = vadd.f32 %v3568, %v3569
      %v3571 = vsel %vm1309, %v3511, 0.0
      %v3572 = vadd.f32 %v3570, %v3571
      %v3573 = vsel %vm1309, %v3512, 0.0
      %v3574 = vadd.f32 %v3572, %v3573
      %v3575 = vsel %vm1309, %v3513, 0.0
      %v3576 = vadd.f32 %v3574, %v3575
      %v3577 = vrot.slane %v3576, 4
      %v3578 = vadd.f32 %v3576, %v3577
      %v3579 = vrot.slane %v3578, 2
      %v3580 = vadd.f32 %v3578, %v3579
      %v3581 = vrot.slane %v3580, 1
      %v3582 = vadd.f32 %v3580, %v3581
      %v3583 = vmul.f32 %v3582, %v3448
      %v3584 = vadd.f32 %v3583, 1e-05
      %v3585 = vrsqrt.pop %v3584
      %v3586 = vmul.f32 %v3450, %v3585
      %v3587 = vmul.f32 %v3451, %v3585
      %v3588 = vmul.f32 %v3452, %v3585
      %v3589 = vmul.f32 %v3453, %v3585
      %v3590 = vmul.f32 %v3454, %v3585
      %v3591 = vmul.f32 %v3455, %v3585
      %v3592 = vmul.f32 %v3456, %v3585
      %v3593 = vmul.f32 %v3457, %v3585
      %v3594 = vmul.f32 %v3458, %v3585
      %v3595 = vmul.f32 %v3459, %v3585
      %v3596 = vmul.f32 %v3460, %v3585
      %v3597 = vmul.f32 %v3461, %v3585
      %v3598 = vmul.f32 %v3462, %v3585
      %v3599 = vmul.f32 %v3463, %v3585
      %v3600 = vmul.f32 %v3464, %v3585
      %v3601 = vmul.f32 %v3465, %v3585
      %v3602 = vmul.f32 %v3466, %v3585
      %v3603 = vmul.f32 %v3467, %v3585
      %v3604 = vmul.f32 %v3468, %v3585
      %v3605 = vmul.f32 %v3469, %v3585
      %v3606 = vmul.f32 %v3470, %v3585
      %v3607 = vmul.f32 %v3471, %v3585
      %v3608 = vmul.f32 %v3472, %v3585
      %v3609 = vmul.f32 %v3473, %v3585
      %v3610 = vmul.f32 %v3474, %v3585
      %v3611 = vmul.f32 %v3475, %v3585
      %v3612 = vmul.f32 %v3476, %v3585
      %v3613 = vmul.f32 %v3477, %v3585
      %v3614 = vmul.f32 %v3478, %v3585
      %v3615 = vmul.f32 %v3479, %v3585
      %v3616 = vmul.f32 %v3480, %v3585
      %v3617 = vmul.f32 %v3481, %v3585
      %vm3618 = vcmp.ge.f32.partialorder %v3586, 0.0
      %vm3619 = vcmp.ge.f32.partialorder %v3587, 0.0
      %vm3620 = vcmp.ge.f32.partialorder %v3588, 0.0
      %vm3621 = vcmp.ge.f32.partialorder %v3589, 0.0
      %vm3622 = vcmp.ge.f32.partialorder %v3590, 0.0
      %vm3623 = vcmp.ge.f32.partialorder %v3591, 0.0
      %vm3624 = vcmp.ge.f32.partialorder %v3592, 0.0
      %vm3625 = vcmp.ge.f32.partialorder %v3593, 0.0
      %vm3626 = vcmp.ge.f32.partialorder %v3594, 0.0
      %vm3627 = vcmp.ge.f32.partialorder %v3595, 0.0
      %vm3628 = vcmp.ge.f32.partialorder %v3596, 0.0
      %vm3629 = vcmp.ge.f32.partialorder %v3597, 0.0
      %vm3630 = vcmp.ge.f32.partialorder %v3598, 0.0
      %vm3631 = vcmp.ge.f32.partialorder %v3599, 0.0
      %vm3632 = vcmp.ge.f32.partialorder %v3600, 0.0
      %vm3633 = vcmp.ge.f32.partialorder %v3601, 0.0
      %vm3634 = vcmp.ge.f32.partialorder %v3602, 0.0
      %vm3635 = vcmp.ge.f32.partialorder %v3603, 0.0
      %vm3636 = vcmp.ge.f32.partialorder %v3604, 0.0
      %vm3637 = vcmp.ge.f32.partialorder %v3605, 0.0
      %vm3638 = vcmp.ge.f32.partialorder %v3606, 0.0
      %vm3639 = vcmp.ge.f32.partialorder %v3607, 0.0
      %vm3640 = vcmp.ge.f32.partialorder %v3608, 0.0
      %vm3641 = vcmp.ge.f32.partialorder %v3609, 0.0
      %vm3642 = vcmp.ge.f32.partialorder %v3610, 0.0
      %vm3643 = vcmp.ge.f32.partialorder %v3611, 0.0
      %vm3644 = vcmp.ge.f32.partialorder %v3612, 0.0
      %vm3645 = vcmp.ge.f32.partialorder %v3613, 0.0
      %vm3646 = vcmp.ge.f32.partialorder %v3614, 0.0
      %vm3647 = vcmp.ge.f32.partialorder %v3615, 0.0
      %vm3648 = vcmp.ge.f32.partialorder %v3616, 0.0
      %vm3649 = vcmp.ge.f32.partialorder %v3617, 0.0
      %v3650 = vmul.f32 %v3586, 0.2
      %v3651 = vmul.f32 %v3587, 0.2
      %v3652 = vmul.f32 %v3588, 0.2
      %v3653 = vmul.f32 %v3589, 0.2
      %v3654 = vmul.f32 %v3590, 0.2
      %v3655 = vmul.f32 %v3591, 0.2
      %v3656 = vmul.f32 %v3592, 0.2
      %v3657 = vmul.f32 %v3593, 0.2
      %v3658 = vmul.f32 %v3594, 0.2
      %v3659 = vmul.f32 %v3595, 0.2
      %v3660 = vmul.f32 %v3596, 0.2
      %v3661 = vmul.f32 %v3597, 0.2
      %v3662 = vmul.f32 %v3598, 0.2
      %v3663 = vmul.f32 %v3599, 0.2
      %v3664 = vmul.f32 %v3600, 0.2
      %v3665 = vmul.f32 %v3601, 0.2
      %v3666 = vmul.f32 %v3602, 0.2
      %v3667 = vmul.f32 %v3603, 0.2
      %v3668 = vmul.f32 %v3604, 0.2
      %v3669 = vmul.f32 %v3605, 0.2
      %v3670 = vmul.f32 %v3606, 0.2
      %v3671 = vmul.f32 %v3607, 0.2
      %v3672 = vmul.f32 %v3608, 0.2
      %v3673 = vmul.f32 %v3609, 0.2
      %v3674 = vmul.f32 %v3610, 0.2
      %v3675 = vmul.f32 %v3611, 0.2
      %v3676 = vmul.f32 %v3612, 0.2
      %v3677 = vmul.f32 %v3613, 0.2
      %v3678 = vmul.f32 %v3614, 0.2
      %v3679 = vmul.f32 %v3615, 0.2
      %v3680 = vmul.f32 %v3616, 0.2
      %v3681 = vmul.f32 %v3617, 0.2
      %v3682 = vsel %vm3618, %v3586, %v3650
      %v3683 = vsel %vm3619, %v3587, %v3651
      %v3684 = vsel %vm3620, %v3588, %v3652
      %v3685 = vsel %vm3621, %v3589, %v3653
      %v3686 = vsel %vm3622, %v3590, %v3654
      %v3687 = vsel %vm3623, %v3591, %v3655
      %v3688 = vsel %vm3624, %v3592, %v3656
      %v3689 = vsel %vm3625, %v3593, %v3657
      %v3690 = vsel %vm3626, %v3594, %v3658
      %v3691 = vsel %vm3627, %v3595, %v3659
      %v3692 = vsel %vm3628, %v3596, %v3660
      %v3693 = vsel %vm3629, %v3597, %v3661
      %v3694 = vsel %vm3630, %v3598, %v3662
      %v3695 = vsel %vm3631, %v3599, %v3663
      %v3696 = vsel %vm3632, %v3600, %v3664
      %v3697 = vsel %vm3633, %v3601, %v3665
      %v3698 = vsel %vm3634, %v3602, %v3666
      %v3699 = vsel %vm3635, %v3603, %v3667
      %v3700 = vsel %vm3636, %v3604, %v3668
      %v3701 = vsel %vm3637, %v3605, %v3669
      %v3702 = vsel %vm3638, %v3606, %v3670
      %v3703 = vsel %vm3639, %v3607, %v3671
      %v3704 = vsel %vm3640, %v3608, %v3672
      %v3705 = vsel %vm3641, %v3609, %v3673
      %v3706 = vsel %vm3642, %v3610, %v3674
      %v3707 = vsel %vm3643, %v3611, %v3675
      %v3708 = vsel %vm3644, %v3612, %v3676
      %v3709 = vsel %vm3645, %v3613, %v3677
      %v3710 = vsel %vm3646, %v3614, %v3678
      %v3711 = vsel %vm3647, %v3615, %v3679
      %v3712 = vsel %vm3648, %v3616, %v3680
      %v3713 = vsel %vm3649, %v3617, %v3681
      %v3714 = vpack.c.bf16 %v3683, %v3682
      %v3715 = vpack.c.bf16 %v3685, %v3684
      %v3716 = vpack.c.bf16 %v3687, %v3686
      %v3717 = vpack.c.bf16 %v3689, %v3688
      %v3718 = vpack.c.bf16 %v3691, %v3690
      %v3719 = vpack.c.bf16 %v3693, %v3692
      %v3720 = vpack.c.bf16 %v3695, %v3694
      %v3721 = vpack.c.bf16 %v3697, %v3696
      %v3722 = vpack.c.bf16 %v3699, %v3698
      %v3723 = vpack.c.bf16 %v3701, %v3700
      %v3724 = vpack.c.bf16 %v3703, %v3702
      %v3725 = vpack.c.bf16 %v3705, %v3704
      %v3726 = vpack.c.bf16 %v3707, %v3706
      %v3727 = vpack.c.bf16 %v3709, %v3708
      %v3728 = vpack.c.bf16 %v3711, %v3710
      %v3729 = vpack.c.bf16 %v3713, %v3712
      %v3746 = vunpack.c.l.b16 %v3714
      %v3747 = vunpack.c.h.b16 %v3714
      %v3748 = vunpack.c.l.b16 %v3715
      %v3749 = vunpack.c.h.b16 %v3715
      %v3750 = vunpack.c.l.b16 %v3716
      %v3751 = vunpack.c.h.b16 %v3716
      %v3752 = vunpack.c.l.b16 %v3717
      %v3753 = vunpack.c.h.b16 %v3717
      %v3754 = vunpack.c.l.b16 %v3718
      %v3755 = vunpack.c.h.b16 %v3718
      %v3756 = vunpack.c.l.b16 %v3719
      %v3757 = vunpack.c.h.b16 %v3719
      %v3758 = vunpack.c.l.b16 %v3720
      %v3759 = vunpack.c.h.b16 %v3720
      %v3760 = vunpack.c.l.b16 %v3721
      %v3761 = vunpack.c.h.b16 %v3721
      %v3762 = vunpack.c.l.b16 %v3722
      %v3763 = vunpack.c.h.b16 %v3722
      %v3764 = vunpack.c.l.b16 %v3723
      %v3765 = vunpack.c.h.b16 %v3723
      %v3766 = vunpack.c.l.b16 %v3724
      %v3767 = vunpack.c.h.b16 %v3724
      %v3768 = vunpack.c.l.b16 %v3725
      %v3769 = vunpack.c.h.b16 %v3725
      %v3770 = vunpack.c.l.b16 %v3726
      %v3771 = vunpack.c.h.b16 %v3726
      %v3772 = vunpack.c.l.b16 %v3727
      %v3773 = vunpack.c.h.b16 %v3727
      %v3774 = vunpack.c.l.b16 %v3728
      %v3775 = vunpack.c.h.b16 %v3728
      %v3776 = vunpack.c.l.b16 %v3729
      %v3777 = vunpack.c.h.b16 %v3729
      %v3778 = vpack.c.b16 %v3746, %v3746
      %v3779 = vpack.c.b16 %v3747, %v3747
      %v3780 = vpack.c.b16 %v3748, %v3748
      %v3781 = vpack.c.b16 %v3749, %v3749
      %v3782 = vpack.c.b16 %v3750, %v3750
      %v3783 = vpack.c.b16 %v3751, %v3751
      %v3784 = vpack.c.b16 %v3752, %v3752
      %v3785 = vpack.c.b16 %v3753, %v3753
      %v3786 = vpack.c.b16 %v3754, %v3754
      %v3787 = vpack.c.b16 %v3755, %v3755
      %v3788 = vpack.c.b16 %v3756, %v3756
      %v3789 = vpack.c.b16 %v3757, %v3757
      %v3790 = vpack.c.b16 %v3758, %v3758
      %v3791 = vpack.c.b16 %v3759, %v3759
      %v3792 = vpack.c.b16 %v3760, %v3760
      %v3793 = vpack.c.b16 %v3761, %v3761
      %v3794 = vpack.c.b16 %v3762, %v3762
      %v3795 = vpack.c.b16 %v3763, %v3763
      %v3796 = vpack.c.b16 %v3764, %v3764
      %v3797 = vpack.c.b16 %v3765, %v3765
      %v3798 = vpack.c.b16 %v3766, %v3766
      %v3799 = vpack.c.b16 %v3767, %v3767
      %v3800 = vpack.c.b16 %v3768, %v3768
      %v3801 = vpack.c.b16 %v3769, %v3769
      %v3802 = vpack.c.b16 %v3770, %v3770
      %v3803 = vpack.c.b16 %v3771, %v3771
      %v3804 = vpack.c.b16 %v3772, %v3772
      %v3805 = vpack.c.b16 %v3773, %v3773
      %v3806 = vpack.c.b16 %v3774, %v3774
      %v3807 = vpack.c.b16 %v3775, %v3775
      %v3808 = vpack.c.b16 %v3776, %v3776
      %v3809 = vpack.c.b16 %v3777, %v3777
      %vm3842 = vcmask 27648
      %3843 = vst.msk [vmem:[%s217] sm:$0xf] %vm3842, %v3778
      %3844 = vst.msk [vmem:[%s217 + $0x4] sm:$0xf] %vm3842, %v3779
      %3845 = vst.msk [vmem:[%s217 + $0x8] sm:$0xf] %vm3842, %v3780
      %3846 = vst.msk [vmem:[%s217 + $0xc] sm:$0xf] %vm3842, %v3781
      %3847 = vst.msk [vmem:[%s217 + $0x10] sm:$0xf] %vm3842, %v3782
      %3848 = vst.msk [vmem:[%s217 + $0x14] sm:$0xf] %vm3842, %v3783
      %3849 = vst.msk [vmem:[%s217 + $0x18] sm:$0xf] %vm3842, %v3784
      %3850 = vst.msk [vmem:[%s217 + $0x1c] sm:$0xf] %vm3842, %v3785
      %3851 = vst.msk [vmem:[%s217 + $0x20] sm:$0xf] %vm3842, %v3786
      %3852 = vst.msk [vmem:[%s217 + $0x24] sm:$0xf] %vm3842, %v3787
      %3853 = vst.msk [vmem:[%s217 + $0x28] sm:$0xf] %vm3842, %v3788
      %3854 = vst.msk [vmem:[%s217 + $0x2c] sm:$0xf] %vm3842, %v3789
      %3855 = vst.msk [vmem:[%s217 + $0x30] sm:$0xf] %vm3842, %v3790
      %3856 = vst.msk [vmem:[%s217 + $0x34] sm:$0xf] %vm3842, %v3791
      %3857 = vst.msk [vmem:[%s217 + $0x38] sm:$0xf] %vm3842, %v3792
      %3858 = vst.msk [vmem:[%s217 + $0x3c] sm:$0xf] %vm3842, %v3793
      %3859 = vst.msk [vmem:[%s217 + $0x40] sm:$0xf] %vm3842, %v3794
      %3860 = vst.msk [vmem:[%s217 + $0x44] sm:$0xf] %vm3842, %v3795
      %3861 = vst.msk [vmem:[%s217 + $0x48] sm:$0xf] %vm3842, %v3796
      %3862 = vst.msk [vmem:[%s217 + $0x4c] sm:$0xf] %vm3842, %v3797
      %3863 = vst.msk [vmem:[%s217 + $0x50] sm:$0xf] %vm3842, %v3798
      %3864 = vst.msk [vmem:[%s217 + $0x54] sm:$0xf] %vm3842, %v3799
      %3865 = vst.msk [vmem:[%s217 + $0x58] sm:$0xf] %vm3842, %v3800
      %3866 = vst.msk [vmem:[%s217 + $0x5c] sm:$0xf] %vm3842, %v3801
      %3867 = vst.msk [vmem:[%s217 + $0x60] sm:$0xf] %vm3842, %v3802
      %3868 = vst.msk [vmem:[%s217 + $0x64] sm:$0xf] %vm3842, %v3803
      %3869 = vst.msk [vmem:[%s217 + $0x68] sm:$0xf] %vm3842, %v3804
      %3870 = vst.msk [vmem:[%s217 + $0x6c] sm:$0xf] %vm3842, %v3805
      %3871 = vst.msk [vmem:[%s217 + $0x70] sm:$0xf] %vm3842, %v3806
      %3872 = vst.msk [vmem:[%s217 + $0x74] sm:$0xf] %vm3842, %v3807
      %3873 = vst.msk [vmem:[%s217 + $0x78] sm:$0xf] %vm3842, %v3808
      %3874 = vst.msk [vmem:[%s217 + $0x7c] sm:$0xf] %vm3842, %v3809
      %p3875 = scmp.lt.s32.totalorder %s15, 1
      %s3876 = scalar_select %p3875, %s15, 1
      %s3877 = smul.addr %s3876, 32
      %s3878 = smul.addr %s3877, 4
      %s3879 = scalar_lea.vmem %s4, %s3878
      // Predicated region
      $region37: #{unet_up_forward.4} parent=35 // pred_check
        %p3880 = pneg %p127
      $region38: #{unet_up_forward.4} parent=35 // pred_check_branch
        %3882 = sbr.rel (%p3880) target = $region40
      $region39: #{unet_up_forward.4} parent=35 // pred_region
        _
      $region40: #{unet_up_forward.4} parent=35 // pred_fallthru
        _
    $region36: #{unet_up_forward.4} parent=5 // pred_fallthru
      _
    %p3883 = scmp.le.s32.totalorder 2, %s10
    // Predicated region
    $region41: #{unet_up_forward.4} parent=5 // pred_check
      %p3884 = pneg %p3883
    $region42: #{unet_up_forward.4} parent=5 // pred_check_branch
      %3886 = sbr.rel (%p3884) target = $region44
    $region43: #{unet_up_forward.4} parent=5 // pred_region
      %s3887 = ssub.s32 %s10, 2
      // Predicated region
      $region45: #{unet_up_forward.4} parent=43 // pred_check
        %p3888 = pneg %p133
      $region46: #{unet_up_forward.4} parent=43 // pred_check_branch
        %3890 = sbr.rel (%p3888) target = $region48
      $region47: #{unet_up_forward.4} parent=43 // pred_region
        %p3891 = scmp.lt.s32.totalorder %s16, 1
        %s3892 = scalar_select %p3891, %s16, 1
        %s3893 = smul.addr %s3892, 32
        %s3894 = smul.addr %s3893, 4
        %s3895 = scalar_lea.vmem %s4, %s3894
      $region48: #{unet_up_forward.4} parent=43 // pred_fallthru
        _
    $region44: #{unet_up_forward.4} parent=5 // pred_fallthru
      _
  $region6: #{unet_up_forward.4} parent=0 // loop_footer
    %s14 = sadd.s32 1, %s10
  $region7: #{unet_up_forward.4} parent=0 // loop_footer_branch
    %9 = sbr.rel target = $region3
  $region8: #{unet_up_forward.4} parent=0 // loop_exit
    _

</llo_original>
